<compile_context>
chip_gen: v5e
topology: v5e:2x2
jax: 0.10.0
libtpu: 0.0.40
codegen_flags: <defaults>
</compile_context>

<pallas_src>
import jax
import jax.numpy as jnp
from jax.experimental import pallas as pl
from jax.experimental.pallas import tpu as pltpu

LANE = 128


def _round_up(n, m):
    return ((n + m - 1) // m) * m


def _pick_tile_h(h, w, cp, cop, *, vmem_budget_bytes=10 << 20, target_rows=2048):
    """Largest divisor of h whose per-tile working set fits a VMEM budget."""
    per_row = w * (2 * 2 * cp      # input slab, double-buffered, bf16
                   + 9 * cp * 2    # im2col patch, bf16
                   + cop * 4       # f32 accumulator
                   + 2 * cop * 2)  # output block, double-buffered, bf16
    cap = max(1, min(vmem_budget_bytes // max(per_row, 1),
                     max(1, target_rows // max(w, 1))))
    best = 1
    for d in range(1, h + 1):
        if d <= cap and h % d == 0:
            best = d
    return best
    # TODO(synk): support a ragged tail tile (pl.cdiv grid + masked stats) so odd /
    # prime H does not degrade to tiny divisors.


# ----------------------------------------------------------------------------
# Conv 3x3 (stride 1, pad 1, no bias) kernel body.
#   * input lives in HBM (pl.ANY); each step DMAs its (th+2)-row slab into a
#     double-buffered VMEM scratch (prefetching the next row-tile of the image).
#   * optionally fuses the PREVIOUS conv's BatchNorm apply + ReLU onto the slab
#     right after the DMA wait (scale/shift operands), so that activation never
#     makes an extra HBM round trip.
#   * emits the raw conv output in bf16 plus per-tile (mean, centered-M2) BN
#     partials computed from the f32 MXU accumulator.
# ----------------------------------------------------------------------------
def _conv_body(x_hbm, scale_ref, shift_ref, w_ref, o_ref, pmean_ref, pm2_ref,
               slab, sem):
    # x_hbm : (N*H, W, Cp)   bf16, HBM
    # w_ref : (9*Cp, Cop)    bf16, VMEM
    # o_ref : (1, TH, W, Cop)      bf16
    # pmean_ref, pm2_ref : (1, 1, 1, Cop) f32
    # slab  : VMEM scratch (2, TH+2, W, Cp) bf16
    # sem   : DMA semaphores (2, 3)  -- {main, top-halo, bottom-halo} per slot
    b = pl.program_id(0)
    r = pl.program_id(1)
    n_r = pl.num_programs(1)
    th = o_ref.shape[1]
    w_out = o_ref.shape[2]
    cop = o_ref.shape[3]
    cp = slab.shape[3]
    h = n_r * th
    slot = r % 2

    def fetch(bb, rr, sl, wait):
        base = bb * h + rr * th
        cp_main = pltpu.make_async_copy(
            x_hbm.at[pl.ds(base, th)],
            slab.at[sl, pl.ds(1, th)],
            sem.at[sl, 0])
        (cp_main.wait if wait else cp_main.start)()

        @pl.when(rr > 0)
        def _():
            cp_top = pltpu.make_async_copy(
                x_hbm.at[pl.ds(base - 1, 1)],
                slab.at[sl, pl.ds(0, 1)],
                sem.at[sl, 1])
            (cp_top.wait if wait else cp_top.start)()

        @pl.when(rr < n_r - 1)
        def _():
            cp_bot = pltpu.make_async_copy(
                x_hbm.at[pl.ds(base + th, 1)],
                slab.at[sl, pl.ds(th + 1, 1)],
                sem.at[sl, 2])
            (cp_bot.wait if wait else cp_bot.start)()

    # Cold-start fetch for the first row-tile of this image, prefetch the next
    # row-tile into the other slot, then wait on the current slab.
    @pl.when(r == 0)
    def _():
        fetch(b, r, slot, wait=False)

    @pl.when(r + 1 < n_r)
    def _():
        fetch(b, r + 1, 1 - slot, wait=False)

    fetch(b, r, slot, wait=True)

    x = slab[slot]                                       # (TH+2, W, Cp) bf16

    # Rows that are conv zero-padding (top/bottom of the image) were never DMA'd;
    # mask them to exact zeros.  For the fused-BN path the mask is also what keeps
    # relu(shift) from leaking into the padding ring.
    row = jax.lax.broadcasted_iota(jnp.int32, (th + 2, w_out, 1), 0)
    row_lo = jnp.where(r == 0, 1, 0)
    row_hi = jnp.where(r == n_r - 1, th, th + 1)
    rvalid = (row >= row_lo) & (row <= row_hi)

    if scale_ref is not None:
        # Fused previous-conv BatchNorm apply + ReLU on the input slab.
        scale = scale_ref[...].reshape(1, 1, cp)
        shift = shift_ref[...].reshape(1, 1, cp)
        xf = jnp.maximum(x.astype(jnp.float32) * scale + shift, 0.0)
        x = jnp.where(rvalid, xf, 0.0).astype(jnp.bfloat16)
    else:
        x = jnp.where(rvalid, x, jnp.zeros_like(x))

    # Left/right conv padding: one zero column on each side (W is never tiled).
    zcol = jnp.zeros((th + 2, 1, cp), jnp.bfloat16)
    xw = jnp.concatenate([zcol, x, zcol], axis=1)        # (TH+2, W+2, Cp)

    # im2col: for each kh row-band, lane-concat the 3 kw taps (Cp is 128-aligned),
    # then one wide-K MXU matmul with f32 accumulation.
    # TODO(synk): on v7x use 3 accumulating matmuls (MRB) / pltpu.roll for the kw
    # shifts to cut patch VMEM and move the shuffle work onto the XLU slot.
    parts = []
    for kh in range(3):
        band = xw[kh:kh + th]                            # (TH, W+2, Cp)
        taps = [band[:, kw:kw + w_out, :] for kw in range(3)]
        parts.append(jnp.concatenate(taps, axis=-1).reshape(th * w_out, 3 * cp))
    patch = jnp.concatenate(parts, axis=-1)              # (TH*W, 9*Cp) bf16

    acc = jnp.dot(patch, w_ref[...], preferred_element_type=jnp.float32)

    o_ref[...] = acc.reshape(1, th, w_out, cop).astype(o_ref.dtype)

    # Per-tile BatchNorm partials (mean + centered second moment) from the f32 acc.
    inv_cnt = jnp.float32(1.0 / (th * w_out))
    tmean = jnp.sum(acc, axis=0, keepdims=True) * inv_cnt        # (1, Cop)
    diff = acc - tmean
    pmean_ref[...] = tmean.reshape(1, 1, 1, cop)
    pm2_ref[...] = jnp.sum(diff * diff, axis=0, keepdims=True).reshape(1, 1, 1, cop)


def _conv_kernel_plain(x_hbm, w_ref, o_ref, pmean_ref, pm2_ref, slab, sem):
    _conv_body(x_hbm, None, None, w_ref, o_ref, pmean_ref, pm2_ref, slab, sem)


def _conv_kernel_fused(x_hbm, scale_ref, shift_ref, w_ref, o_ref, pmean_ref,
                       pm2_ref, slab, sem):
    _conv_body(x_hbm, scale_ref, shift_ref, w_ref, o_ref, pmean_ref, pm2_ref,
               slab, sem)


def conv3x3_stage(x_nhwc_bf16, w2d_bf16, *, in_scale=None, in_shift=None, th):
    """Raw conv3x3 (pad=1, no bias) with optional fused input-side BN+ReLU.

    Returns (conv_raw_bf16 (N,H,W,Cop), mean (Cop,), var (Cop,)) where mean/var are
    the batch statistics of the raw conv output (biased variance, BN training mode).
    """
    n, h, w, cp = x_nhwc_bf16.shape
    cop = w2d_bf16.shape[1]
    assert h % th == 0, (h, th)
    n_r = h // th
    x_flat = x_nhwc_bf16.reshape(n * h, w, cp)           # free reshape
    fuse = in_scale is not None

    in_specs = [pl.BlockSpec(memory_space=pl.ANY)]       # stays in HBM, manual DMA
    args = [x_flat]
    if fuse:
        in_specs += [pl.BlockSpec((1, cp), lambda b, r: (0, 0)),
                     pl.BlockSpec((1, cp), lambda b, r: (0, 0))]
        args += [in_scale.reshape(1, cp), in_shift.reshape(1, cp)]
    # TODO(synk): single-buffer the constant-index weight block (pl.Buffered(1))
    # once verified on this jax version; it is double-buffered by default.
    in_specs += [pl.BlockSpec((9 * cp, cop), lambda b, r: (0, 0))]
    args += [w2d_bf16]

    kernel = _conv_kernel_fused if fuse else _conv_kernel_plain

    conv_raw, pmean, pm2 = pl.pallas_call(
        kernel,
        grid=(n, n_r),
        in_specs=in_specs,
        out_specs=(
            pl.BlockSpec((1, th, w, cop), lambda b, r: (b, r, 0, 0)),
            pl.BlockSpec((1, 1, 1, cop), lambda b, r: (b, r, 0, 0)),
            pl.BlockSpec((1, 1, 1, cop), lambda b, r: (b, r, 0, 0)),
        ),
        out_shape=(
            jax.ShapeDtypeStruct((n, h, w, cop), jnp.bfloat16),
            jax.ShapeDtypeStruct((n, n_r, 1, cop), jnp.float32),
            jax.ShapeDtypeStruct((n, n_r, 1, cop), jnp.float32),
        ),
        scratch_shapes=[
            pltpu.VMEM((2, th + 2, w, cp), jnp.bfloat16),
            pltpu.SemaphoreType.DMA((2, 3)),
        ],
        compiler_params=pltpu.CompilerParams(
            dimension_semantics=("parallel", "arbitrary"),
            vmem_limit_bytes=64 * 1024 * 1024),
    )(*args)

    # Merge per-tile (mean, M2) partials -> batch stats (equal per-tile counts).
    count = jnp.float32(n * h * w)
    tile_count = jnp.float32(th * w)
    mean = jnp.mean(pmean, axis=(0, 1, 2))                              # (Cop,)
    m2 = (jnp.sum(pm2, axis=(0, 1, 2))
          + tile_count * jnp.sum(jnp.square(pmean - mean), axis=(0, 1, 2)))
    var = m2 / count
    return conv_raw, mean, var


# ----------------------------------------------------------------------------
# Final BatchNorm apply + ReLU (only for the last conv's output), lane-dense rows.
# ----------------------------------------------------------------------------
def _bn_relu_kernel(x_ref, scale_ref, shift_ref, o_ref):
    x = x_ref[...].astype(jnp.float32)
    o_ref[...] = jnp.maximum(x * scale_ref[...] + shift_ref[...], 0.0
                             ).astype(o_ref.dtype)


def bn_relu_apply(x_bf16, scale, shift, *, target_rows=4096):
    n, h, w, cop = x_bf16.shape
    m = n * h * w
    x2 = x_bf16.reshape(m, cop)
    tr = m if m <= target_rows else target_rows          # target_rows % 8 == 0
    y = pl.pallas_call(
        _bn_relu_kernel,
        grid=(pl.cdiv(m, tr),),
        in_specs=[pl.BlockSpec((tr, cop), lambda i: (i, 0)),
                  pl.BlockSpec((1, cop), lambda i: (0, 0)),
                  pl.BlockSpec((1, cop), lambda i: (0, 0))],
        out_specs=pl.BlockSpec((tr, cop), lambda i: (i, 0)),
        out_shape=jax.ShapeDtypeStruct((m, cop), jnp.float32),
        compiler_params=pltpu.CompilerParams(
            dimension_semantics=("parallel",)),
    )(x2, scale.reshape(1, cop), shift.reshape(1, cop))
    return y.reshape(n, h, w, cop)


# ----------------------------------------------------------------------------
# Parameter packing (lane padding, HWIO -> (9*Cin_pad, Cout_pad) bf16)
# ----------------------------------------------------------------------------
def _prep_weight(w_hwio, cin_pad, cout_pad):
    kh, kw, cin, cout = w_hwio.shape
    assert (kh, kw) == (3, 3)
    w = jnp.zeros((3, 3, cin_pad, cout_pad), jnp.float32)
    w = w.at[:, :, :cin, :cout].set(w_hwio.astype(jnp.float32))
    return w.reshape(9 * cin_pad, cout_pad).astype(jnp.bfloat16)


def _pad_vec(v, n):
    return jnp.pad(v.astype(jnp.float32), (0, n - v.shape[0]))


def _bn_affine(mean, var, gamma, beta, eps):
    inv = jax.lax.rsqrt(var + jnp.float32(eps))
    scale = (gamma * inv).astype(jnp.float32)
    shift = (beta - mean * gamma * inv).astype(jnp.float32)
    return scale, shift


# ----------------------------------------------------------------------------
# DecoderBlock forward (NCHW in / NCHW out, matching the PyTorch module)
# ----------------------------------------------------------------------------
def decoder_block_forward(x_nchw, skip_nchw, params, *, tile_h=None, eps=1e-5):
    # Same check as the PyTorch forward (compares last dim / W only).
    if x_nchw.shape[-1] != skip_nchw.shape[-1]:
        # nearest 2x upsample on the 4x smaller pre-upsample tensor.
        # TODO(synk): fold the upsample into conv1's slab DMA / a pack kernel.
        x_nchw = jnp.repeat(jnp.repeat(x_nchw, 2, axis=2), 2, axis=3)

    # TODO(synk): keep activations NHWC end-to-end across the network so these
    # boundary transposes cancel with the neighbouring blocks.
    x = jnp.transpose(x_nchw, (0, 2, 3, 1))
    skip = jnp.transpose(skip_nchw, (0, 2, 3, 1))

    n, h, w, cx = x.shape
    cs = skip.shape[-1]
    c_in = cx + cs
    cin_p = _round_up(c_in, LANE)
    out_ch = params["g1"].shape[0]
    cout_p = _round_up(out_ch, LANE)

    # torch.cat([x, skip], dim=1) + lane padding + bf16 cast in ONE concatenate
    # (single read of x/skip, single bf16 write; no separate pad / cast sweeps).
    pieces = [x.astype(jnp.bfloat16), skip.astype(jnp.bfloat16)]
    if cin_p > c_in:
        pieces.append(jnp.zeros((n, h, w, cin_p - c_in), jnp.bfloat16))
    x_cat = jnp.concatenate(pieces, axis=-1)             # (N,H,W,Cin_p) bf16

    w1 = _prep_weight(params["w1"], cin_p, cout_p)
    w2 = _prep_weight(params["w2"], cout_p, cout_p)
    g1, b1 = _pad_vec(params["g1"], cout_p), _pad_vec(params["b1"], cout_p)
    g2, b2 = _pad_vec(params["g2"], cout_p), _pad_vec(params["b2"], cout_p)

    th1 = tile_h if tile_h is not None else _pick_tile_h(h, w, cin_p, cout_p)
    th2 = tile_h if tile_h is not None else _pick_tile_h(h, w, cout_p, cout_p)

    # conv1: raw bf16 output + batch stats (BN1 is *not* applied here).
    y1_raw, mean1, var1 = conv3x3_stage(x_cat, w1, th=th1)
    scale1, shift1 = _bn_affine(mean1, var1, g1, b1, eps)

    # conv2 with BN1 + ReLU fused into its input load; raw bf16 output + stats.
    y2_raw, mean2, var2 = conv3x3_stage(y1_raw, w2, in_scale=scale1,
                                        in_shift=shift1, th=th2)
    scale2, shift2 = _bn_affine(mean2, var2, g2, b2, eps)

    y = bn_relu_apply(y2_raw, scale2, shift2)             # (N,H,W,Cout_p) f32
    y = y[..., :out_ch]                                    # drop lane padding
    return jnp.transpose(y, (0, 3, 1, 2))                  # NHWC -> NCHW

    # TODO(synk): BatchNorm running_mean / running_var buffers are not updated
    # (PyTorch training-mode side effect); forward numerics only.


# ----------------------------------------------------------------------------
# Pure-JAX reference mirroring the kernel's quantization points (bf16 MXU
# operands, f32 accumulation/statistics, bf16 intermediate activations).
# ----------------------------------------------------------------------------
def _ref_forward(x_nchw, skip_nchw, params, eps=1e-5):
    if x_nchw.shape[-1] != skip_nchw.shape[-1]:
        x_nchw = jnp.repeat(jnp.repeat(x_nchw, 2, axis=2), 2, axis=3)
    x = jnp.transpose(x_nchw, (0, 2, 3, 1))
    skip = jnp.transpose(skip_nchw, (0, 2, 3, 1))
    x = jnp.concatenate([x, skip], axis=-1).astype(jnp.bfloat16)

    def conv(z_bf16, w_hwio):
        return jax.lax.conv_general_dilated(
            z_bf16, w_hwio.astype(jnp.bfloat16), (1, 1), "SAME",
            dimension_numbers=("NHWC", "HWIO", "NHWC"),
            preferred_element_type=jnp.float32)

    def bn_affine(y_f32, gamma, beta):
        mean = jnp.mean(y_f32, axis=(0, 1, 2))
        var = jnp.mean(jnp.square(y_f32 - mean), axis=(0, 1, 2))
        inv = jax.lax.rsqrt(var + eps)
        return gamma * inv, beta - mean * gamma * inv

    y1 = conv(x, params["w1"])
    s1, t1 = bn_affine(y1, params["g1"], params["b1"])
    y1q = y1.astype(jnp.bfloat16).astype(jnp.float32)       # bf16 intermediate
    a1 = jnp.maximum(y1q * s1 + t1, 0.0)

    y2 = conv(a1.astype(jnp.bfloat16), params["w2"])
    s2, t2 = bn_affine(y2, params["g2"], params["b2"])
    y2q = y2.astype(jnp.bfloat16).astype(jnp.float32)
    out = jnp.maximum(y2q * s2 + t2, 0.0)
    return jnp.transpose(out, (0, 3, 1, 2))


if __name__ == "__main__":
    # DecoderBlock(in_channels=4, skip_channels=4, out_channels=8); x at half the
    # skip resolution so the nearest-2x upsample path triggers.
    N, in_ch, skip_ch, out_ch = 2, 4, 4, 8
    Hs, Ws = 16, 16
    key = jax.random.PRNGKey(0)
    k_x, k_s, k_w1, k_w2, k_g1, k_b1, k_g2, k_b2 = jax.random.split(key, 8)

    x = jax.random.normal(k_x, (N, in_ch, Hs // 2, Ws // 2), jnp.float32)
    skip = jax.random.normal(k_s, (N, skip_ch, Hs, Ws), jnp.float32)

    c1_in = in_ch + skip_ch
    params = {
        "w1": 0.1 * jax.random.normal(k_w1, (3, 3, c1_in, out_ch), jnp.float32),
        "w2": 0.1 * jax.random.normal(k_w2, (3, 3, out_ch, out_ch), jnp.float32),
        "g1": 1.0 + 0.1 * jax.random.normal(k_g1, (out_ch,), jnp.float32),
        "b1": 0.1 * jax.random.normal(k_b1, (out_ch,), jnp.float32),
        "g2": 1.0 + 0.1 * jax.random.normal(k_g2, (out_ch,), jnp.float32),
        "b2": 0.1 * jax.random.normal(k_b2, (out_ch,), jnp.float32),
    }

    # tile_h=4 -> 4 row-tiles per image, exercising first / middle / last halo
    # cases of the manual slab DMA and the tiled two-pass BN.
    fwd = jax.jit(lambda a, s, p: decoder_block_forward(a, s, p, tile_h=4))
    out = jax.block_until_ready(fwd(x, skip, params))
    ref = jax.block_until_ready(_ref_forward(x, skip, params))

    assert out.shape == (N, out_ch, Hs, Ws), out.shape
    err = float(jnp.max(jnp.abs(out - ref)))
    assert jnp.allclose(out, ref, atol=2e-2, rtol=2e-2), err
    print("KERNEL_OK")
</pallas_src>

<mosaic_0001>
module attributes {stable_mosaic.version = 11 : i64} {
  func.func @_conv_kernel_plain(%arg0: i32, %arg1: i32, %arg2: memref<32x16x128xbf16, #tpu.memory_space<any>>, %arg3: memref<1152x128xbf16, #tpu.memory_space<vmem>>, %arg4: memref<1x4x16x128xbf16, #tpu.memory_space<vmem>>, %arg5: memref<1x1x1x128xf32, #tpu.memory_space<vmem>>, %arg6: memref<1x1x1x128xf32, #tpu.memory_space<vmem>>, %arg7: memref<2x6x16x128xbf16, #tpu.memory_space<vmem>>, %arg8: memref<2x3x!tpu.dma_semaphore, #tpu.memory_space<semaphore_mem>>) attributes {dimension_semantics = [#tpu.dimension_semantics<parallel>, #tpu.dimension_semantics<arbitrary>], iteration_bounds = array<i64: 2, 4>, scalar_prefetch = 0 : i64, scratch_operands = 2 : i64, tpu.core_type = #tpu.core_type<tc>, window_params = [{}, {pipeline_mode = #tpu.pipeline_mode<synchronous>, transform_indices = @transform_1, window_bounds = array<i64: 1152, 128>}, {transform_indices = @transform_2, window_bounds = array<i64: 1, 4, 16, 128>}, {transform_indices = @transform_3, window_bounds = array<i64: 1, 1, 1, 128>}, {transform_indices = @transform_4, window_bounds = array<i64: 1, 1, 1, 128>}]} {
    %c2_i32 = arith.constant 2 : i32
    %c0_i32 = arith.constant 0 : i32
    %0 = arith.cmpi eq, %c2_i32, %c0_i32 : i32
    %c1_i32 = arith.constant 1 : i32
    %1 = arith.select %0, %c1_i32, %c2_i32 : i32
    %2 = arith.remsi %arg1, %1 : i32
    %c0_i32_0 = arith.constant 0 : i32
    %3 = arith.cmpi ne, %2, %c0_i32_0 : i32
    %c0_i32_1 = arith.constant 0 : i32
    %4 = arith.cmpi slt, %2, %c0_i32_1 : i32
    %c0_i32_2 = arith.constant 0 : i32
    %5 = arith.cmpi slt, %1, %c0_i32_2 : i32
    %6 = arith.xori %4, %5 : i1
    %7 = arith.andi %6, %3 : i1
    %8 = arith.addi %2, %1 : i32
    %9 = arith.select %7, %8, %2 : i32
    %c0_i32_3 = arith.constant 0 : i32
    %10 = arith.cmpi eq, %arg1, %c0_i32_3 : i32
    %11 = arith.extui %10 : i1 to i32
    %c0_i32_4 = arith.constant 0 : i32
    %12 = arith.cmpi ne, %11, %c0_i32_4 : i32
    scf.if %12 {
      %c16_i32_43 = arith.constant 16 : i32
      %87 = arith.muli %arg0, %c16_i32_43 : i32
      %c4_i32_44 = arith.constant 4 : i32
      %88 = arith.muli %arg1, %c4_i32_44 : i32
      %89 = arith.addi %87, %88 : i32
      %c0_i32_45 = arith.constant 0 : i32
      %c0_i32_46 = arith.constant 0 : i32
      %c0_i32_47 = arith.constant 0 : i32
      %90 = tpu.memref_slice %arg2[%89, %c0_i32_46, %c0_i32_47] : memref<32x16x128xbf16, #tpu.memory_space<any>> -> memref<4x16x128xbf16, #tpu.memory_space<any>>
      %c1_i32_48 = arith.constant 1 : i32
      %c0_i32_49 = arith.constant 0 : i32
      %c0_i32_50 = arith.constant 0 : i32
      %91 = tpu.memref_slice %arg7[%9, %c1_i32_48, %c0_i32_49, %c0_i32_50] : memref<2x6x16x128xbf16, #tpu.memory_space<vmem>> -> memref<1x4x16x128xbf16, #tpu.memory_space<vmem>>
      %92 = tpu.memref_squeeze %91 : memref<1x4x16x128xbf16, #tpu.memory_space<vmem>> -> memref<4x16x128xbf16, #tpu.memory_space<vmem>>
      %93 = tpu.memref_slice %arg8[%9, %c0_i32_45] : memref<2x3x!tpu.dma_semaphore, #tpu.memory_space<semaphore_mem>> -> memref<1x1x!tpu.dma_semaphore, #tpu.memory_space<semaphore_mem>>
      %94 = tpu.memref_squeeze %93 : memref<1x1x!tpu.dma_semaphore, #tpu.memory_space<semaphore_mem>> -> memref<!tpu.dma_semaphore, #tpu.memory_space<semaphore_mem>>
      tpu.enqueue_dma source(%90 : memref<4x16x128xbf16, #tpu.memory_space<any>>) target(%92 : memref<4x16x128xbf16, #tpu.memory_space<vmem>>) target_semaphore(%94 : memref<!tpu.dma_semaphore, #tpu.memory_space<semaphore_mem>>)
      %c0_i32_51 = arith.constant 0 : i32
      %95 = arith.cmpi sgt, %arg1, %c0_i32_51 : i32
      %96 = arith.extui %95 : i1 to i32
      %c0_i32_52 = arith.constant 0 : i32
      %97 = arith.cmpi ne, %96, %c0_i32_52 : i32
      scf.if %97 {
        %c1_i32_55 = arith.constant 1 : i32
        %101 = arith.subi %89, %c1_i32_55 : i32
        %c1_i32_56 = arith.constant 1 : i32
        %c0_i32_57 = arith.constant 0 : i32
        %c0_i32_58 = arith.constant 0 : i32
        %102 = tpu.memref_slice %arg2[%101, %c0_i32_57, %c0_i32_58] : memref<32x16x128xbf16, #tpu.memory_space<any>> -> memref<1x16x128xbf16, #tpu.memory_space<any>>
        %c0_i32_59 = arith.constant 0 : i32
        %c0_i32_60 = arith.constant 0 : i32
        %c0_i32_61 = arith.constant 0 : i32
        %103 = tpu.memref_slice %arg7[%9, %c0_i32_59, %c0_i32_60, %c0_i32_61] : memref<2x6x16x128xbf16, #tpu.memory_space<vmem>> -> memref<1x1x16x128xbf16, #tpu.memory_space<vmem>>
        %104 = tpu.memref_squeeze %103 : memref<1x1x16x128xbf16, #tpu.memory_space<vmem>> -> memref<1x16x128xbf16, #tpu.memory_space<vmem>>
        %105 = tpu.memref_slice %arg8[%9, %c1_i32_56] : memref<2x3x!tpu.dma_semaphore, #tpu.memory_space<semaphore_mem>> -> memref<1x1x!tpu.dma_semaphore, #tpu.memory_space<semaphore_mem>>
        %106 = tpu.memref_squeeze %105 : memref<1x1x!tpu.dma_semaphore, #tpu.memory_space<semaphore_mem>> -> memref<!tpu.dma_semaphore, #tpu.memory_space<semaphore_mem>>
        tpu.enqueue_dma source(%102 : memref<1x16x128xbf16, #tpu.memory_space<any>>) target(%104 : memref<1x16x128xbf16, #tpu.memory_space<vmem>>) target_semaphore(%106 : memref<!tpu.dma_semaphore, #tpu.memory_space<semaphore_mem>>)
      } else {
      }
      %c3_i32_53 = arith.constant 3 : i32
      %98 = arith.cmpi slt, %arg1, %c3_i32_53 : i32
      %99 = arith.extui %98 : i1 to i32
      %c0_i32_54 = arith.constant 0 : i32
      %100 = arith.cmpi ne, %99, %c0_i32_54 : i32
      scf.if %100 {
        %c4_i32_55 = arith.constant 4 : i32
        %101 = arith.addi %89, %c4_i32_55 : i32
        %c2_i32_56 = arith.constant 2 : i32
        %c0_i32_57 = arith.constant 0 : i32
        %c0_i32_58 = arith.constant 0 : i32
        %102 = tpu.memref_slice %arg2[%101, %c0_i32_57, %c0_i32_58] : memref<32x16x128xbf16, #tpu.memory_space<any>> -> memref<1x16x128xbf16, #tpu.memory_space<any>>
        %c5_i32_59 = arith.constant 5 : i32
        %c0_i32_60 = arith.constant 0 : i32
        %c0_i32_61 = arith.constant 0 : i32
        %103 = tpu.memref_slice %arg7[%9, %c5_i32_59, %c0_i32_60, %c0_i32_61] : memref<2x6x16x128xbf16, #tpu.memory_space<vmem>> -> memref<1x1x16x128xbf16, #tpu.memory_space<vmem>>
        %104 = tpu.memref_squeeze %103 : memref<1x1x16x128xbf16, #tpu.memory_space<vmem>> -> memref<1x16x128xbf16, #tpu.memory_space<vmem>>
        %105 = tpu.memref_slice %arg8[%9, %c2_i32_56] : memref<2x3x!tpu.dma_semaphore, #tpu.memory_space<semaphore_mem>> -> memref<1x1x!tpu.dma_semaphore, #tpu.memory_space<semaphore_mem>>
        %106 = tpu.memref_squeeze %105 : memref<1x1x!tpu.dma_semaphore, #tpu.memory_space<semaphore_mem>> -> memref<!tpu.dma_semaphore, #tpu.memory_space<semaphore_mem>>
        tpu.enqueue_dma source(%102 : memref<1x16x128xbf16, #tpu.memory_space<any>>) target(%104 : memref<1x16x128xbf16, #tpu.memory_space<vmem>>) target_semaphore(%106 : memref<!tpu.dma_semaphore, #tpu.memory_space<semaphore_mem>>)
      } else {
      }
    } else {
    }
    %c1_i32_5 = arith.constant 1 : i32
    %13 = arith.addi %arg1, %c1_i32_5 : i32
    %c4_i32 = arith.constant 4 : i32
    %14 = arith.cmpi slt, %13, %c4_i32 : i32
    %15 = arith.extui %14 : i1 to i32
    %c0_i32_6 = arith.constant 0 : i32
    %16 = arith.cmpi ne, %15, %c0_i32_6 : i32
    scf.if %16 {
      %c1_i32_43 = arith.constant 1 : i32
      %87 = arith.addi %arg1, %c1_i32_43 : i32
      %c1_i32_44 = arith.constant 1 : i32
      %88 = arith.subi %c1_i32_44, %9 : i32
      %c16_i32_45 = arith.constant 16 : i32
      %89 = arith.muli %arg0, %c16_i32_45 : i32
      %c4_i32_46 = arith.constant 4 : i32
      %90 = arith.muli %87, %c4_i32_46 : i32
      %91 = arith.addi %89, %90 : i32
      %c0_i32_47 = arith.constant 0 : i32
      %c0_i32_48 = arith.constant 0 : i32
      %c0_i32_49 = arith.constant 0 : i32
      %92 = tpu.memref_slice %arg2[%91, %c0_i32_48, %c0_i32_49] : memref<32x16x128xbf16, #tpu.memory_space<any>> -> memref<4x16x128xbf16, #tpu.memory_space<any>>
      %c1_i32_50 = arith.constant 1 : i32
      %c0_i32_51 = arith.constant 0 : i32
      %c0_i32_52 = arith.constant 0 : i32
      %93 = tpu.memref_slice %arg7[%88, %c1_i32_50, %c0_i32_51, %c0_i32_52] : memref<2x6x16x128xbf16, #tpu.memory_space<vmem>> -> memref<1x4x16x128xbf16, #tpu.memory_space<vmem>>
      %94 = tpu.memref_squeeze %93 : memref<1x4x16x128xbf16, #tpu.memory_space<vmem>> -> memref<4x16x128xbf16, #tpu.memory_space<vmem>>
      %95 = tpu.memref_slice %arg8[%88, %c0_i32_47] : memref<2x3x!tpu.dma_semaphore, #tpu.memory_space<semaphore_mem>> -> memref<1x1x!tpu.dma_semaphore, #tpu.memory_space<semaphore_mem>>
      %96 = tpu.memref_squeeze %95 : memref<1x1x!tpu.dma_semaphore, #tpu.memory_space<semaphore_mem>> -> memref<!tpu.dma_semaphore, #tpu.memory_space<semaphore_mem>>
      tpu.enqueue_dma source(%92 : memref<4x16x128xbf16, #tpu.memory_space<any>>) target(%94 : memref<4x16x128xbf16, #tpu.memory_space<vmem>>) target_semaphore(%96 : memref<!tpu.dma_semaphore, #tpu.memory_space<semaphore_mem>>)
      %c0_i32_53 = arith.constant 0 : i32
      %97 = arith.cmpi sgt, %87, %c0_i32_53 : i32
      %98 = arith.extui %97 : i1 to i32
      %c0_i32_54 = arith.constant 0 : i32
      %99 = arith.cmpi ne, %98, %c0_i32_54 : i32
      scf.if %99 {
        %c1_i32_57 = arith.constant 1 : i32
        %103 = arith.subi %91, %c1_i32_57 : i32
        %c1_i32_58 = arith.constant 1 : i32
        %c0_i32_59 = arith.constant 0 : i32
        %c0_i32_60 = arith.constant 0 : i32
        %104 = tpu.memref_slice %arg2[%103, %c0_i32_59, %c0_i32_60] : memref<32x16x128xbf16, #tpu.memory_space<any>> -> memref<1x16x128xbf16, #tpu.memory_space<any>>
        %c0_i32_61 = arith.constant 0 : i32
        %c0_i32_62 = arith.constant 0 : i32
        %c0_i32_63 = arith.constant 0 : i32
        %105 = tpu.memref_slice %arg7[%88, %c0_i32_61, %c0_i32_62, %c0_i32_63] : memref<2x6x16x128xbf16, #tpu.memory_space<vmem>> -> memref<1x1x16x128xbf16, #tpu.memory_space<vmem>>
        %106 = tpu.memref_squeeze %105 : memref<1x1x16x128xbf16, #tpu.memory_space<vmem>> -> memref<1x16x128xbf16, #tpu.memory_space<vmem>>
        %107 = tpu.memref_slice %arg8[%88, %c1_i32_58] : memref<2x3x!tpu.dma_semaphore, #tpu.memory_space<semaphore_mem>> -> memref<1x1x!tpu.dma_semaphore, #tpu.memory_space<semaphore_mem>>
        %108 = tpu.memref_squeeze %107 : memref<1x1x!tpu.dma_semaphore, #tpu.memory_space<semaphore_mem>> -> memref<!tpu.dma_semaphore, #tpu.memory_space<semaphore_mem>>
        tpu.enqueue_dma source(%104 : memref<1x16x128xbf16, #tpu.memory_space<any>>) target(%106 : memref<1x16x128xbf16, #tpu.memory_space<vmem>>) target_semaphore(%108 : memref<!tpu.dma_semaphore, #tpu.memory_space<semaphore_mem>>)
      } else {
      }
      %c3_i32_55 = arith.constant 3 : i32
      %100 = arith.cmpi slt, %87, %c3_i32_55 : i32
      %101 = arith.extui %100 : i1 to i32
      %c0_i32_56 = arith.constant 0 : i32
      %102 = arith.cmpi ne, %101, %c0_i32_56 : i32
      scf.if %102 {
        %c4_i32_57 = arith.constant 4 : i32
        %103 = arith.addi %91, %c4_i32_57 : i32
        %c2_i32_58 = arith.constant 2 : i32
        %c0_i32_59 = arith.constant 0 : i32
        %c0_i32_60 = arith.constant 0 : i32
        %104 = tpu.memref_slice %arg2[%103, %c0_i32_59, %c0_i32_60] : memref<32x16x128xbf16, #tpu.memory_space<any>> -> memref<1x16x128xbf16, #tpu.memory_space<any>>
        %c5_i32_61 = arith.constant 5 : i32
        %c0_i32_62 = arith.constant 0 : i32
        %c0_i32_63 = arith.constant 0 : i32
        %105 = tpu.memref_slice %arg7[%88, %c5_i32_61, %c0_i32_62, %c0_i32_63] : memref<2x6x16x128xbf16, #tpu.memory_space<vmem>> -> memref<1x1x16x128xbf16, #tpu.memory_space<vmem>>
        %106 = tpu.memref_squeeze %105 : memref<1x1x16x128xbf16, #tpu.memory_space<vmem>> -> memref<1x16x128xbf16, #tpu.memory_space<vmem>>
        %107 = tpu.memref_slice %arg8[%88, %c2_i32_58] : memref<2x3x!tpu.dma_semaphore, #tpu.memory_space<semaphore_mem>> -> memref<1x1x!tpu.dma_semaphore, #tpu.memory_space<semaphore_mem>>
        %108 = tpu.memref_squeeze %107 : memref<1x1x!tpu.dma_semaphore, #tpu.memory_space<semaphore_mem>> -> memref<!tpu.dma_semaphore, #tpu.memory_space<semaphore_mem>>
        tpu.enqueue_dma source(%104 : memref<1x16x128xbf16, #tpu.memory_space<any>>) target(%106 : memref<1x16x128xbf16, #tpu.memory_space<vmem>>) target_semaphore(%108 : memref<!tpu.dma_semaphore, #tpu.memory_space<semaphore_mem>>)
      } else {
      }
    } else {
    }
    %c16_i32 = arith.constant 16 : i32
    %17 = arith.muli %arg0, %c16_i32 : i32
    %c4_i32_7 = arith.constant 4 : i32
    %18 = arith.muli %arg1, %c4_i32_7 : i32
    %19 = arith.addi %17, %18 : i32
    %c0_i32_8 = arith.constant 0 : i32
    %c0_i32_9 = arith.constant 0 : i32
    %c0_i32_10 = arith.constant 0 : i32
    %20 = tpu.memref_slice %arg2[%19, %c0_i32_9, %c0_i32_10] : memref<32x16x128xbf16, #tpu.memory_space<any>> -> memref<4x16x128xbf16, #tpu.memory_space<any>>
    %c1_i32_11 = arith.constant 1 : i32
    %c0_i32_12 = arith.constant 0 : i32
    %c0_i32_13 = arith.constant 0 : i32
    %21 = tpu.memref_slice %arg7[%9, %c1_i32_11, %c0_i32_12, %c0_i32_13] : memref<2x6x16x128xbf16, #tpu.memory_space<vmem>> -> memref<1x4x16x128xbf16, #tpu.memory_space<vmem>>
    %22 = tpu.memref_squeeze %21 : memref<1x4x16x128xbf16, #tpu.memory_space<vmem>> -> memref<4x16x128xbf16, #tpu.memory_space<vmem>>
    %23 = tpu.memref_slice %arg8[%9, %c0_i32_8] : memref<2x3x!tpu.dma_semaphore, #tpu.memory_space<semaphore_mem>> -> memref<1x1x!tpu.dma_semaphore, #tpu.memory_space<semaphore_mem>>
    %24 = tpu.memref_squeeze %23 : memref<1x1x!tpu.dma_semaphore, #tpu.memory_space<semaphore_mem>> -> memref<!tpu.dma_semaphore, #tpu.memory_space<semaphore_mem>>
    tpu.wait_dma2 semaphore(%24 : memref<!tpu.dma_semaphore, #tpu.memory_space<semaphore_mem>>) src(%20 : memref<4x16x128xbf16, #tpu.memory_space<any>>) dst(%22 : memref<4x16x128xbf16, #tpu.memory_space<vmem>>)
    %c0_i32_14 = arith.constant 0 : i32
    %25 = arith.cmpi sgt, %arg1, %c0_i32_14 : i32
    %26 = arith.extui %25 : i1 to i32
    %c0_i32_15 = arith.constant 0 : i32
    %27 = arith.cmpi ne, %26, %c0_i32_15 : i32
    scf.if %27 {
      %c1_i32_43 = arith.constant 1 : i32
      %87 = arith.subi %19, %c1_i32_43 : i32
      %c1_i32_44 = arith.constant 1 : i32
      %c0_i32_45 = arith.constant 0 : i32
      %c0_i32_46 = arith.constant 0 : i32
      %88 = tpu.memref_slice %arg2[%87, %c0_i32_45, %c0_i32_46] : memref<32x16x128xbf16, #tpu.memory_space<any>> -> memref<1x16x128xbf16, #tpu.memory_space<any>>
      %c0_i32_47 = arith.constant 0 : i32
      %c0_i32_48 = arith.constant 0 : i32
      %c0_i32_49 = arith.constant 0 : i32
      %89 = tpu.memref_slice %arg7[%9, %c0_i32_47, %c0_i32_48, %c0_i32_49] : memref<2x6x16x128xbf16, #tpu.memory_space<vmem>> -> memref<1x1x16x128xbf16, #tpu.memory_space<vmem>>
      %90 = tpu.memref_squeeze %89 : memref<1x1x16x128xbf16, #tpu.memory_space<vmem>> -> memref<1x16x128xbf16, #tpu.memory_space<vmem>>
      %91 = tpu.memref_slice %arg8[%9, %c1_i32_44] : memref<2x3x!tpu.dma_semaphore, #tpu.memory_space<semaphore_mem>> -> memref<1x1x!tpu.dma_semaphore, #tpu.memory_space<semaphore_mem>>
      %92 = tpu.memref_squeeze %91 : memref<1x1x!tpu.dma_semaphore, #tpu.memory_space<semaphore_mem>> -> memref<!tpu.dma_semaphore, #tpu.memory_space<semaphore_mem>>
      tpu.wait_dma2 semaphore(%92 : memref<!tpu.dma_semaphore, #tpu.memory_space<semaphore_mem>>) src(%88 : memref<1x16x128xbf16, #tpu.memory_space<any>>) dst(%90 : memref<1x16x128xbf16, #tpu.memory_space<vmem>>)
    } else {
    }
    %c3_i32 = arith.constant 3 : i32
    %28 = arith.cmpi slt, %arg1, %c3_i32 : i32
    %29 = arith.extui %28 : i1 to i32
    %c0_i32_16 = arith.constant 0 : i32
    %30 = arith.cmpi ne, %29, %c0_i32_16 : i32
    scf.if %30 {
      %c4_i32_43 = arith.constant 4 : i32
      %87 = arith.addi %19, %c4_i32_43 : i32
      %c2_i32_44 = arith.constant 2 : i32
      %c0_i32_45 = arith.constant 0 : i32
      %c0_i32_46 = arith.constant 0 : i32
      %88 = tpu.memref_slice %arg2[%87, %c0_i32_45, %c0_i32_46] : memref<32x16x128xbf16, #tpu.memory_space<any>> -> memref<1x16x128xbf16, #tpu.memory_space<any>>
      %c5_i32_47 = arith.constant 5 : i32
      %c0_i32_48 = arith.constant 0 : i32
      %c0_i32_49 = arith.constant 0 : i32
      %89 = tpu.memref_slice %arg7[%9, %c5_i32_47, %c0_i32_48, %c0_i32_49] : memref<2x6x16x128xbf16, #tpu.memory_space<vmem>> -> memref<1x1x16x128xbf16, #tpu.memory_space<vmem>>
      %90 = tpu.memref_squeeze %89 : memref<1x1x16x128xbf16, #tpu.memory_space<vmem>> -> memref<1x16x128xbf16, #tpu.memory_space<vmem>>
      %91 = tpu.memref_slice %arg8[%9, %c2_i32_44] : memref<2x3x!tpu.dma_semaphore, #tpu.memory_space<semaphore_mem>> -> memref<1x1x!tpu.dma_semaphore, #tpu.memory_space<semaphore_mem>>
      %92 = tpu.memref_squeeze %91 : memref<1x1x!tpu.dma_semaphore, #tpu.memory_space<semaphore_mem>> -> memref<!tpu.dma_semaphore, #tpu.memory_space<semaphore_mem>>
      tpu.wait_dma2 semaphore(%92 : memref<!tpu.dma_semaphore, #tpu.memory_space<semaphore_mem>>) src(%88 : memref<1x16x128xbf16, #tpu.memory_space<any>>) dst(%90 : memref<1x16x128xbf16, #tpu.memory_space<vmem>>)
    } else {
    }
    %31 = arith.index_cast %9 : i32 to index
    %c0 = arith.constant 0 : index
    %c0_17 = arith.constant 0 : index
    %c0_18 = arith.constant 0 : index
    %32 = vector.load %arg7[%31, %c0, %c0_17, %c0_18] : memref<2x6x16x128xbf16, #tpu.memory_space<vmem>>, vector<1x6x16x128xbf16>
    %33 = vector.shape_cast %32 : vector<1x6x16x128xbf16> to vector<6x16x128xbf16>
    %34 = tpu.iota {dimensions = array<i32: 0>} : vector<6x16x1xi32>
    %c0_i32_19 = arith.constant 0 : i32
    %35 = arith.cmpi eq, %arg1, %c0_i32_19 : i32
    %c1_i32_20 = arith.constant 1 : i32
    %c0_i32_21 = arith.constant 0 : i32
    %36 = arith.select %35, %c1_i32_20, %c0_i32_21 : i32
    %c3_i32_22 = arith.constant 3 : i32
    %37 = arith.cmpi eq, %arg1, %c3_i32_22 : i32
    %c4_i32_23 = arith.constant 4 : i32
    %c5_i32 = arith.constant 5 : i32
    %38 = arith.select %37, %c4_i32_23, %c5_i32 : i32
    %39 = vector.broadcast %36 : i32 to vector<6x16x1xi32>
    %40 = arith.cmpi sge, %34, %39 : vector<6x16x1xi32>
    %41 = vector.broadcast %38 : i32 to vector<6x16x1xi32>
    %42 = arith.cmpi sle, %34, %41 : vector<6x16x1xi32>
    %43 = arith.andi %40, %42 : vector<6x16x1xi1>
    %cst = arith.constant 0.000000e+00 : bf16
    %44 = vector.broadcast %cst : bf16 to vector<6x16x128xbf16>
    %45 = vector.shape_cast %43 : vector<6x16x1xi1> to vector<6x16x1xi1>
    %46 = vector.broadcast %45 : vector<6x16x1xi1> to vector<6x16x128xi1>
    %47 = arith.select %46, %33, %44 : vector<6x16x128xi1>, vector<6x16x128xbf16>
    %cst_24 = arith.constant 0.000000e+00 : bf16
    %48 = vector.broadcast %cst_24 : bf16 to vector<6x1x128xbf16>
    %49 = tpu.concatenate %48, %47, %48 in 1 : vector<6x1x128xbf16>, vector<6x16x128xbf16>, vector<6x1x128xbf16> -> vector<6x18x128xbf16>
    %50 = vector.extract_strided_slice %49 {offsets = [0, 0, 0], sizes = [4, 18, 128], strides = [1, 1, 1]} : vector<6x18x128xbf16> to vector<4x18x128xbf16>
    %51 = vector.extract_strided_slice %50 {offsets = [0, 0, 0], sizes = [4, 16, 128], strides = [1, 1, 1]} : vector<4x18x128xbf16> to vector<4x16x128xbf16>
    %52 = vector.extract_strided_slice %50 {offsets = [0, 1, 0], sizes = [4, 16, 128], strides = [1, 1, 1]} : vector<4x18x128xbf16> to vector<4x16x128xbf16>
    %53 = vector.extract_strided_slice %50 {offsets = [0, 2, 0], sizes = [4, 16, 128], strides = [1, 1, 1]} : vector<4x18x128xbf16> to vector<4x16x128xbf16>
    %54 = tpu.concatenate %51, %52, %53 in 2 : vector<4x16x128xbf16>, vector<4x16x128xbf16>, vector<4x16x128xbf16> -> vector<4x16x384xbf16>
    %55 = vector.shape_cast %54 : vector<4x16x384xbf16> to vector<64x384xbf16>
    %56 = vector.extract_strided_slice %49 {offsets = [1, 0, 0], sizes = [4, 18, 128], strides = [1, 1, 1]} : vector<6x18x128xbf16> to vector<4x18x128xbf16>
    %57 = vector.extract_strided_slice %56 {offsets = [0, 0, 0], sizes = [4, 16, 128], strides = [1, 1, 1]} : vector<4x18x128xbf16> to vector<4x16x128xbf16>
    %58 = vector.extract_strided_slice %56 {offsets = [0, 1, 0], sizes = [4, 16, 128], strides = [1, 1, 1]} : vector<4x18x128xbf16> to vector<4x16x128xbf16>
    %59 = vector.extract_strided_slice %56 {offsets = [0, 2, 0], sizes = [4, 16, 128], strides = [1, 1, 1]} : vector<4x18x128xbf16> to vector<4x16x128xbf16>
    %60 = tpu.concatenate %57, %58, %59 in 2 : vector<4x16x128xbf16>, vector<4x16x128xbf16>, vector<4x16x128xbf16> -> vector<4x16x384xbf16>
    %61 = vector.shape_cast %60 : vector<4x16x384xbf16> to vector<64x384xbf16>
    %62 = vector.extract_strided_slice %49 {offsets = [2, 0, 0], sizes = [4, 18, 128], strides = [1, 1, 1]} : vector<6x18x128xbf16> to vector<4x18x128xbf16>
    %63 = vector.extract_strided_slice %62 {offsets = [0, 0, 0], sizes = [4, 16, 128], strides = [1, 1, 1]} : vector<4x18x128xbf16> to vector<4x16x128xbf16>
    %64 = vector.extract_strided_slice %62 {offsets = [0, 1, 0], sizes = [4, 16, 128], strides = [1, 1, 1]} : vector<4x18x128xbf16> to vector<4x16x128xbf16>
    %65 = vector.extract_strided_slice %62 {offsets = [0, 2, 0], sizes = [4, 16, 128], strides = [1, 1, 1]} : vector<4x18x128xbf16> to vector<4x16x128xbf16>
    %66 = tpu.concatenate %63, %64, %65 in 2 : vector<4x16x128xbf16>, vector<4x16x128xbf16>, vector<4x16x128xbf16> -> vector<4x16x384xbf16>
    %67 = vector.shape_cast %66 : vector<4x16x384xbf16> to vector<64x384xbf16>
    %68 = tpu.concatenate %55, %61, %67 in 1 : vector<64x384xbf16>, vector<64x384xbf16>, vector<64x384xbf16> -> vector<64x1152xbf16>
    %c0_25 = arith.constant 0 : index
    %c0_26 = arith.constant 0 : index
    %69 = vector.load %arg3[%c0_25, %c0_26] : memref<1152x128xbf16, #tpu.memory_space<vmem>>, vector<1152x128xbf16>
    %cst_27 = arith.constant dense<0.000000e+00> : vector<64x128xf32>
    %70 = tpu.matmul %68, %69, %cst_27 {dimension_numbers = #tpu.dot_dimension_numbers<[1], [0], [0], [1], [0, 0, 1, 1], [], []>} : vector<64x1152xbf16>, vector<1152x128xbf16>, vector<64x128xf32> -> vector<64x128xf32>
    %71 = vector.shape_cast %70 : vector<64x128xf32> to vector<1x4x16x128xf32>
    %72 = arith.truncf %71 : vector<1x4x16x128xf32> to vector<1x4x16x128xbf16>
    %c0_28 = arith.constant 0 : index
    %c0_29 = arith.constant 0 : index
    %c0_30 = arith.constant 0 : index
    %c0_31 = arith.constant 0 : index
    %73 = vector.load %arg4[%c0_28, %c0_29, %c0_30, %c0_31] : memref<1x4x16x128xbf16, #tpu.memory_space<vmem>>, vector<1x4x16x128xbf16>
    tpu.vector_store %arg4[%c0_28, %c0_29, %c0_30, %c0_31], %72 {strides = array<i32>} : memref<1x4x16x128xbf16, #tpu.memory_space<vmem>>, vector<1x4x16x128xbf16>,
    %cst_32 = arith.constant dense<0.000000e+00> : vector<128xf32>
    %74 = vector.multi_reduction <add>, %70, %cst_32 [0] : vector<64x128xf32> to vector<128xf32>
    %75 = vector.shape_cast %74 : vector<128xf32> to vector<1x128xf32>
    %cst_33 = arith.constant 1.562500e-02 : f32
    %76 = vector.broadcast %cst_33 : f32 to vector<1x128xf32>
    %77 = arith.mulf %75, %76 : vector<1x128xf32>
    %78 = vector.broadcast %77 : vector<1x128xf32> to vector<64x128xf32>
    %79 = arith.subf %70, %78 : vector<64x128xf32>
    %80 = vector.shape_cast %77 : vector<1x128xf32> to vector<1x1x1x128xf32>
    %c0_34 = arith.constant 0 : index
    %c0_35 = arith.constant 0 : index
    %c0_36 = arith.constant 0 : index
    %c0_37 = arith.constant 0 : index
    %81 = vector.load %arg5[%c0_34, %c0_35, %c0_36, %c0_37] : memref<1x1x1x128xf32, #tpu.memory_space<vmem>>, vector<1x1x1x128xf32>
    tpu.vector_store %arg5[%c0_34, %c0_35, %c0_36, %c0_37], %80 {strides = array<i32>} : memref<1x1x1x128xf32, #tpu.memory_space<vmem>>, vector<1x1x1x128xf32>,
    %82 = arith.mulf %79, %79 : vector<64x128xf32>
    %cst_38 = arith.constant dense<0.000000e+00> : vector<128xf32>
    %83 = vector.multi_reduction <add>, %82, %cst_38 [0] : vector<64x128xf32> to vector<128xf32>
    %84 = vector.shape_cast %83 : vector<128xf32> to vector<1x128xf32>
    %85 = vector.shape_cast %84 : vector<1x128xf32> to vector<1x1x1x128xf32>
    %c0_39 = arith.constant 0 : index
    %c0_40 = arith.constant 0 : index
    %c0_41 = arith.constant 0 : index
    %c0_42 = arith.constant 0 : index
    %86 = vector.load %arg6[%c0_39, %c0_40, %c0_41, %c0_42] : memref<1x1x1x128xf32, #tpu.memory_space<vmem>>, vector<1x1x1x128xf32>
    tpu.vector_store %arg6[%c0_39, %c0_40, %c0_41, %c0_42], %85 {strides = array<i32>} : memref<1x1x1x128xf32, #tpu.memory_space<vmem>>, vector<1x1x1x128xf32>,
    return
  }
  func.func @transform_1(%arg0: i32, %arg1: i32) -> (i32, i32) {
    %c0_i32 = arith.constant 0 : i32
    %c0_i32_0 = arith.constant 0 : i32
    %c0_i32_1 = arith.constant 0 : i32
    return %c0_i32, %c0_i32_0 : i32, i32
  }
  func.func @transform_2(%arg0: i32, %arg1: i32) -> (i32, i32, i32, i32) {
    %c0_i32 = arith.constant 0 : i32
    %c0_i32_0 = arith.constant 0 : i32
    %c0_i32_1 = arith.constant 0 : i32
    return %arg0, %arg1, %c0_i32, %c0_i32_0 : i32, i32, i32, i32
  }
  func.func @transform_3(%arg0: i32, %arg1: i32) -> (i32, i32, i32, i32) {
    %c0_i32 = arith.constant 0 : i32
    %c0_i32_0 = arith.constant 0 : i32
    %c0_i32_1 = arith.constant 0 : i32
    return %arg0, %arg1, %c0_i32, %c0_i32_0 : i32, i32, i32, i32
  }
  func.func @transform_4(%arg0: i32, %arg1: i32) -> (i32, i32, i32, i32) {
    %c0_i32 = arith.constant 0 : i32
    %c0_i32_0 = arith.constant 0 : i32
    %c0_i32_1 = arith.constant 0 : i32
    return %arg0, %arg1, %c0_i32, %c0_i32_0 : i32, i32, i32, i32
  }
}

module attributes {stable_mosaic.version = 11 : i64} {
  func.func @_bn_relu_kernel(%arg0: i32, %arg1: memref<512x128xbf16, #tpu.memory_space<vmem>>, %arg2: memref<1x128xf32, #tpu.memory_space<vmem>>, %arg3: memref<1x128xf32, #tpu.memory_space<vmem>>, %arg4: memref<512x128xf32, #tpu.memory_space<vmem>>) attributes {dimension_semantics = [#tpu.dimension_semantics<parallel>], iteration_bounds = array<i64: 1>, scalar_prefetch = 0 : i64, scratch_operands = 0 : i64, tpu.core_type = #tpu.core_type<tc>, window_params = [{transform_indices = @transform_0, window_bounds = array<i64: 512, 128>}, {pipeline_mode = #tpu.pipeline_mode<synchronous>, transform_indices = @transform_1, window_bounds = array<i64: 1, 128>}, {pipeline_mode = #tpu.pipeline_mode<synchronous>, transform_indices = @transform_2, window_bounds = array<i64: 1, 128>}, {transform_indices = @transform_3, window_bounds = array<i64: 512, 128>}]} {
    %c0 = arith.constant 0 : index
    %c0_0 = arith.constant 0 : index
    %0 = vector.load %arg1[%c0, %c0_0] : memref<512x128xbf16, #tpu.memory_space<vmem>>, vector<512x128xbf16>
    %1 = arith.extf %0 : vector<512x128xbf16> to vector<512x128xf32>
    %c0_1 = arith.constant 0 : index
    %c0_2 = arith.constant 0 : index
    %2 = vector.load %arg2[%c0_1, %c0_2] : memref<1x128xf32, #tpu.memory_space<vmem>>, vector<1x128xf32>
    %3 = vector.broadcast %2 : vector<1x128xf32> to vector<512x128xf32>
    %4 = arith.mulf %1, %3 : vector<512x128xf32>
    %c0_3 = arith.constant 0 : index
    %c0_4 = arith.constant 0 : index
    %5 = vector.load %arg3[%c0_3, %c0_4] : memref<1x128xf32, #tpu.memory_space<vmem>>, vector<1x128xf32>
    %6 = vector.broadcast %5 : vector<1x128xf32> to vector<512x128xf32>
    %7 = arith.addf %4, %6 : vector<512x128xf32>
    %cst = arith.constant 0.000000e+00 : f32
    %8 = vector.broadcast %cst : f32 to vector<512x128xf32>
    %9 = arith.maximumf %7, %8 : vector<512x128xf32>
    %c0_5 = arith.constant 0 : index
    %c0_6 = arith.constant 0 : index
    %10 = vector.load %arg4[%c0_5, %c0_6] : memref<512x128xf32, #tpu.memory_space<vmem>>, vector<512x128xf32>
    tpu.vector_store %arg4[%c0_5, %c0_6], %9 {strides = array<i32>} : memref<512x128xf32, #tpu.memory_space<vmem>>, vector<512x128xf32>,
    return
  }
  func.func @transform_0(%arg0: i32) -> (i32, i32) {
    %c0_i32 = arith.constant 0 : i32
    %c0_i32_0 = arith.constant 0 : i32
    return %arg0, %c0_i32 : i32, i32
  }
  func.func @transform_1(%arg0: i32) -> (i32, i32) {
    %c0_i32 = arith.constant 0 : i32
    %c0_i32_0 = arith.constant 0 : i32
    %c0_i32_1 = arith.constant 0 : i32
    return %c0_i32, %c0_i32_0 : i32, i32
  }
  func.func @transform_2(%arg0: i32) -> (i32, i32) {
    %c0_i32 = arith.constant 0 : i32
    %c0_i32_0 = arith.constant 0 : i32
    %c0_i32_1 = arith.constant 0 : i32
    return %c0_i32, %c0_i32_0 : i32, i32
  }
  func.func @transform_3(%arg0: i32) -> (i32, i32) {
    %c0_i32 = arith.constant 0 : i32
    %c0_i32_0 = arith.constant 0 : i32
    return %arg0, %c0_i32 : i32, i32
  }
}

module attributes {stable_mosaic.version = 11 : i64} {
  func.func @_conv_kernel_fused(%arg0: i32, %arg1: i32, %arg2: memref<32x16x128xbf16, #tpu.memory_space<any>>, %arg3: memref<1x128xf32, #tpu.memory_space<vmem>>, %arg4: memref<1x128xf32, #tpu.memory_space<vmem>>, %arg5: memref<1152x128xbf16, #tpu.memory_space<vmem>>, %arg6: memref<1x4x16x128xbf16, #tpu.memory_space<vmem>>, %arg7: memref<1x1x1x128xf32, #tpu.memory_space<vmem>>, %arg8: memref<1x1x1x128xf32, #tpu.memory_space<vmem>>, %arg9: memref<2x6x16x128xbf16, #tpu.memory_space<vmem>>, %arg10: memref<2x3x!tpu.dma_semaphore, #tpu.memory_space<semaphore_mem>>) attributes {dimension_semantics = [#tpu.dimension_semantics<parallel>, #tpu.dimension_semantics<arbitrary>], iteration_bounds = array<i64: 2, 4>, scalar_prefetch = 0 : i64, scratch_operands = 2 : i64, tpu.core_type = #tpu.core_type<tc>, window_params = [{}, {pipeline_mode = #tpu.pipeline_mode<synchronous>, transform_indices = @transform_1, window_bounds = array<i64: 1, 128>}, {pipeline_mode = #tpu.pipeline_mode<synchronous>, transform_indices = @transform_2, window_bounds = array<i64: 1, 128>}, {pipeline_mode = #tpu.pipeline_mode<synchronous>, transform_indices = @transform_3, window_bounds = array<i64: 1152, 128>}, {transform_indices = @transform_4, window_bounds = array<i64: 1, 4, 16, 128>}, {transform_indices = @transform_5, window_bounds = array<i64: 1, 1, 1, 128>}, {transform_indices = @transform_6, window_bounds = array<i64: 1, 1, 1, 128>}]} {
    %c2_i32 = arith.constant 2 : i32
    %c0_i32 = arith.constant 0 : i32
    %0 = arith.cmpi eq, %c2_i32, %c0_i32 : i32
    %c1_i32 = arith.constant 1 : i32
    %1 = arith.select %0, %c1_i32, %c2_i32 : i32
    %2 = arith.remsi %arg1, %1 : i32
    %c0_i32_0 = arith.constant 0 : i32
    %3 = arith.cmpi ne, %2, %c0_i32_0 : i32
    %c0_i32_1 = arith.constant 0 : i32
    %4 = arith.cmpi slt, %2, %c0_i32_1 : i32
    %c0_i32_2 = arith.constant 0 : i32
    %5 = arith.cmpi slt, %1, %c0_i32_2 : i32
    %6 = arith.xori %4, %5 : i1
    %7 = arith.andi %6, %3 : i1
    %8 = arith.addi %2, %1 : i32
    %9 = arith.select %7, %8, %2 : i32
    %c0_i32_3 = arith.constant 0 : i32
    %10 = arith.cmpi eq, %arg1, %c0_i32_3 : i32
    %11 = arith.extui %10 : i1 to i32
    %c0_i32_4 = arith.constant 0 : i32
    %12 = arith.cmpi ne, %11, %c0_i32_4 : i32
    scf.if %12 {
      %c16_i32_48 = arith.constant 16 : i32
      %99 = arith.muli %arg0, %c16_i32_48 : i32
      %c4_i32_49 = arith.constant 4 : i32
      %100 = arith.muli %arg1, %c4_i32_49 : i32
      %101 = arith.addi %99, %100 : i32
      %c0_i32_50 = arith.constant 0 : i32
      %c0_i32_51 = arith.constant 0 : i32
      %c0_i32_52 = arith.constant 0 : i32
      %102 = tpu.memref_slice %arg2[%101, %c0_i32_51, %c0_i32_52] : memref<32x16x128xbf16, #tpu.memory_space<any>> -> memref<4x16x128xbf16, #tpu.memory_space<any>>
      %c1_i32_53 = arith.constant 1 : i32
      %c0_i32_54 = arith.constant 0 : i32
      %c0_i32_55 = arith.constant 0 : i32
      %103 = tpu.memref_slice %arg9[%9, %c1_i32_53, %c0_i32_54, %c0_i32_55] : memref<2x6x16x128xbf16, #tpu.memory_space<vmem>> -> memref<1x4x16x128xbf16, #tpu.memory_space<vmem>>
      %104 = tpu.memref_squeeze %103 : memref<1x4x16x128xbf16, #tpu.memory_space<vmem>> -> memref<4x16x128xbf16, #tpu.memory_space<vmem>>
      %105 = tpu.memref_slice %arg10[%9, %c0_i32_50] : memref<2x3x!tpu.dma_semaphore, #tpu.memory_space<semaphore_mem>> -> memref<1x1x!tpu.dma_semaphore, #tpu.memory_space<semaphore_mem>>
      %106 = tpu.memref_squeeze %105 : memref<1x1x!tpu.dma_semaphore, #tpu.memory_space<semaphore_mem>> -> memref<!tpu.dma_semaphore, #tpu.memory_space<semaphore_mem>>
      tpu.enqueue_dma source(%102 : memref<4x16x128xbf16, #tpu.memory_space<any>>) target(%104 : memref<4x16x128xbf16, #tpu.memory_space<vmem>>) target_semaphore(%106 : memref<!tpu.dma_semaphore, #tpu.memory_space<semaphore_mem>>)
      %c0_i32_56 = arith.constant 0 : i32
      %107 = arith.cmpi sgt, %arg1, %c0_i32_56 : i32
      %108 = arith.extui %107 : i1 to i32
      %c0_i32_57 = arith.constant 0 : i32
      %109 = arith.cmpi ne, %108, %c0_i32_57 : i32
      scf.if %109 {
        %c1_i32_60 = arith.constant 1 : i32
        %113 = arith.subi %101, %c1_i32_60 : i32
        %c1_i32_61 = arith.constant 1 : i32
        %c0_i32_62 = arith.constant 0 : i32
        %c0_i32_63 = arith.constant 0 : i32
        %114 = tpu.memref_slice %arg2[%113, %c0_i32_62, %c0_i32_63] : memref<32x16x128xbf16, #tpu.memory_space<any>> -> memref<1x16x128xbf16, #tpu.memory_space<any>>
        %c0_i32_64 = arith.constant 0 : i32
        %c0_i32_65 = arith.constant 0 : i32
        %c0_i32_66 = arith.constant 0 : i32
        %115 = tpu.memref_slice %arg9[%9, %c0_i32_64, %c0_i32_65, %c0_i32_66] : memref<2x6x16x128xbf16, #tpu.memory_space<vmem>> -> memref<1x1x16x128xbf16, #tpu.memory_space<vmem>>
        %116 = tpu.memref_squeeze %115 : memref<1x1x16x128xbf16, #tpu.memory_space<vmem>> -> memref<1x16x128xbf16, #tpu.memory_space<vmem>>
        %117 = tpu.memref_slice %arg10[%9, %c1_i32_61] : memref<2x3x!tpu.dma_semaphore, #tpu.memory_space<semaphore_mem>> -> memref<1x1x!tpu.dma_semaphore, #tpu.memory_space<semaphore_mem>>
        %118 = tpu.memref_squeeze %117 : memref<1x1x!tpu.dma_semaphore, #tpu.memory_space<semaphore_mem>> -> memref<!tpu.dma_semaphore, #tpu.memory_space<semaphore_mem>>
        tpu.enqueue_dma source(%114 : memref<1x16x128xbf16, #tpu.memory_space<any>>) target(%116 : memref<1x16x128xbf16, #tpu.memory_space<vmem>>) target_semaphore(%118 : memref<!tpu.dma_semaphore, #tpu.memory_space<semaphore_mem>>)
      } else {
      }
      %c3_i32_58 = arith.constant 3 : i32
      %110 = arith.cmpi slt, %arg1, %c3_i32_58 : i32
      %111 = arith.extui %110 : i1 to i32
      %c0_i32_59 = arith.constant 0 : i32
      %112 = arith.cmpi ne, %111, %c0_i32_59 : i32
      scf.if %112 {
        %c4_i32_60 = arith.constant 4 : i32
        %113 = arith.addi %101, %c4_i32_60 : i32
        %c2_i32_61 = arith.constant 2 : i32
        %c0_i32_62 = arith.constant 0 : i32
        %c0_i32_63 = arith.constant 0 : i32
        %114 = tpu.memref_slice %arg2[%113, %c0_i32_62, %c0_i32_63] : memref<32x16x128xbf16, #tpu.memory_space<any>> -> memref<1x16x128xbf16, #tpu.memory_space<any>>
        %c5_i32_64 = arith.constant 5 : i32
        %c0_i32_65 = arith.constant 0 : i32
        %c0_i32_66 = arith.constant 0 : i32
        %115 = tpu.memref_slice %arg9[%9, %c5_i32_64, %c0_i32_65, %c0_i32_66] : memref<2x6x16x128xbf16, #tpu.memory_space<vmem>> -> memref<1x1x16x128xbf16, #tpu.memory_space<vmem>>
        %116 = tpu.memref_squeeze %115 : memref<1x1x16x128xbf16, #tpu.memory_space<vmem>> -> memref<1x16x128xbf16, #tpu.memory_space<vmem>>
        %117 = tpu.memref_slice %arg10[%9, %c2_i32_61] : memref<2x3x!tpu.dma_semaphore, #tpu.memory_space<semaphore_mem>> -> memref<1x1x!tpu.dma_semaphore, #tpu.memory_space<semaphore_mem>>
        %118 = tpu.memref_squeeze %117 : memref<1x1x!tpu.dma_semaphore, #tpu.memory_space<semaphore_mem>> -> memref<!tpu.dma_semaphore, #tpu.memory_space<semaphore_mem>>
        tpu.enqueue_dma source(%114 : memref<1x16x128xbf16, #tpu.memory_space<any>>) target(%116 : memref<1x16x128xbf16, #tpu.memory_space<vmem>>) target_semaphore(%118 : memref<!tpu.dma_semaphore, #tpu.memory_space<semaphore_mem>>)
      } else {
      }
    } else {
    }
    %c1_i32_5 = arith.constant 1 : i32
    %13 = arith.addi %arg1, %c1_i32_5 : i32
    %c4_i32 = arith.constant 4 : i32
    %14 = arith.cmpi slt, %13, %c4_i32 : i32
    %15 = arith.extui %14 : i1 to i32
    %c0_i32_6 = arith.constant 0 : i32
    %16 = arith.cmpi ne, %15, %c0_i32_6 : i32
    scf.if %16 {
      %c1_i32_48 = arith.constant 1 : i32
      %99 = arith.addi %arg1, %c1_i32_48 : i32
      %c1_i32_49 = arith.constant 1 : i32
      %100 = arith.subi %c1_i32_49, %9 : i32
      %c16_i32_50 = arith.constant 16 : i32
      %101 = arith.muli %arg0, %c16_i32_50 : i32
      %c4_i32_51 = arith.constant 4 : i32
      %102 = arith.muli %99, %c4_i32_51 : i32
      %103 = arith.addi %101, %102 : i32
      %c0_i32_52 = arith.constant 0 : i32
      %c0_i32_53 = arith.constant 0 : i32
      %c0_i32_54 = arith.constant 0 : i32
      %104 = tpu.memref_slice %arg2[%103, %c0_i32_53, %c0_i32_54] : memref<32x16x128xbf16, #tpu.memory_space<any>> -> memref<4x16x128xbf16, #tpu.memory_space<any>>
      %c1_i32_55 = arith.constant 1 : i32
      %c0_i32_56 = arith.constant 0 : i32
      %c0_i32_57 = arith.constant 0 : i32
      %105 = tpu.memref_slice %arg9[%100, %c1_i32_55, %c0_i32_56, %c0_i32_57] : memref<2x6x16x128xbf16, #tpu.memory_space<vmem>> -> memref<1x4x16x128xbf16, #tpu.memory_space<vmem>>
      %106 = tpu.memref_squeeze %105 : memref<1x4x16x128xbf16, #tpu.memory_space<vmem>> -> memref<4x16x128xbf16, #tpu.memory_space<vmem>>
      %107 = tpu.memref_slice %arg10[%100, %c0_i32_52] : memref<2x3x!tpu.dma_semaphore, #tpu.memory_space<semaphore_mem>> -> memref<1x1x!tpu.dma_semaphore, #tpu.memory_space<semaphore_mem>>
      %108 = tpu.memref_squeeze %107 : memref<1x1x!tpu.dma_semaphore, #tpu.memory_space<semaphore_mem>> -> memref<!tpu.dma_semaphore, #tpu.memory_space<semaphore_mem>>
      tpu.enqueue_dma source(%104 : memref<4x16x128xbf16, #tpu.memory_space<any>>) target(%106 : memref<4x16x128xbf16, #tpu.memory_space<vmem>>) target_semaphore(%108 : memref<!tpu.dma_semaphore, #tpu.memory_space<semaphore_mem>>)
      %c0_i32_58 = arith.constant 0 : i32
      %109 = arith.cmpi sgt, %99, %c0_i32_58 : i32
      %110 = arith.extui %109 : i1 to i32
      %c0_i32_59 = arith.constant 0 : i32
      %111 = arith.cmpi ne, %110, %c0_i32_59 : i32
      scf.if %111 {
        %c1_i32_62 = arith.constant 1 : i32
        %115 = arith.subi %103, %c1_i32_62 : i32
        %c1_i32_63 = arith.constant 1 : i32
        %c0_i32_64 = arith.constant 0 : i32
        %c0_i32_65 = arith.constant 0 : i32
        %116 = tpu.memref_slice %arg2[%115, %c0_i32_64, %c0_i32_65] : memref<32x16x128xbf16, #tpu.memory_space<any>> -> memref<1x16x128xbf16, #tpu.memory_space<any>>
        %c0_i32_66 = arith.constant 0 : i32
        %c0_i32_67 = arith.constant 0 : i32
        %c0_i32_68 = arith.constant 0 : i32
        %117 = tpu.memref_slice %arg9[%100, %c0_i32_66, %c0_i32_67, %c0_i32_68] : memref<2x6x16x128xbf16, #tpu.memory_space<vmem>> -> memref<1x1x16x128xbf16, #tpu.memory_space<vmem>>
        %118 = tpu.memref_squeeze %117 : memref<1x1x16x128xbf16, #tpu.memory_space<vmem>> -> memref<1x16x128xbf16, #tpu.memory_space<vmem>>
        %119 = tpu.memref_slice %arg10[%100, %c1_i32_63] : memref<2x3x!tpu.dma_semaphore, #tpu.memory_space<semaphore_mem>> -> memref<1x1x!tpu.dma_semaphore, #tpu.memory_space<semaphore_mem>>
        %120 = tpu.memref_squeeze %119 : memref<1x1x!tpu.dma_semaphore, #tpu.memory_space<semaphore_mem>> -> memref<!tpu.dma_semaphore, #tpu.memory_space<semaphore_mem>>
        tpu.enqueue_dma source(%116 : memref<1x16x128xbf16, #tpu.memory_space<any>>) target(%118 : memref<1x16x128xbf16, #tpu.memory_space<vmem>>) target_semaphore(%120 : memref<!tpu.dma_semaphore, #tpu.memory_space<semaphore_mem>>)
      } else {
      }
      %c3_i32_60 = arith.constant 3 : i32
      %112 = arith.cmpi slt, %99, %c3_i32_60 : i32
      %113 = arith.extui %112 : i1 to i32
      %c0_i32_61 = arith.constant 0 : i32
      %114 = arith.cmpi ne, %113, %c0_i32_61 : i32
      scf.if %114 {
        %c4_i32_62 = arith.constant 4 : i32
        %115 = arith.addi %103, %c4_i32_62 : i32
        %c2_i32_63 = arith.constant 2 : i32
        %c0_i32_64 = arith.constant 0 : i32
        %c0_i32_65 = arith.constant 0 : i32
        %116 = tpu.memref_slice %arg2[%115, %c0_i32_64, %c0_i32_65] : memref<32x16x128xbf16, #tpu.memory_space<any>> -> memref<1x16x128xbf16, #tpu.memory_space<any>>
        %c5_i32_66 = arith.constant 5 : i32
        %c0_i32_67 = arith.constant 0 : i32
        %c0_i32_68 = arith.constant 0 : i32
        %117 = tpu.memref_slice %arg9[%100, %c5_i32_66, %c0_i32_67, %c0_i32_68] : memref<2x6x16x128xbf16, #tpu.memory_space<vmem>> -> memref<1x1x16x128xbf16, #tpu.memory_space<vmem>>
        %118 = tpu.memref_squeeze %117 : memref<1x1x16x128xbf16, #tpu.memory_space<vmem>> -> memref<1x16x128xbf16, #tpu.memory_space<vmem>>
        %119 = tpu.memref_slice %arg10[%100, %c2_i32_63] : memref<2x3x!tpu.dma_semaphore, #tpu.memory_space<semaphore_mem>> -> memref<1x1x!tpu.dma_semaphore, #tpu.memory_space<semaphore_mem>>
        %120 = tpu.memref_squeeze %119 : memref<1x1x!tpu.dma_semaphore, #tpu.memory_space<semaphore_mem>> -> memref<!tpu.dma_semaphore, #tpu.memory_space<semaphore_mem>>
        tpu.enqueue_dma source(%116 : memref<1x16x128xbf16, #tpu.memory_space<any>>) target(%118 : memref<1x16x128xbf16, #tpu.memory_space<vmem>>) target_semaphore(%120 : memref<!tpu.dma_semaphore, #tpu.memory_space<semaphore_mem>>)
      } else {
      }
    } else {
    }
    %c16_i32 = arith.constant 16 : i32
    %17 = arith.muli %arg0, %c16_i32 : i32
    %c4_i32_7 = arith.constant 4 : i32
    %18 = arith.muli %arg1, %c4_i32_7 : i32
    %19 = arith.addi %17, %18 : i32
    %c0_i32_8 = arith.constant 0 : i32
    %c0_i32_9 = arith.constant 0 : i32
    %c0_i32_10 = arith.constant 0 : i32
    %20 = tpu.memref_slice %arg2[%19, %c0_i32_9, %c0_i32_10] : memref<32x16x128xbf16, #tpu.memory_space<any>> -> memref<4x16x128xbf16, #tpu.memory_space<any>>
    %c1_i32_11 = arith.constant 1 : i32
    %c0_i32_12 = arith.constant 0 : i32
    %c0_i32_13 = arith.constant 0 : i32
    %21 = tpu.memref_slice %arg9[%9, %c1_i32_11, %c0_i32_12, %c0_i32_13] : memref<2x6x16x128xbf16, #tpu.memory_space<vmem>> -> memref<1x4x16x128xbf16, #tpu.memory_space<vmem>>
    %22 = tpu.memref_squeeze %21 : memref<1x4x16x128xbf16, #tpu.memory_space<vmem>> -> memref<4x16x128xbf16, #tpu.memory_space<vmem>>
    %23 = tpu.memref_slice %arg10[%9, %c0_i32_8] : memref<2x3x!tpu.dma_semaphore, #tpu.memory_space<semaphore_mem>> -> memref<1x1x!tpu.dma_semaphore, #tpu.memory_space<semaphore_mem>>
    %24 = tpu.memref_squeeze %23 : memref<1x1x!tpu.dma_semaphore, #tpu.memory_space<semaphore_mem>> -> memref<!tpu.dma_semaphore, #tpu.memory_space<semaphore_mem>>
    tpu.wait_dma2 semaphore(%24 : memref<!tpu.dma_semaphore, #tpu.memory_space<semaphore_mem>>) src(%20 : memref<4x16x128xbf16, #tpu.memory_space<any>>) dst(%22 : memref<4x16x128xbf16, #tpu.memory_space<vmem>>)
    %c0_i32_14 = arith.constant 0 : i32
    %25 = arith.cmpi sgt, %arg1, %c0_i32_14 : i32
    %26 = arith.extui %25 : i1 to i32
    %c0_i32_15 = arith.constant 0 : i32
    %27 = arith.cmpi ne, %26, %c0_i32_15 : i32
    scf.if %27 {
      %c1_i32_48 = arith.constant 1 : i32
      %99 = arith.subi %19, %c1_i32_48 : i32
      %c1_i32_49 = arith.constant 1 : i32
      %c0_i32_50 = arith.constant 0 : i32
      %c0_i32_51 = arith.constant 0 : i32
      %100 = tpu.memref_slice %arg2[%99, %c0_i32_50, %c0_i32_51] : memref<32x16x128xbf16, #tpu.memory_space<any>> -> memref<1x16x128xbf16, #tpu.memory_space<any>>
      %c0_i32_52 = arith.constant 0 : i32
      %c0_i32_53 = arith.constant 0 : i32
      %c0_i32_54 = arith.constant 0 : i32
      %101 = tpu.memref_slice %arg9[%9, %c0_i32_52, %c0_i32_53, %c0_i32_54] : memref<2x6x16x128xbf16, #tpu.memory_space<vmem>> -> memref<1x1x16x128xbf16, #tpu.memory_space<vmem>>
      %102 = tpu.memref_squeeze %101 : memref<1x1x16x128xbf16, #tpu.memory_space<vmem>> -> memref<1x16x128xbf16, #tpu.memory_space<vmem>>
      %103 = tpu.memref_slice %arg10[%9, %c1_i32_49] : memref<2x3x!tpu.dma_semaphore, #tpu.memory_space<semaphore_mem>> -> memref<1x1x!tpu.dma_semaphore, #tpu.memory_space<semaphore_mem>>
      %104 = tpu.memref_squeeze %103 : memref<1x1x!tpu.dma_semaphore, #tpu.memory_space<semaphore_mem>> -> memref<!tpu.dma_semaphore, #tpu.memory_space<semaphore_mem>>
      tpu.wait_dma2 semaphore(%104 : memref<!tpu.dma_semaphore, #tpu.memory_space<semaphore_mem>>) src(%100 : memref<1x16x128xbf16, #tpu.memory_space<any>>) dst(%102 : memref<1x16x128xbf16, #tpu.memory_space<vmem>>)
    } else {
    }
    %c3_i32 = arith.constant 3 : i32
    %28 = arith.cmpi slt, %arg1, %c3_i32 : i32
    %29 = arith.extui %28 : i1 to i32
    %c0_i32_16 = arith.constant 0 : i32
    %30 = arith.cmpi ne, %29, %c0_i32_16 : i32
    scf.if %30 {
      %c4_i32_48 = arith.constant 4 : i32
      %99 = arith.addi %19, %c4_i32_48 : i32
      %c2_i32_49 = arith.constant 2 : i32
      %c0_i32_50 = arith.constant 0 : i32
      %c0_i32_51 = arith.constant 0 : i32
      %100 = tpu.memref_slice %arg2[%99, %c0_i32_50, %c0_i32_51] : memref<32x16x128xbf16, #tpu.memory_space<any>> -> memref<1x16x128xbf16, #tpu.memory_space<any>>
      %c5_i32_52 = arith.constant 5 : i32
      %c0_i32_53 = arith.constant 0 : i32
      %c0_i32_54 = arith.constant 0 : i32
      %101 = tpu.memref_slice %arg9[%9, %c5_i32_52, %c0_i32_53, %c0_i32_54] : memref<2x6x16x128xbf16, #tpu.memory_space<vmem>> -> memref<1x1x16x128xbf16, #tpu.memory_space<vmem>>
      %102 = tpu.memref_squeeze %101 : memref<1x1x16x128xbf16, #tpu.memory_space<vmem>> -> memref<1x16x128xbf16, #tpu.memory_space<vmem>>
      %103 = tpu.memref_slice %arg10[%9, %c2_i32_49] : memref<2x3x!tpu.dma_semaphore, #tpu.memory_space<semaphore_mem>> -> memref<1x1x!tpu.dma_semaphore, #tpu.memory_space<semaphore_mem>>
      %104 = tpu.memref_squeeze %103 : memref<1x1x!tpu.dma_semaphore, #tpu.memory_space<semaphore_mem>> -> memref<!tpu.dma_semaphore, #tpu.memory_space<semaphore_mem>>
      tpu.wait_dma2 semaphore(%104 : memref<!tpu.dma_semaphore, #tpu.memory_space<semaphore_mem>>) src(%100 : memref<1x16x128xbf16, #tpu.memory_space<any>>) dst(%102 : memref<1x16x128xbf16, #tpu.memory_space<vmem>>)
    } else {
    }
    %31 = arith.index_cast %9 : i32 to index
    %c0 = arith.constant 0 : index
    %c0_17 = arith.constant 0 : index
    %c0_18 = arith.constant 0 : index
    %32 = vector.load %arg9[%31, %c0, %c0_17, %c0_18] : memref<2x6x16x128xbf16, #tpu.memory_space<vmem>>, vector<1x6x16x128xbf16>
    %33 = vector.shape_cast %32 : vector<1x6x16x128xbf16> to vector<6x16x128xbf16>
    %34 = tpu.iota {dimensions = array<i32: 0>} : vector<6x16x1xi32>
    %c0_i32_19 = arith.constant 0 : i32
    %35 = arith.cmpi eq, %arg1, %c0_i32_19 : i32
    %c1_i32_20 = arith.constant 1 : i32
    %c0_i32_21 = arith.constant 0 : i32
    %36 = arith.select %35, %c1_i32_20, %c0_i32_21 : i32
    %c3_i32_22 = arith.constant 3 : i32
    %37 = arith.cmpi eq, %arg1, %c3_i32_22 : i32
    %c4_i32_23 = arith.constant 4 : i32
    %c5_i32 = arith.constant 5 : i32
    %38 = arith.select %37, %c4_i32_23, %c5_i32 : i32
    %39 = vector.broadcast %36 : i32 to vector<6x16x1xi32>
    %40 = arith.cmpi sge, %34, %39 : vector<6x16x1xi32>
    %41 = vector.broadcast %38 : i32 to vector<6x16x1xi32>
    %42 = arith.cmpi sle, %34, %41 : vector<6x16x1xi32>
    %43 = arith.andi %40, %42 : vector<6x16x1xi1>
    %c0_24 = arith.constant 0 : index
    %c0_25 = arith.constant 0 : index
    %44 = vector.load %arg3[%c0_24, %c0_25] : memref<1x128xf32, #tpu.memory_space<vmem>>, vector<1x128xf32>
    %45 = vector.shape_cast %44 : vector<1x128xf32> to vector<1x1x128xf32>
    %c0_26 = arith.constant 0 : index
    %c0_27 = arith.constant 0 : index
    %46 = vector.load %arg4[%c0_26, %c0_27] : memref<1x128xf32, #tpu.memory_space<vmem>>, vector<1x128xf32>
    %47 = vector.shape_cast %46 : vector<1x128xf32> to vector<1x1x128xf32>
    %48 = arith.extf %33 : vector<6x16x128xbf16> to vector<6x16x128xf32>
    %49 = vector.broadcast %45 : vector<1x1x128xf32> to vector<6x16x128xf32>
    %50 = arith.mulf %48, %49 : vector<6x16x128xf32>
    %51 = vector.broadcast %47 : vector<1x1x128xf32> to vector<6x16x128xf32>
    %52 = arith.addf %50, %51 : vector<6x16x128xf32>
    %cst = arith.constant 0.000000e+00 : f32
    %53 = vector.broadcast %cst : f32 to vector<6x16x128xf32>
    %54 = arith.maximumf %52, %53 : vector<6x16x128xf32>
    %cst_28 = arith.constant 0.000000e+00 : f32
    %55 = vector.shape_cast %43 : vector<6x16x1xi1> to vector<6x16x1xi1>
    %56 = vector.broadcast %55 : vector<6x16x1xi1> to vector<6x16x128xi1>
    %57 = vector.broadcast %cst_28 : f32 to vector<6x16x128xf32>
    %58 = arith.select %56, %54, %57 : vector<6x16x128xi1>, vector<6x16x128xf32>
    %59 = arith.truncf %58 : vector<6x16x128xf32> to vector<6x16x128xbf16>
    %cst_29 = arith.constant 0.000000e+00 : bf16
    %60 = vector.broadcast %cst_29 : bf16 to vector<6x1x128xbf16>
    %61 = tpu.concatenate %60, %59, %60 in 1 : vector<6x1x128xbf16>, vector<6x16x128xbf16>, vector<6x1x128xbf16> -> vector<6x18x128xbf16>
    %62 = vector.extract_strided_slice %61 {offsets = [0, 0, 0], sizes = [4, 18, 128], strides = [1, 1, 1]} : vector<6x18x128xbf16> to vector<4x18x128xbf16>
    %63 = vector.extract_strided_slice %62 {offsets = [0, 0, 0], sizes = [4, 16, 128], strides = [1, 1, 1]} : vector<4x18x128xbf16> to vector<4x16x128xbf16>
    %64 = vector.extract_strided_slice %62 {offsets = [0, 1, 0], sizes = [4, 16, 128], strides = [1, 1, 1]} : vector<4x18x128xbf16> to vector<4x16x128xbf16>
    %65 = vector.extract_strided_slice %62 {offsets = [0, 2, 0], sizes = [4, 16, 128], strides = [1, 1, 1]} : vector<4x18x128xbf16> to vector<4x16x128xbf16>
    %66 = tpu.concatenate %63, %64, %65 in 2 : vector<4x16x128xbf16>, vector<4x16x128xbf16>, vector<4x16x128xbf16> -> vector<4x16x384xbf16>
    %67 = vector.shape_cast %66 : vector<4x16x384xbf16> to vector<64x384xbf16>
    %68 = vector.extract_strided_slice %61 {offsets = [1, 0, 0], sizes = [4, 18, 128], strides = [1, 1, 1]} : vector<6x18x128xbf16> to vector<4x18x128xbf16>
    %69 = vector.extract_strided_slice %68 {offsets = [0, 0, 0], sizes = [4, 16, 128], strides = [1, 1, 1]} : vector<4x18x128xbf16> to vector<4x16x128xbf16>
    %70 = vector.extract_strided_slice %68 {offsets = [0, 1, 0], sizes = [4, 16, 128], strides = [1, 1, 1]} : vector<4x18x128xbf16> to vector<4x16x128xbf16>
    %71 = vector.extract_strided_slice %68 {offsets = [0, 2, 0], sizes = [4, 16, 128], strides = [1, 1, 1]} : vector<4x18x128xbf16> to vector<4x16x128xbf16>
    %72 = tpu.concatenate %69, %70, %71 in 2 : vector<4x16x128xbf16>, vector<4x16x128xbf16>, vector<4x16x128xbf16> -> vector<4x16x384xbf16>
    %73 = vector.shape_cast %72 : vector<4x16x384xbf16> to vector<64x384xbf16>
    %74 = vector.extract_strided_slice %61 {offsets = [2, 0, 0], sizes = [4, 18, 128], strides = [1, 1, 1]} : vector<6x18x128xbf16> to vector<4x18x128xbf16>
    %75 = vector.extract_strided_slice %74 {offsets = [0, 0, 0], sizes = [4, 16, 128], strides = [1, 1, 1]} : vector<4x18x128xbf16> to vector<4x16x128xbf16>
    %76 = vector.extract_strided_slice %74 {offsets = [0, 1, 0], sizes = [4, 16, 128], strides = [1, 1, 1]} : vector<4x18x128xbf16> to vector<4x16x128xbf16>
    %77 = vector.extract_strided_slice %74 {offsets = [0, 2, 0], sizes = [4, 16, 128], strides = [1, 1, 1]} : vector<4x18x128xbf16> to vector<4x16x128xbf16>
    %78 = tpu.concatenate %75, %76, %77 in 2 : vector<4x16x128xbf16>, vector<4x16x128xbf16>, vector<4x16x128xbf16> -> vector<4x16x384xbf16>
    %79 = vector.shape_cast %78 : vector<4x16x384xbf16> to vector<64x384xbf16>
    %80 = tpu.concatenate %67, %73, %79 in 1 : vector<64x384xbf16>, vector<64x384xbf16>, vector<64x384xbf16> -> vector<64x1152xbf16>
    %c0_30 = arith.constant 0 : index
    %c0_31 = arith.constant 0 : index
    %81 = vector.load %arg5[%c0_30, %c0_31] : memref<1152x128xbf16, #tpu.memory_space<vmem>>, vector<1152x128xbf16>
    %cst_32 = arith.constant dense<0.000000e+00> : vector<64x128xf32>
    %82 = tpu.matmul %80, %81, %cst_32 {dimension_numbers = #tpu.dot_dimension_numbers<[1], [0], [0], [1], [0, 0, 1, 1], [], []>} : vector<64x1152xbf16>, vector<1152x128xbf16>, vector<64x128xf32> -> vector<64x128xf32>
    %83 = vector.shape_cast %82 : vector<64x128xf32> to vector<1x4x16x128xf32>
    %84 = arith.truncf %83 : vector<1x4x16x128xf32> to vector<1x4x16x128xbf16>
    %c0_33 = arith.constant 0 : index
    %c0_34 = arith.constant 0 : index
    %c0_35 = arith.constant 0 : index
    %c0_36 = arith.constant 0 : index
    %85 = vector.load %arg6[%c0_33, %c0_34, %c0_35, %c0_36] : memref<1x4x16x128xbf16, #tpu.memory_space<vmem>>, vector<1x4x16x128xbf16>
    tpu.vector_store %arg6[%c0_33, %c0_34, %c0_35, %c0_36], %84 {strides = array<i32>} : memref<1x4x16x128xbf16, #tpu.memory_space<vmem>>, vector<1x4x16x128xbf16>,
    %cst_37 = arith.constant dense<0.000000e+00> : vector<128xf32>
    %86 = vector.multi_reduction <add>, %82, %cst_37 [0] : vector<64x128xf32> to vector<128xf32>
    %87 = vector.shape_cast %86 : vector<128xf32> to vector<1x128xf32>
    %cst_38 = arith.constant 1.562500e-02 : f32
    %88 = vector.broadcast %cst_38 : f32 to vector<1x128xf32>
    %89 = arith.mulf %87, %88 : vector<1x128xf32>
    %90 = vector.broadcast %89 : vector<1x128xf32> to vector<64x128xf32>
    %91 = arith.subf %82, %90 : vector<64x128xf32>
    %92 = vector.shape_cast %89 : vector<1x128xf32> to vector<1x1x1x128xf32>
    %c0_39 = arith.constant 0 : index
    %c0_40 = arith.constant 0 : index
    %c0_41 = arith.constant 0 : index
    %c0_42 = arith.constant 0 : index
    %93 = vector.load %arg7[%c0_39, %c0_40, %c0_41, %c0_42] : memref<1x1x1x128xf32, #tpu.memory_space<vmem>>, vector<1x1x1x128xf32>
    tpu.vector_store %arg7[%c0_39, %c0_40, %c0_41, %c0_42], %92 {strides = array<i32>} : memref<1x1x1x128xf32, #tpu.memory_space<vmem>>, vector<1x1x1x128xf32>,
    %94 = arith.mulf %91, %91 : vector<64x128xf32>
    %cst_43 = arith.constant dense<0.000000e+00> : vector<128xf32>
    %95 = vector.multi_reduction <add>, %94, %cst_43 [0] : vector<64x128xf32> to vector<128xf32>
    %96 = vector.shape_cast %95 : vector<128xf32> to vector<1x128xf32>
    %97 = vector.shape_cast %96 : vector<1x128xf32> to vector<1x1x1x128xf32>
    %c0_44 = arith.constant 0 : index
    %c0_45 = arith.constant 0 : index
    %c0_46 = arith.constant 0 : index
    %c0_47 = arith.constant 0 : index
    %98 = vector.load %arg8[%c0_44, %c0_45, %c0_46, %c0_47] : memref<1x1x1x128xf32, #tpu.memory_space<vmem>>, vector<1x1x1x128xf32>
    tpu.vector_store %arg8[%c0_44, %c0_45, %c0_46, %c0_47], %97 {strides = array<i32>} : memref<1x1x1x128xf32, #tpu.memory_space<vmem>>, vector<1x1x1x128xf32>,
    return
  }
  func.func @transform_1(%arg0: i32, %arg1: i32) -> (i32, i32) {
    %c0_i32 = arith.constant 0 : i32
    %c0_i32_0 = arith.constant 0 : i32
    %c0_i32_1 = arith.constant 0 : i32
    return %c0_i32, %c0_i32_0 : i32, i32
  }
  func.func @transform_2(%arg0: i32, %arg1: i32) -> (i32, i32) {
    %c0_i32 = arith.constant 0 : i32
    %c0_i32_0 = arith.constant 0 : i32
    %c0_i32_1 = arith.constant 0 : i32
    return %c0_i32, %c0_i32_0 : i32, i32
  }
  func.func @transform_3(%arg0: i32, %arg1: i32) -> (i32, i32) {
    %c0_i32 = arith.constant 0 : i32
    %c0_i32_0 = arith.constant 0 : i32
    %c0_i32_1 = arith.constant 0 : i32
    return %c0_i32, %c0_i32_0 : i32, i32
  }
  func.func @transform_4(%arg0: i32, %arg1: i32) -> (i32, i32, i32, i32) {
    %c0_i32 = arith.constant 0 : i32
    %c0_i32_0 = arith.constant 0 : i32
    %c0_i32_1 = arith.constant 0 : i32
    return %arg0, %arg1, %c0_i32, %c0_i32_0 : i32, i32, i32, i32
  }
  func.func @transform_5(%arg0: i32, %arg1: i32) -> (i32, i32, i32, i32) {
    %c0_i32 = arith.constant 0 : i32
    %c0_i32_0 = arith.constant 0 : i32
    %c0_i32_1 = arith.constant 0 : i32
    return %arg0, %arg1, %c0_i32, %c0_i32_0 : i32, i32, i32, i32
  }
  func.func @transform_6(%arg0: i32, %arg1: i32) -> (i32, i32, i32, i32) {
    %c0_i32 = arith.constant 0 : i32
    %c0_i32_0 = arith.constant 0 : i32
    %c0_i32_1 = arith.constant 0 : i32
    return %arg0, %arg1, %c0_i32, %c0_i32_0 : i32, i32, i32, i32
  }
}

</mosaic_0001>

<llo_original>
// kernel: _lambda_.5
$region0: #{_lambda_.5}
  #allocation0 [shape = 'u32[]', space=smem, size = 0x4, offset = 0x4, fixed_abs, tag = 'smem constant byte address 0x4 - core index']
  #allocation1 [shape = 'u32[72,128]{1,0:T(1,128)}', space=vmem, size = 0x9000, scoped, tag = 'internal scratch']
  %s0 = inlined_call_operand.vmem [shape: bf16[512,128], index: 0, kind: input, shape index: {}]
  %s1 = inlined_call_operand.vmem [shape: f32[1,128], index: 1, kind: input, shape index: {}]
  %s2 = inlined_call_operand.vmem [shape: f32[1,128], index: 2, kind: input, shape index: {}]
  %s3 = inlined_call_operand.vmem [shape: f32[512,128], index: 3, kind: output, shape index: {}]
  %s4 = sld [smem:[#allocation0]]
  $region22: #{_lambda_.5} parent=0
    _
  %s6 = ssub.s32 1, %s4
  %s7 = scalar_select 0, %s6, %s4
  // Predicated region
  $region2: #{_lambda_.5} parent=0 // pred_check
    _
  $region3: #{_lambda_.5} parent=0 // pred_check_branch
    %9 = sbr.rel (0) target = $region5
  $region4: #{_lambda_.5} parent=0 // pred_region
    _
  $region5: #{_lambda_.5} parent=0 // pred_fallthru
    _
  // Predicated region
  $region6: #{_lambda_.5} parent=0 // pred_check
    _
  $region7: #{_lambda_.5} parent=0 // pred_check_branch
    %11 = sbr.rel (0) target = $region9
  $region8: #{_lambda_.5} parent=0 // pred_region
    _
  $region9: #{_lambda_.5} parent=0 // pred_fallthru
    _
  // Predicated region
  $region10: #{_lambda_.5} parent=0 // pred_check
    _
  $region11: #{_lambda_.5} parent=0 // pred_check_branch
    %13 = sbr.rel (0) target = $region13
  $region12: #{_lambda_.5} parent=0 // pred_region
    _
  $region13: #{_lambda_.5} parent=0 // pred_fallthru
    _
  %v14 = vld [vmem:[%s0] sm:$0xf]
  %v15 = vld [vmem:[%s0 + $0x4] sm:$0xf]
  %v16 = vld [vmem:[%s0 + $0x8] sm:$0xf]
  %v17 = vld [vmem:[%s0 + $0xc] sm:$0xf]
  %v18 = vld [vmem:[%s0 + $0x10] sm:$0xf]
  %v19 = vld [vmem:[%s0 + $0x14] sm:$0xf]
  %v20 = vld [vmem:[%s0 + $0x18] sm:$0xf]
  %v21 = vld [vmem:[%s0 + $0x1c] sm:$0xf]
  %v22 = vld [vmem:[%s0 + $0x20] sm:$0xf]
  %v23 = vld [vmem:[%s0 + $0x24] sm:$0xf]
  %v24 = vld [vmem:[%s0 + $0x28] sm:$0xf]
  %v25 = vld [vmem:[%s0 + $0x2c] sm:$0xf]
  %v26 = vld [vmem:[%s0 + $0x30] sm:$0xf]
  %v27 = vld [vmem:[%s0 + $0x34] sm:$0xf]
  %v28 = vld [vmem:[%s0 + $0x38] sm:$0xf]
  %v29 = vld [vmem:[%s0 + $0x3c] sm:$0xf]
  %v30 = vld [vmem:[%s0 + $0x40] sm:$0xf]
  %v31 = vld [vmem:[%s0 + $0x44] sm:$0xf]
  %v32 = vld [vmem:[%s0 + $0x48] sm:$0xf]
  %v33 = vld [vmem:[%s0 + $0x4c] sm:$0xf]
  %v34 = vld [vmem:[%s0 + $0x50] sm:$0xf]
  %v35 = vld [vmem:[%s0 + $0x54] sm:$0xf]
  %v36 = vld [vmem:[%s0 + $0x58] sm:$0xf]
  %v37 = vld [vmem:[%s0 + $0x5c] sm:$0xf]
  %v38 = vld [vmem:[%s0 + $0x60] sm:$0xf]
  %v39 = vld [vmem:[%s0 + $0x64] sm:$0xf]
  %v40 = vld [vmem:[%s0 + $0x68] sm:$0xf]
  %v41 = vld [vmem:[%s0 + $0x6c] sm:$0xf]
  %v42 = vld [vmem:[%s0 + $0x70] sm:$0xf]
  %v43 = vld [vmem:[%s0 + $0x74] sm:$0xf]
  %v44 = vld [vmem:[%s0 + $0x78] sm:$0xf]
  %v45 = vld [vmem:[%s0 + $0x7c] sm:$0xf]
  %v46 = vld [vmem:[%s0 + $0x80] sm:$0xf]
  %v47 = vld [vmem:[%s0 + $0x84] sm:$0xf]
  %v48 = vld [vmem:[%s0 + $0x88] sm:$0xf]
  %v49 = vld [vmem:[%s0 + $0x8c] sm:$0xf]
  %v50 = vld [vmem:[%s0 + $0x90] sm:$0xf]
  %v51 = vld [vmem:[%s0 + $0x94] sm:$0xf]
  %v52 = vld [vmem:[%s0 + $0x98] sm:$0xf]
  %v53 = vld [vmem:[%s0 + $0x9c] sm:$0xf]
  %v54 = vld [vmem:[%s0 + $0xa0] sm:$0xf]
  %v55 = vld [vmem:[%s0 + $0xa4] sm:$0xf]
  %v56 = vld [vmem:[%s0 + $0xa8] sm:$0xf]
  %v57 = vld [vmem:[%s0 + $0xac] sm:$0xf]
  %v58 = vld [vmem:[%s0 + $0xb0] sm:$0xf]
  %v59 = vld [vmem:[%s0 + $0xb4] sm:$0xf]
  %v60 = vld [vmem:[%s0 + $0xb8] sm:$0xf]
  %v61 = vld [vmem:[%s0 + $0xbc] sm:$0xf]
  %v62 = vld [vmem:[%s0 + $0xc0] sm:$0xf]
  %v63 = vld [vmem:[%s0 + $0xc4] sm:$0xf]
  %v64 = vld [vmem:[%s0 + $0xc8] sm:$0xf]
  %v65 = vld [vmem:[%s0 + $0xcc] sm:$0xf]
  %v66 = vld [vmem:[%s0 + $0xd0] sm:$0xf]
  %v67 = vld [vmem:[%s0 + $0xd4] sm:$0xf]
  %v68 = vld [vmem:[%s0 + $0xd8] sm:$0xf]
  %v69 = vld [vmem:[%s0 + $0xdc] sm:$0xf]
  %v70 = vld [vmem:[%s0 + $0xe0] sm:$0xf]
  %v71 = vld [vmem:[%s0 + $0xe4] sm:$0xf]
  %v72 = vld [vmem:[%s0 + $0xe8] sm:$0xf]
  %v73 = vld [vmem:[%s0 + $0xec] sm:$0xf]
  %v74 = vld [vmem:[%s0 + $0xf0] sm:$0xf]
  %v75 = vld [vmem:[%s0 + $0xf4] sm:$0xf]
  %v76 = vld [vmem:[%s0 + $0xf8] sm:$0xf]
  %v77 = vld [vmem:[%s0 + $0xfc] sm:$0xf]
  %v78 = vunpack.c.l.bf16 %v14
  %v79 = vunpack.c.l.bf16 %v15
  %v80 = vunpack.c.l.bf16 %v16
  %v81 = vunpack.c.l.bf16 %v17
  %v82 = vunpack.c.l.bf16 %v18
  %v83 = vunpack.c.l.bf16 %v19
  %v84 = vunpack.c.l.bf16 %v20
  %v85 = vunpack.c.l.bf16 %v21
  %v86 = vunpack.c.l.bf16 %v22
  %v87 = vunpack.c.l.bf16 %v23
  %v88 = vunpack.c.l.bf16 %v24
  %v89 = vunpack.c.l.bf16 %v25
  %v90 = vunpack.c.l.bf16 %v26
  %v91 = vunpack.c.l.bf16 %v27
  %v92 = vunpack.c.l.bf16 %v28
  %v93 = vunpack.c.l.bf16 %v29
  %v94 = vunpack.c.l.bf16 %v30
  %v95 = vunpack.c.l.bf16 %v31
  %v96 = vunpack.c.l.bf16 %v32
  %v97 = vunpack.c.l.bf16 %v33
  %v98 = vunpack.c.l.bf16 %v34
  %v99 = vunpack.c.l.bf16 %v35
  %v100 = vunpack.c.l.bf16 %v36
  %v101 = vunpack.c.l.bf16 %v37
  %v102 = vunpack.c.l.bf16 %v38
  %v103 = vunpack.c.l.bf16 %v39
  %v104 = vunpack.c.l.bf16 %v40
  %v105 = vunpack.c.l.bf16 %v41
  %v106 = vunpack.c.l.bf16 %v42
  %v107 = vunpack.c.l.bf16 %v43
  %v108 = vunpack.c.l.bf16 %v44
  %v109 = vunpack.c.l.bf16 %v45
  %v110 = vunpack.c.l.bf16 %v46
  %v111 = vunpack.c.l.bf16 %v47
  %v112 = vunpack.c.l.bf16 %v48
  %v113 = vunpack.c.l.bf16 %v49
  %v114 = vunpack.c.l.bf16 %v50
  %v115 = vunpack.c.l.bf16 %v51
  %v116 = vunpack.c.l.bf16 %v52
  %v117 = vunpack.c.l.bf16 %v53
  %v118 = vunpack.c.l.bf16 %v54
  %v119 = vunpack.c.l.bf16 %v55
  %v120 = vunpack.c.l.bf16 %v56
  %v121 = vunpack.c.l.bf16 %v57
  %v122 = vunpack.c.l.bf16 %v58
  %v123 = vunpack.c.l.bf16 %v59
  %v124 = vunpack.c.l.bf16 %v60
  %v125 = vunpack.c.l.bf16 %v61
  %v126 = vunpack.c.l.bf16 %v62
  %v127 = vunpack.c.l.bf16 %v63
  %v128 = vunpack.c.l.bf16 %v64
  %v129 = vunpack.c.l.bf16 %v65
  %v130 = vunpack.c.l.bf16 %v66
  %v131 = vunpack.c.l.bf16 %v67
  %v132 = vunpack.c.l.bf16 %v68
  %v133 = vunpack.c.l.bf16 %v69
  %v134 = vunpack.c.l.bf16 %v70
  %v135 = vunpack.c.l.bf16 %v71
  %v136 = vunpack.c.l.bf16 %v72
  %v137 = vunpack.c.l.bf16 %v73
  %v138 = vunpack.c.l.bf16 %v74
  %v139 = vunpack.c.l.bf16 %v75
  %v140 = vunpack.c.l.bf16 %v76
  %v141 = vunpack.c.l.bf16 %v77
  %v142 = vld [vmem:[%s1] sm:$0x1]
  %v144 = vperm.slane %v142, 0
  %v146 = vmul.f32 %v78, %v144
  %v147 = vmul.f32 %v79, %v144
  %v148 = vmul.f32 %v80, %v144
  %v149 = vmul.f32 %v81, %v144
  %v150 = vmul.f32 %v82, %v144
  %v151 = vmul.f32 %v83, %v144
  %v152 = vmul.f32 %v84, %v144
  %v153 = vmul.f32 %v85, %v144
  %v154 = vmul.f32 %v86, %v144
  %v155 = vmul.f32 %v87, %v144
  %v156 = vmul.f32 %v88, %v144
  %v157 = vmul.f32 %v89, %v144
  %v158 = vmul.f32 %v90, %v144
  %v159 = vmul.f32 %v91, %v144
  %v160 = vmul.f32 %v92, %v144
  %v161 = vmul.f32 %v93, %v144
  %v162 = vmul.f32 %v94, %v144
  %v163 = vmul.f32 %v95, %v144
  %v164 = vmul.f32 %v96, %v144
  %v165 = vmul.f32 %v97, %v144
  %v166 = vmul.f32 %v98, %v144
  %v167 = vmul.f32 %v99, %v144
  %v168 = vmul.f32 %v100, %v144
  %v169 = vmul.f32 %v101, %v144
  %v170 = vmul.f32 %v102, %v144
  %v171 = vmul.f32 %v103, %v144
  %v172 = vmul.f32 %v104, %v144
  %v173 = vmul.f32 %v105, %v144
  %v174 = vmul.f32 %v106, %v144
  %v175 = vmul.f32 %v107, %v144
  %v176 = vmul.f32 %v108, %v144
  %v177 = vmul.f32 %v109, %v144
  %v178 = vmul.f32 %v110, %v144
  %v179 = vmul.f32 %v111, %v144
  %v180 = vmul.f32 %v112, %v144
  %v181 = vmul.f32 %v113, %v144
  %v182 = vmul.f32 %v114, %v144
  %v183 = vmul.f32 %v115, %v144
  %v184 = vmul.f32 %v116, %v144
  %v185 = vmul.f32 %v117, %v144
  %v186 = vmul.f32 %v118, %v144
  %v187 = vmul.f32 %v119, %v144
  %v188 = vmul.f32 %v120, %v144
  %v189 = vmul.f32 %v121, %v144
  %v190 = vmul.f32 %v122, %v144
  %v191 = vmul.f32 %v123, %v144
  %v192 = vmul.f32 %v124, %v144
  %v193 = vmul.f32 %v125, %v144
  %v194 = vmul.f32 %v126, %v144
  %v195 = vmul.f32 %v127, %v144
  %v196 = vmul.f32 %v128, %v144
  %v197 = vmul.f32 %v129, %v144
  %v198 = vmul.f32 %v130, %v144
  %v199 = vmul.f32 %v131, %v144
  %v200 = vmul.f32 %v132, %v144
  %v201 = vmul.f32 %v133, %v144
  %v202 = vmul.f32 %v134, %v144
  %v203 = vmul.f32 %v135, %v144
  %v204 = vmul.f32 %v136, %v144
  %v205 = vmul.f32 %v137, %v144
  %v206 = vmul.f32 %v138, %v144
  %v207 = vmul.f32 %v139, %v144
  %v208 = vmul.f32 %v140, %v144
  %v209 = vmul.f32 %v141, %v144
  %v210 = vld [vmem:[%s2] sm:$0x1]
  %v212 = vperm.slane %v210, 0
  %v214 = vadd.f32 %v146, %v212
  %v215 = vadd.f32 %v147, %v212
  %v216 = vadd.f32 %v148, %v212
  %v217 = vadd.f32 %v149, %v212
  %v218 = vadd.f32 %v150, %v212
  %v219 = vadd.f32 %v151, %v212
  %v220 = vadd.f32 %v152, %v212
  %v221 = vadd.f32 %v153, %v212
  %v222 = vadd.f32 %v154, %v212
  %v223 = vadd.f32 %v155, %v212
  %v224 = vadd.f32 %v156, %v212
  %v225 = vadd.f32 %v157, %v212
  %v226 = vadd.f32 %v158, %v212
  %v227 = vadd.f32 %v159, %v212
  %v228 = vadd.f32 %v160, %v212
  %v229 = vadd.f32 %v161, %v212
  %v230 = vadd.f32 %v162, %v212
  %v231 = vadd.f32 %v163, %v212
  %v232 = vadd.f32 %v164, %v212
  %v233 = vadd.f32 %v165, %v212
  %v234 = vadd.f32 %v166, %v212
  %v235 = vadd.f32 %v167, %v212
  %v236 = vadd.f32 %v168, %v212
  %v237 = vadd.f32 %v169, %v212
  %v238 = vadd.f32 %v170, %v212
  %v239 = vadd.f32 %v171, %v212
  %v240 = vadd.f32 %v172, %v212
  %v241 = vadd.f32 %v173, %v212
  %v242 = vadd.f32 %v174, %v212
  %v243 = vadd.f32 %v175, %v212
  %v244 = vadd.f32 %v176, %v212
  %v245 = vadd.f32 %v177, %v212
  %v246 = vadd.f32 %v178, %v212
  %v247 = vadd.f32 %v179, %v212
  %v248 = vadd.f32 %v180, %v212
  %v249 = vadd.f32 %v181, %v212
  %v250 = vadd.f32 %v182, %v212
  %v251 = vadd.f32 %v183, %v212
  %v252 = vadd.f32 %v184, %v212
  %v253 = vadd.f32 %v185, %v212
  %v254 = vadd.f32 %v186, %v212
  %v255 = vadd.f32 %v187, %v212
  %v256 = vadd.f32 %v188, %v212
  %v257 = vadd.f32 %v189, %v212
  %v258 = vadd.f32 %v190, %v212
  %v259 = vadd.f32 %v191, %v212
  %v260 = vadd.f32 %v192, %v212
  %v261 = vadd.f32 %v193, %v212
  %v262 = vadd.f32 %v194, %v212
  %v263 = vadd.f32 %v195, %v212
  %v264 = vadd.f32 %v196, %v212
  %v265 = vadd.f32 %v197, %v212
  %v266 = vadd.f32 %v198, %v212
  %v267 = vadd.f32 %v199, %v212
  %v268 = vadd.f32 %v200, %v212
  %v269 = vadd.f32 %v201, %v212
  %v270 = vadd.f32 %v202, %v212
  %v271 = vadd.f32 %v203, %v212
  %v272 = vadd.f32 %v204, %v212
  %v273 = vadd.f32 %v205, %v212
  %v274 = vadd.f32 %v206, %v212
  %v275 = vadd.f32 %v207, %v212
  %v276 = vadd.f32 %v208, %v212
  %v277 = vadd.f32 %v209, %v212
  %v278 = vmax.f32 %v214, 0.0
  %v279 = vmax.f32 %v215, 0.0
  %v280 = vmax.f32 %v216, 0.0
  %v281 = vmax.f32 %v217, 0.0
  %v282 = vmax.f32 %v218, 0.0
  %v283 = vmax.f32 %v219, 0.0
  %v284 = vmax.f32 %v220, 0.0
  %v285 = vmax.f32 %v221, 0.0
  %v286 = vmax.f32 %v222, 0.0
  %v287 = vmax.f32 %v223, 0.0
  %v288 = vmax.f32 %v224, 0.0
  %v289 = vmax.f32 %v225, 0.0
  %v290 = vmax.f32 %v226, 0.0
  %v291 = vmax.f32 %v227, 0.0
  %v292 = vmax.f32 %v228, 0.0
  %v293 = vmax.f32 %v229, 0.0
  %v294 = vmax.f32 %v230, 0.0
  %v295 = vmax.f32 %v231, 0.0
  %v296 = vmax.f32 %v232, 0.0
  %v297 = vmax.f32 %v233, 0.0
  %v298 = vmax.f32 %v234, 0.0
  %v299 = vmax.f32 %v235, 0.0
  %v300 = vmax.f32 %v236, 0.0
  %v301 = vmax.f32 %v237, 0.0
  %v302 = vmax.f32 %v238, 0.0
  %v303 = vmax.f32 %v239, 0.0
  %v304 = vmax.f32 %v240, 0.0
  %v305 = vmax.f32 %v241, 0.0
  %v306 = vmax.f32 %v242, 0.0
  %v307 = vmax.f32 %v243, 0.0
  %v308 = vmax.f32 %v244, 0.0
  %v309 = vmax.f32 %v245, 0.0
  %v310 = vmax.f32 %v246, 0.0
  %v311 = vmax.f32 %v247, 0.0
  %v312 = vmax.f32 %v248, 0.0
  %v313 = vmax.f32 %v249, 0.0
  %v314 = vmax.f32 %v250, 0.0
  %v315 = vmax.f32 %v251, 0.0
  %v316 = vmax.f32 %v252, 0.0
  %v317 = vmax.f32 %v253, 0.0
  %v318 = vmax.f32 %v254, 0.0
  %v319 = vmax.f32 %v255, 0.0
  %v320 = vmax.f32 %v256, 0.0
  %v321 = vmax.f32 %v257, 0.0
  %v322 = vmax.f32 %v258, 0.0
  %v323 = vmax.f32 %v259, 0.0
  %v324 = vmax.f32 %v260, 0.0
  %v325 = vmax.f32 %v261, 0.0
  %v326 = vmax.f32 %v262, 0.0
  %v327 = vmax.f32 %v263, 0.0
  %v328 = vmax.f32 %v264, 0.0
  %v329 = vmax.f32 %v265, 0.0
  %v330 = vmax.f32 %v266, 0.0
  %v331 = vmax.f32 %v267, 0.0
  %v332 = vmax.f32 %v268, 0.0
  %v333 = vmax.f32 %v269, 0.0
  %v334 = vmax.f32 %v270, 0.0
  %v335 = vmax.f32 %v271, 0.0
  %v336 = vmax.f32 %v272, 0.0
  %v337 = vmax.f32 %v273, 0.0
  %v338 = vmax.f32 %v274, 0.0
  %v339 = vmax.f32 %v275, 0.0
  %v340 = vmax.f32 %v276, 0.0
  %v341 = vmax.f32 %v277, 0.0
  %342 = vst [vmem:[%s3] sm:$0xff] %v278
  %343 = vst [vmem:[%s3 + $0x8] sm:$0xff] %v279
  %344 = vst [vmem:[%s3 + $0x10] sm:$0xff] %v280
  %345 = vst [vmem:[%s3 + $0x18] sm:$0xff] %v281
  %346 = vst [vmem:[%s3 + $0x20] sm:$0xff] %v282
  %347 = vst [vmem:[%s3 + $0x28] sm:$0xff] %v283
  %348 = vst [vmem:[%s3 + $0x30] sm:$0xff] %v284
  %349 = vst [vmem:[%s3 + $0x38] sm:$0xff] %v285
  %350 = vst [vmem:[%s3 + $0x40] sm:$0xff] %v286
  %351 = vst [vmem:[%s3 + $0x48] sm:$0xff] %v287
  %352 = vst [vmem:[%s3 + $0x50] sm:$0xff] %v288
  %353 = vst [vmem:[%s3 + $0x58] sm:$0xff] %v289
  %354 = vst [vmem:[%s3 + $0x60] sm:$0xff] %v290
  %355 = vst [vmem:[%s3 + $0x68] sm:$0xff] %v291
  %356 = vst [vmem:[%s3 + $0x70] sm:$0xff] %v292
  %357 = vst [vmem:[%s3 + $0x78] sm:$0xff] %v293
  %358 = vst [vmem:[%s3 + $0x80] sm:$0xff] %v294
  %359 = vst [vmem:[%s3 + $0x88] sm:$0xff] %v295
  %360 = vst [vmem:[%s3 + $0x90] sm:$0xff] %v296
  %361 = vst [vmem:[%s3 + $0x98] sm:$0xff] %v297
  %362 = vst [vmem:[%s3 + $0xa0] sm:$0xff] %v298
  %363 = vst [vmem:[%s3 + $0xa8] sm:$0xff] %v299
  %364 = vst [vmem:[%s3 + $0xb0] sm:$0xff] %v300
  %365 = vst [vmem:[%s3 + $0xb8] sm:$0xff] %v301
  %366 = vst [vmem:[%s3 + $0xc0] sm:$0xff] %v302
  %367 = vst [vmem:[%s3 + $0xc8] sm:$0xff] %v303
  %368 = vst [vmem:[%s3 + $0xd0] sm:$0xff] %v304
  %369 = vst [vmem:[%s3 + $0xd8] sm:$0xff] %v305
  %370 = vst [vmem:[%s3 + $0xe0] sm:$0xff] %v306
  %371 = vst [vmem:[%s3 + $0xe8] sm:$0xff] %v307
  %372 = vst [vmem:[%s3 + $0xf0] sm:$0xff] %v308
  %373 = vst [vmem:[%s3 + $0xf8] sm:$0xff] %v309
  %374 = vst [vmem:[%s3 + $0x100] sm:$0xff] %v310
  %375 = vst [vmem:[%s3 + $0x108] sm:$0xff] %v311
  %376 = vst [vmem:[%s3 + $0x110] sm:$0xff] %v312
  %377 = vst [vmem:[%s3 + $0x118] sm:$0xff] %v313
  %378 = vst [vmem:[%s3 + $0x120] sm:$0xff] %v314
  %379 = vst [vmem:[%s3 + $0x128] sm:$0xff] %v315
  %380 = vst [vmem:[%s3 + $0x130] sm:$0xff] %v316
  %381 = vst [vmem:[%s3 + $0x138] sm:$0xff] %v317
  %382 = vst [vmem:[%s3 + $0x140] sm:$0xff] %v318
  %383 = vst [vmem:[%s3 + $0x148] sm:$0xff] %v319
  %384 = vst [vmem:[%s3 + $0x150] sm:$0xff] %v320
  %385 = vst [vmem:[%s3 + $0x158] sm:$0xff] %v321
  %386 = vst [vmem:[%s3 + $0x160] sm:$0xff] %v322
  %387 = vst [vmem:[%s3 + $0x168] sm:$0xff] %v323
  %388 = vst [vmem:[%s3 + $0x170] sm:$0xff] %v324
  %389 = vst [vmem:[%s3 + $0x178] sm:$0xff] %v325
  %390 = vst [vmem:[%s3 + $0x180] sm:$0xff] %v326
  %391 = vst [vmem:[%s3 + $0x188] sm:$0xff] %v327
  %392 = vst [vmem:[%s3 + $0x190] sm:$0xff] %v328
  %393 = vst [vmem:[%s3 + $0x198] sm:$0xff] %v329
  %394 = vst [vmem:[%s3 + $0x1a0] sm:$0xff] %v330
  %395 = vst [vmem:[%s3 + $0x1a8] sm:$0xff] %v331
  %396 = vst [vmem:[%s3 + $0x1b0] sm:$0xff] %v332
  %397 = vst [vmem:[%s3 + $0x1b8] sm:$0xff] %v333
  %398 = vst [vmem:[%s3 + $0x1c0] sm:$0xff] %v334
  %399 = vst [vmem:[%s3 + $0x1c8] sm:$0xff] %v335
  %400 = vst [vmem:[%s3 + $0x1d0] sm:$0xff] %v336
  %401 = vst [vmem:[%s3 + $0x1d8] sm:$0xff] %v337
  %402 = vst [vmem:[%s3 + $0x1e0] sm:$0xff] %v338
  %403 = vst [vmem:[%s3 + $0x1e8] sm:$0xff] %v339
  %404 = vst [vmem:[%s3 + $0x1f0] sm:$0xff] %v340
  %405 = vst [vmem:[%s3 + $0x1f8] sm:$0xff] %v341
  // Predicated region
  $region14: #{_lambda_.5} parent=0 // pred_check
    _
  $region15: #{_lambda_.5} parent=0 // pred_check_branch
    %407 = sbr.rel (0) target = $region17
  $region16: #{_lambda_.5} parent=0 // pred_region
    _
  $region17: #{_lambda_.5} parent=0 // pred_fallthru
    _
  // Predicated region
  $region18: #{_lambda_.5} parent=0 // pred_check
    _
  $region19: #{_lambda_.5} parent=0 // pred_check_branch
    %409 = sbr.rel (0) target = $region21
  $region20: #{_lambda_.5} parent=0 // pred_region
    _
  $region21: #{_lambda_.5} parent=0 // pred_fallthru
    _

// kernel: _lambda_.3
$region0: #{_lambda_.3}
  #allocation0 [shape = 'u32[]', space=smem, size = 0x4, offset = 0x4, fixed_abs, tag = 'smem constant byte address 0x4 - core index']
  #allocation1 [shape = 'u32[72,128]{1,0:T(1,128)}', space=vmem, size = 0x9000, scoped, tag = 'internal scratch']
  #allocation2 [shape = 'bf16[2,6,16,128]{3,2,1,0:T(8,128)(2,1)}', space=vmem, size = 0xc000, scoped, tag = 'scratch operand']
  #allocation3 [shape = 's32[6]{0}', space=sflag, size = 0x18, scoped, tag = 'scratch operand']
  #allocation4 [shape = 's32[]', space=sflag, size = 0x4, offset = 0, fixed_abs, tag = 'sflag constant byte address 0x0 - dummy sync flag']
  #allocation5 [shape = 's32[]', space=sflag, size = 0x4, offset = 0, fixed_abs, tag = 'sflag constant byte address 0x0 - dummy sync flag']
  #allocation6 [shape = 's32[]', space=sflag, size = 0x4, offset = 0, fixed_abs, tag = 'sflag constant byte address 0x0 - dummy sync flag']
  #allocation7 [shape = 's32[]', space=sflag, size = 0x4, offset = 0, fixed_abs, tag = 'sflag constant byte address 0x0 - dummy sync flag']
  #allocation8 [shape = 's32[]', space=sflag, size = 0x4, offset = 0, fixed_abs, tag = 'sflag constant byte address 0x0 - dummy sync flag']
  #allocation9 [shape = 's32[]', space=sflag, size = 0x4, offset = 0, fixed_abs, tag = 'sflag constant byte address 0x0 - dummy sync flag']
  %s0 = inlined_call_operand.vmem [shape: bf16[32,16,128], index: 0, kind: input, shape index: {}]
  %s1 = inlined_call_operand.vmem [shape: bf16[1152,128], index: 1, kind: input, shape index: {}]
  %s2 = inlined_call_operand.vmem [shape: bf16[2,16,16,128], index: 2, kind: output, shape index: {0}]
  %s3 = inlined_call_operand.vmem [shape: f32[2,4,1,128], index: 3, kind: output, shape index: {1}]
  %s4 = inlined_call_operand.vmem [shape: f32[2,4,1,128], index: 4, kind: output, shape index: {2}]
  %5 = xla_tuple %s2, %s3, %s4
  %s6 = sld [smem:[#allocation0]]
  $region259: #{_lambda_.3} parent=0
    _
  %s8 = ssub.s32 1, %s6
  %s9 = scalar_select 0, %s8, %s6
  loop: start=0, step=1, limit=10
  $region2: #{_lambda_.3} parent=0 // loop_pre_header
    _
  $region3: #{_lambda_.3} parent=0 // loop_header
    %s11 = sphi 0, %s15
    %p12 = scmp.ge.s32.totalorder %s11, 10
    %s18 = sphi 0, %s30
    %s19 = sphi 0, %s26
    %s20 = sphi 0, %s18
    %s21 = sphi 0, %s19
    %s22 = sphi 0, %s20
    %s23 = sphi 0, %s21
    %s31 = sphi 0, %s31
    %s33 = sphi 0, %s31
    %s34 = sphi 0, %s33
    %s48 = sphi 0, %s34
    %s56 = sphi 0, %s58
    %s59 = sphi 0, %s56
    %s60 = sphi 0, %s59
    %s76 = sphi 0, %s60
    %s84 = sphi 0, %s86
    %s87 = sphi 0, %s84
    %s88 = sphi 0, %s87
    %s104 = sphi 0, %s88
    %s112 = sphi 0, %s114
    %s115 = sphi 0, %s112
    %s116 = sphi 0, %s115
    %s132 = sphi 0, %s116
  $region4: #{_lambda_.3} parent=0 // loop_header_branch
    %14 = sbr.rel (%p12) target = $region8
  $region5: #{_lambda_.3} parent=0 // loop_body
    %s16 = ssub.s32 %s11, 1
    %s17 = ssub.s32 %s11, 2
    %s24 = sadd.s32 1, %s19
    %p25 = scmp.ge.s32.totalorder %s24, 4
    %s26 = scalar_select %p25, 0, %s24
    %s27 = sadd.s32 1, %s18
    %s28 = scalar_select %p25, %s27, %s18
    %p29 = scmp.ge.s32.totalorder %s28, 2
    %s30 = scalar_select %p29, 0, %s28
    %s32 = sadd.s32 %s31, 1
    %p35 = scmp.eq.s32.totalorder %s11, 7
    %p36 = scmp.ne.s32.totalorder %s31, %s33
    %p37 = scmp.eq.s32.totalorder %s11, 0
    %p38 = por %p36, %p37
    %p39 = scmp.ne.s32.totalorder %s31, %s33
    %p40 = scmp.eq.s32.totalorder %s16, 7
    %p41 = por %p39, %p40
    %p42 = scmp.ne.s32.totalorder %s33, %s34
    %p43 = scmp.eq.s32.totalorder %s16, 0
    %p44 = por %p42, %p43
    %p45 = scmp.ne.s32.totalorder %s33, %s34
    %p46 = scmp.eq.s32.totalorder %s17, 7
    %p47 = por %p45, %p46
    %p49 = scmp.ne.s32.totalorder %s34, %s48
    %p50 = scmp.eq.s32.totalorder %s17, 0
    %p51 = por %p49, %p50
    %s52 = ssub.s32 %s18, %s30
    %s53 = ssub.s32 %s19, %s26
    %s54 = sor.u32 %s52, %s53
    %p55 = scmp.eq.s32.totalorder %s54, 0
    %s57 = sadd.s32 %s56, 1
    %s58 = scalar_select %p55, %s56, %s57
    %p61 = pneg %p55
    %p62 = scmp.eq.s32.totalorder %s11, 7
    %p63 = por %p61, %p62
    %p64 = scmp.ne.s32.totalorder %s56, %s59
    %p65 = scmp.eq.s32.totalorder %s11, 0
    %p66 = por %p64, %p65
    %p67 = scmp.ne.s32.totalorder %s56, %s59
    %p68 = scmp.eq.s32.totalorder %s16, 7
    %p69 = por %p67, %p68
    %p70 = scmp.ne.s32.totalorder %s59, %s60
    %p71 = scmp.eq.s32.totalorder %s16, 0
    %p72 = por %p70, %p71
    %p73 = scmp.ne.s32.totalorder %s59, %s60
    %p74 = scmp.eq.s32.totalorder %s17, 7
    %p75 = por %p73, %p74
    %p77 = scmp.ne.s32.totalorder %s60, %s76
    %p78 = scmp.eq.s32.totalorder %s17, 0
    %p79 = por %p77, %p78
    %s80 = ssub.s32 %s18, %s30
    %s81 = ssub.s32 %s19, %s26
    %s82 = sor.u32 %s80, %s81
    %p83 = scmp.eq.s32.totalorder %s82, 0
    %s85 = sadd.s32 %s84, 1
    %s86 = scalar_select %p83, %s84, %s85
    %p89 = pneg %p83
    %p90 = scmp.eq.s32.totalorder %s11, 7
    %p91 = por %p89, %p90
    %p92 = scmp.ne.s32.totalorder %s84, %s87
    %p93 = scmp.eq.s32.totalorder %s11, 0
    %p94 = por %p92, %p93
    %p95 = scmp.ne.s32.totalorder %s84, %s87
    %p96 = scmp.eq.s32.totalorder %s16, 7
    %p97 = por %p95, %p96
    %p98 = scmp.ne.s32.totalorder %s87, %s88
    %p99 = scmp.eq.s32.totalorder %s16, 0
    %p100 = por %p98, %p99
    %p101 = scmp.ne.s32.totalorder %s87, %s88
    %p102 = scmp.eq.s32.totalorder %s17, 7
    %p103 = por %p101, %p102
    %p105 = scmp.ne.s32.totalorder %s88, %s104
    %p106 = scmp.eq.s32.totalorder %s17, 0
    %p107 = por %p105, %p106
    %s108 = ssub.s32 %s18, %s30
    %s109 = ssub.s32 %s19, %s26
    %s110 = sor.u32 %s108, %s109
    %p111 = scmp.eq.s32.totalorder %s110, 0
    %s113 = sadd.s32 %s112, 1
    %s114 = scalar_select %p111, %s112, %s113
    %p117 = pneg %p111
    %p118 = scmp.eq.s32.totalorder %s11, 7
    %p119 = por %p117, %p118
    %p120 = scmp.ne.s32.totalorder %s112, %s115
    %p121 = scmp.eq.s32.totalorder %s11, 0
    %p122 = por %p120, %p121
    %p123 = scmp.ne.s32.totalorder %s112, %s115
    %p124 = scmp.eq.s32.totalorder %s16, 7
    %p125 = por %p123, %p124
    %p126 = scmp.ne.s32.totalorder %s115, %s116
    %p127 = scmp.eq.s32.totalorder %s16, 0
    %p128 = por %p126, %p127
    %p129 = scmp.ne.s32.totalorder %s115, %s116
    %p130 = scmp.eq.s32.totalorder %s17, 7
    %p131 = por %p129, %p130
    %p133 = scmp.ne.s32.totalorder %s116, %s132
    %p134 = scmp.eq.s32.totalorder %s17, 0
    %p135 = por %p133, %p134
    %p136 = scmp.le.s32.totalorder 1, %s11
    %p137 = scmp.lt.s32.totalorder %s11, 9
    %p138 = pnand %p136, %p137
    %p139 = pneg %p138
    // Predicated region
    $region9: #{_lambda_.3} parent=5 // pred_check
      _
    $region10: #{_lambda_.3} parent=5 // pred_check_branch
      %141 = sbr.rel (%p138) target = $region12
    $region11: #{_lambda_.3} parent=5 // pred_region
      %s142 = ssub.s32 %s11, 1
      // Predicated region
      $region13: #{_lambda_.3} parent=11 // pred_check
        %p143 = pneg %p44
      $region14: #{_lambda_.3} parent=11 // pred_check_branch
        %145 = sbr.rel (%p143) target = $region16
      $region15: #{_lambda_.3} parent=11 // pred_region
        _
      $region16: #{_lambda_.3} parent=11 // pred_fallthru
        _
    $region12: #{_lambda_.3} parent=5 // pred_fallthru
      _
    %p146 = scmp.lt.s32.totalorder %s11, 8
    // Predicated region
    $region17: #{_lambda_.3} parent=5 // pred_check
      %p147 = pneg %p146
    $region18: #{_lambda_.3} parent=5 // pred_check_branch
      %149 = sbr.rel (%p147) target = $region20
    $region19: #{_lambda_.3} parent=5 // pred_region
      _
    $region20: #{_lambda_.3} parent=5 // pred_fallthru
      _
    %p150 = scmp.le.s32.totalorder 1, %s11
    %p151 = scmp.lt.s32.totalorder %s11, 9
    %p152 = pnand %p150, %p151
    %p153 = pneg %p152
    // Predicated region
    $region21: #{_lambda_.3} parent=5 // pred_check
      _
    $region22: #{_lambda_.3} parent=5 // pred_check_branch
      %155 = sbr.rel (%p152) target = $region24
    $region23: #{_lambda_.3} parent=5 // pred_region
      %s156 = ssub.s32 %s11, 1
      %p157 = pneg %p44
      %p158 = pneg %p41
      %p159 = pneg %p72
      %p160 = pneg %p69
      %s161 = smul.u32 4, %s21
      %p162 = scmp.lt.s32.totalorder %s20, 1
      %s163 = scalar_select %p162, %s20, 1
      %p164 = scmp.lt.s32.totalorder %s161, 15
      %s165 = scalar_select %p164, %s161, 15
      %s166 = smul.addr %s165, 2
      %s167 = smul.addr %s163, 32
      %s168 = sadd.s32 %s166, %s167
      %s169 = smul.addr %s168, 4
      %s170 = scalar_lea.vmem %s2, %s169
      %p171 = pneg %p100
      %p172 = pneg %p97
      %p173 = scmp.lt.s32.totalorder %s20, 1
      %s174 = scalar_select %p173, %s20, 1
      %p175 = scmp.lt.s32.totalorder %s21, 3
      %s176 = scalar_select %p175, %s21, 3
      %s177 = smul.addr %s174, 4
      %s178 = sadd.s32 %s176, %s177
      %s179 = scalar_lea.vmem %s3, %s178
      %p180 = pneg %p128
      %p181 = pneg %p125
      %p182 = scmp.lt.s32.totalorder %s20, 1
      %s183 = scalar_select %p182, %s20, 1
      %p184 = scmp.lt.s32.totalorder %s21, 3
      %s185 = scalar_select %p184, %s21, 3
      %s186 = smul.addr %s183, 4
      %s187 = sadd.s32 %s185, %s186
      %s188 = scalar_lea.vmem %s4, %s187
      %s189 = smul.u32 4, %s21
      %p190 = scmp.lt.s32.totalorder %s20, 1
      %s191 = scalar_select %p190, %s20, 1
      %p192 = scmp.lt.s32.totalorder %s189, 15
      %s193 = scalar_select %p192, %s189, 15
      %s194 = smul.addr %s193, 2
      %s195 = smul.addr %s191, 32
      %s196 = sadd.s32 %s194, %s195
      %s197 = smul.addr %s196, 4
      %s198 = scalar_lea.vmem %s2, %s197
      %s199 = smul.u32 4, %s21
      %p200 = scmp.lt.s32.totalorder %s20, 1
      %s201 = scalar_select %p200, %s20, 1
      %p202 = scmp.lt.s32.totalorder %s21, 3
      %s203 = scalar_select %p202, %s21, 3
      %s204 = smul.addr %s201, 4
      %s205 = sadd.s32 %s203, %s204
      %s206 = scalar_lea.vmem %s3, %s205
      %p207 = scmp.lt.s32.totalorder %s20, 1
      %s208 = scalar_select %p207, %s20, 1
      %p209 = scmp.lt.s32.totalorder %s21, 3
      %s210 = scalar_select %p209, %s21, 3
      %s211 = smul.addr %s208, 4
      %s212 = sadd.s32 %s210, %s211
      %s213 = scalar_lea.vmem %s4, %s212
      %p215 = scmp.lt.s32.totalorder %s21, 0
      %s216 = ssub.s32 0, %s21
      %s217 = scalar_select %p215, %s216, %s21
      %s218 = sand.u32 %s217, 1
      %s219 = ssub.s32 0, %s218
      %s220 = scalar_select %p215, %s219, %s218
      %p221 = scmp.ne.s32.totalorder %s220, 0
      %p222 = scmp.lt.s32.totalorder %s220, 0
      %p223 = pnand %p222, %p221
      %p224 = pneg %p223
      %s225 = sadd.s32 %s220, 2
      %s226 = scalar_select %p224, %s225, %s220
      %p227 = scmp.eq.s32.totalorder %s21, 0
      // Predicated region
      $region25: #{_lambda_.3} parent=23 // pred_check
        %p228 = pneg %p227
      $region26: #{_lambda_.3} parent=23 // pred_check_branch
        %230 = sbr.rel (%p228) target = $region28
      $region27: #{_lambda_.3} parent=23 // pred_region
        %s231 = smul.u32 %s20, 16
        %s232 = smul.u32 %s21, 4
        %s233 = sadd.s32 %s231, %s232
        %s234 = smul.u32 %s233, 2
        %s235 = smul.addr %s234, 4
        %s236 = scalar_lea.vmem %s0, %s235
        %s237 = smul.u32 %s226, 12
        %s238 = sadd.s32 2, %s237
        %s239 = smul.addr %s238, 4
        %s240 = scalar_lea.vmem [#allocation2], %s239
        %s241 = smul.u32 %s226, 3
        %s242 = scalar_lea.sflag [#allocation3], %s241
        // Predicated region
        $region29: #{_lambda_.3} parent=27 // pred_check
          _
        $region30: #{_lambda_.3} parent=27 // pred_check_branch
          %244 = sbr.rel (0) target = $region32
        $region31: #{_lambda_.3} parent=27 // pred_region
          loop: start=0, step=1, limit=1
          $region33: #{_lambda_.3} parent=31 // loop_pre_header
            _
          $region34: #{_lambda_.3} parent=31 // loop_header
            %s246 = sphi 0, %s250
            %p247 = scmp.ge.s32.totalorder %s246, 1
            %s251 = sphi %s236, %s236
            %s252 = sphi %s240, %s240
          $region35: #{_lambda_.3} parent=31 // loop_header_branch
            %249 = sbr.rel (%p247) target = $region39
          $region36: #{_lambda_.3} parent=31 // loop_body
            %v253 = vld [vmem:[%s251] sm:$0xff]
            %254 = vst [vmem:[%s252] sm:$0xff] %v253
            %v255 = vld [vmem:[%s251 + $0x8] sm:$0xff]
            %256 = vst [vmem:[%s252 + $0x8] sm:$0xff] %v255
            %v257 = vld [vmem:[%s251 + $0x10] sm:$0xff]
            %258 = vst [vmem:[%s252 + $0x10] sm:$0xff] %v257
            %v259 = vld [vmem:[%s251 + $0x18] sm:$0xff]
            %260 = vst [vmem:[%s252 + $0x18] sm:$0xff] %v259
          $region37: #{_lambda_.3} parent=31 // loop_footer
            %s250 = sadd.s32 1, %s246
          $region38: #{_lambda_.3} parent=31 // loop_footer_branch
            %245 = sbr.rel target = $region34
          $region39: #{_lambda_.3} parent=31 // loop_exit
            _
        $region32: #{_lambda_.3} parent=27 // pred_fallthru
          _
        // Predicated region
        $region40: #{_lambda_.3} parent=27 // pred_check
          _
        $region41: #{_lambda_.3} parent=27 // pred_check_branch
          %262 = sbr.rel target = $region43
        $region42: #{_lambda_.3} parent=27 // pred_region
          _
        $region43: #{_lambda_.3} parent=27 // pred_fallthru
          _
        // Predicated region
        $region44: #{_lambda_.3} parent=27 // pred_check
          _
        $region45: #{_lambda_.3} parent=27 // pred_check_branch
          %265 = sbr.rel (0) target = $region47
        $region46: #{_lambda_.3} parent=27 // pred_region
          %266 = vsyncadd %s242, 512
        $region47: #{_lambda_.3} parent=27 // pred_fallthru
          _
        %p267 = scmp.gt.s32.totalorder %s21, 0
        // Predicated region
        $region48: #{_lambda_.3} parent=27 // pred_check
          %p268 = pneg %p267
        $region49: #{_lambda_.3} parent=27 // pred_check_branch
          %270 = sbr.rel (%p268) target = $region51
        $region50: #{_lambda_.3} parent=27 // pred_region
          %s271 = ssub.s32 %s233, 1
          %s272 = smul.u32 %s271, 2
          %s273 = smul.addr %s272, 4
          %s274 = scalar_lea.vmem %s0, %s273
          %s275 = smul.addr %s237, 4
          %s276 = scalar_lea.vmem [#allocation2], %s275
          %s277 = sadd.s32 1, %s241
          %s278 = scalar_lea.sflag [#allocation3], %s277
          // Predicated region
          $region52: #{_lambda_.3} parent=50 // pred_check
            _
          $region53: #{_lambda_.3} parent=50 // pred_check_branch
            %280 = sbr.rel (0) target = $region55
          $region54: #{_lambda_.3} parent=50 // pred_region
            // Predicated region
            $region67: #{_lambda_.3} parent=54 // pred_check
              _
            $region68: #{_lambda_.3} parent=54 // pred_check_branch
              %296 = sbr.rel (0) target = $region70
            $region69: #{_lambda_.3} parent=54 // pred_region
              loop: start=0, step=1, limit=1
              $region71: #{_lambda_.3} parent=69 // loop_pre_header
                _
              $region72: #{_lambda_.3} parent=69 // loop_header
                %s298 = sphi 0, %s302
                %p299 = scmp.ge.s32.totalorder %s298, 1
                %s303 = sphi %s274, %s274
                %s304 = sphi %s276, %s276
              $region73: #{_lambda_.3} parent=69 // loop_header_branch
                %301 = sbr.rel (%p299) target = $region77
              $region74: #{_lambda_.3} parent=69 // loop_body
                %v305 = vld [vmem:[%s303] sm:$0xff]
                %306 = vst [vmem:[%s304] sm:$0xff] %v305
              $region75: #{_lambda_.3} parent=69 // loop_footer
                %s302 = sadd.s32 1, %s298
              $region76: #{_lambda_.3} parent=69 // loop_footer_branch
                %297 = sbr.rel target = $region72
              $region77: #{_lambda_.3} parent=69 // loop_exit
                _
            $region70: #{_lambda_.3} parent=54 // pred_fallthru
              _
            // Predicated region
            $region78: #{_lambda_.3} parent=54 // pred_check
              _
            $region79: #{_lambda_.3} parent=54 // pred_check_branch
              %308 = sbr.rel target = $region81
            $region80: #{_lambda_.3} parent=54 // pred_region
              _
            $region81: #{_lambda_.3} parent=54 // pred_fallthru
              _
          $region55: #{_lambda_.3} parent=50 // pred_fallthru
            _
          // Predicated region
          $region56: #{_lambda_.3} parent=50 // pred_check
            _
          $region57: #{_lambda_.3} parent=50 // pred_check_branch
            %282 = sbr.rel target = $region59
          $region58: #{_lambda_.3} parent=50 // pred_region
            %s284 = ssub.s32 256, 1
            loop: start=0, step=1, limit=1
            $region60: #{_lambda_.3} parent=58 // loop_pre_header
              _
            $region61: #{_lambda_.3} parent=58 // loop_header
              %s286 = sphi 0, %s290
              %p287 = scmp.ge.s32.totalorder %s286, 1
              %s291 = sphi %s274, %s274
              %s292 = sphi %s276, %s276
            $region62: #{_lambda_.3} parent=58 // loop_header_branch
              %289 = sbr.rel (%p287) target = $region66
            $region63: #{_lambda_.3} parent=58 // loop_body
              %v293 = vld [vmem:[%s291] sm:%s284]
              %294 = vst [vmem:[%s292] sm:%s284] %v293
            $region64: #{_lambda_.3} parent=58 // loop_footer
              %s290 = sadd.s32 1, %s286
            $region65: #{_lambda_.3} parent=58 // loop_footer_branch
              %285 = sbr.rel target = $region61
            $region66: #{_lambda_.3} parent=58 // loop_exit
              _
          $region59: #{_lambda_.3} parent=50 // pred_fallthru
            _
          // Predicated region
          $region82: #{_lambda_.3} parent=50 // pred_check
            _
          $region83: #{_lambda_.3} parent=50 // pred_check_branch
            %311 = sbr.rel (0) target = $region85
          $region84: #{_lambda_.3} parent=50 // pred_region
            %312 = vsyncadd %s278, 128
          $region85: #{_lambda_.3} parent=50 // pred_fallthru
            _
        $region51: #{_lambda_.3} parent=27 // pred_fallthru
          _
        %p313 = scmp.lt.s32.totalorder %s21, 3
        // Predicated region
        $region86: #{_lambda_.3} parent=27 // pred_check
          %p314 = pneg %p313
        $region87: #{_lambda_.3} parent=27 // pred_check_branch
          %316 = sbr.rel (%p314) target = $region89
        $region88: #{_lambda_.3} parent=27 // pred_region
          %s317 = sadd.s32 %s233, 4
          %s318 = smul.u32 %s317, 2
          %s319 = smul.addr %s318, 4
          %s320 = scalar_lea.vmem %s0, %s319
          %s321 = sadd.s32 10, %s237
          %s322 = smul.addr %s321, 4
          %s323 = scalar_lea.vmem [#allocation2], %s322
          %s324 = sadd.s32 2, %s241
          %s325 = scalar_lea.sflag [#allocation3], %s324
          // Predicated region
          $region90: #{_lambda_.3} parent=88 // pred_check
            _
          $region91: #{_lambda_.3} parent=88 // pred_check_branch
            %327 = sbr.rel (0) target = $region93
          $region92: #{_lambda_.3} parent=88 // pred_region
            // Predicated region
            $region105: #{_lambda_.3} parent=92 // pred_check
              _
            $region106: #{_lambda_.3} parent=92 // pred_check_branch
              %343 = sbr.rel (0) target = $region108
            $region107: #{_lambda_.3} parent=92 // pred_region
              loop: start=0, step=1, limit=1
              $region109: #{_lambda_.3} parent=107 // loop_pre_header
                _
              $region110: #{_lambda_.3} parent=107 // loop_header
                %s345 = sphi 0, %s349
                %p346 = scmp.ge.s32.totalorder %s345, 1
                %s350 = sphi %s320, %s320
                %s351 = sphi %s323, %s323
              $region111: #{_lambda_.3} parent=107 // loop_header_branch
                %348 = sbr.rel (%p346) target = $region115
              $region112: #{_lambda_.3} parent=107 // loop_body
                %v352 = vld [vmem:[%s350] sm:$0xff]
                %353 = vst [vmem:[%s351] sm:$0xff] %v352
              $region113: #{_lambda_.3} parent=107 // loop_footer
                %s349 = sadd.s32 1, %s345
              $region114: #{_lambda_.3} parent=107 // loop_footer_branch
                %344 = sbr.rel target = $region110
              $region115: #{_lambda_.3} parent=107 // loop_exit
                _
            $region108: #{_lambda_.3} parent=92 // pred_fallthru
              _
            // Predicated region
            $region116: #{_lambda_.3} parent=92 // pred_check
              _
            $region117: #{_lambda_.3} parent=92 // pred_check_branch
              %355 = sbr.rel target = $region119
            $region118: #{_lambda_.3} parent=92 // pred_region
              _
            $region119: #{_lambda_.3} parent=92 // pred_fallthru
              _
          $region93: #{_lambda_.3} parent=88 // pred_fallthru
            _
          // Predicated region
          $region94: #{_lambda_.3} parent=88 // pred_check
            _
          $region95: #{_lambda_.3} parent=88 // pred_check_branch
            %329 = sbr.rel target = $region97
          $region96: #{_lambda_.3} parent=88 // pred_region
            %s331 = ssub.s32 256, 1
            loop: start=0, step=1, limit=1
            $region98: #{_lambda_.3} parent=96 // loop_pre_header
              _
            $region99: #{_lambda_.3} parent=96 // loop_header
              %s333 = sphi 0, %s337
              %p334 = scmp.ge.s32.totalorder %s333, 1
              %s338 = sphi %s320, %s320
              %s339 = sphi %s323, %s323
            $region100: #{_lambda_.3} parent=96 // loop_header_branch
              %336 = sbr.rel (%p334) target = $region104
            $region101: #{_lambda_.3} parent=96 // loop_body
              %v340 = vld [vmem:[%s338] sm:%s331]
              %341 = vst [vmem:[%s339] sm:%s331] %v340
            $region102: #{_lambda_.3} parent=96 // loop_footer
              %s337 = sadd.s32 1, %s333
            $region103: #{_lambda_.3} parent=96 // loop_footer_branch
              %332 = sbr.rel target = $region99
            $region104: #{_lambda_.3} parent=96 // loop_exit
              _
          $region97: #{_lambda_.3} parent=88 // pred_fallthru
            _
          // Predicated region
          $region120: #{_lambda_.3} parent=88 // pred_check
            _
          $region121: #{_lambda_.3} parent=88 // pred_check_branch
            %358 = sbr.rel (0) target = $region123
          $region122: #{_lambda_.3} parent=88 // pred_region
            %359 = vsyncadd %s325, 128
          $region123: #{_lambda_.3} parent=88 // pred_fallthru
            _
        $region89: #{_lambda_.3} parent=27 // pred_fallthru
          _
      $region28: #{_lambda_.3} parent=23 // pred_fallthru
        _
      %s360 = sadd.s32 %s21, 1
      %p361 = scmp.lt.s32.totalorder %s360, 4
      // Predicated region
      $region124: #{_lambda_.3} parent=23 // pred_check
        %p362 = pneg %p361
      $region125: #{_lambda_.3} parent=23 // pred_check_branch
        %364 = sbr.rel (%p362) target = $region127
      $region126: #{_lambda_.3} parent=23 // pred_region
        %s365 = ssub.s32 1, %s226
        %s366 = smul.u32 %s20, 16
        %s367 = smul.u32 %s360, 4
        %s368 = sadd.s32 %s366, %s367
        %s369 = smul.u32 %s368, 2
        %s370 = smul.addr %s369, 4
        %s371 = scalar_lea.vmem %s0, %s370
        %s372 = smul.u32 %s365, 12
        %s373 = sadd.s32 2, %s372
        %s374 = smul.addr %s373, 4
        %s375 = scalar_lea.vmem [#allocation2], %s374
        %s376 = smul.u32 %s365, 3
        %s377 = scalar_lea.sflag [#allocation3], %s376
        // Predicated region
        $region128: #{_lambda_.3} parent=126 // pred_check
          _
        $region129: #{_lambda_.3} parent=126 // pred_check_branch
          %379 = sbr.rel (0) target = $region131
        $region130: #{_lambda_.3} parent=126 // pred_region
          loop: start=0, step=1, limit=1
          $region132: #{_lambda_.3} parent=130 // loop_pre_header
            _
          $region133: #{_lambda_.3} parent=130 // loop_header
            %s381 = sphi 0, %s385
            %p382 = scmp.ge.s32.totalorder %s381, 1
            %s386 = sphi %s371, %s371
            %s387 = sphi %s375, %s375
          $region134: #{_lambda_.3} parent=130 // loop_header_branch
            %384 = sbr.rel (%p382) target = $region138
          $region135: #{_lambda_.3} parent=130 // loop_body
            %v388 = vld [vmem:[%s386] sm:$0xff]
            %389 = vst [vmem:[%s387] sm:$0xff] %v388
            %v390 = vld [vmem:[%s386 + $0x8] sm:$0xff]
            %391 = vst [vmem:[%s387 + $0x8] sm:$0xff] %v390
            %v392 = vld [vmem:[%s386 + $0x10] sm:$0xff]
            %393 = vst [vmem:[%s387 + $0x10] sm:$0xff] %v392
            %v394 = vld [vmem:[%s386 + $0x18] sm:$0xff]
            %395 = vst [vmem:[%s387 + $0x18] sm:$0xff] %v394
          $region136: #{_lambda_.3} parent=130 // loop_footer
            %s385 = sadd.s32 1, %s381
          $region137: #{_lambda_.3} parent=130 // loop_footer_branch
            %380 = sbr.rel target = $region133
          $region138: #{_lambda_.3} parent=130 // loop_exit
            _
        $region131: #{_lambda_.3} parent=126 // pred_fallthru
          _
        // Predicated region
        $region139: #{_lambda_.3} parent=126 // pred_check
          _
        $region140: #{_lambda_.3} parent=126 // pred_check_branch
          %397 = sbr.rel target = $region142
        $region141: #{_lambda_.3} parent=126 // pred_region
          _
        $region142: #{_lambda_.3} parent=126 // pred_fallthru
          _
        // Predicated region
        $region143: #{_lambda_.3} parent=126 // pred_check
          _
        $region144: #{_lambda_.3} parent=126 // pred_check_branch
          %400 = sbr.rel (0) target = $region146
        $region145: #{_lambda_.3} parent=126 // pred_region
          %401 = vsyncadd %s377, 512
        $region146: #{_lambda_.3} parent=126 // pred_fallthru
          _
        %p402 = scmp.gt.s32.totalorder %s360, 0
        // Predicated region
        $region147: #{_lambda_.3} parent=126 // pred_check
          %p403 = pneg %p402
        $region148: #{_lambda_.3} parent=126 // pred_check_branch
          %405 = sbr.rel (%p403) target = $region150
        $region149: #{_lambda_.3} parent=126 // pred_region
          %s406 = ssub.s32 %s368, 1
          %s407 = smul.u32 %s406, 2
          %s408 = smul.addr %s407, 4
          %s409 = scalar_lea.vmem %s0, %s408
          %s410 = smul.addr %s372, 4
          %s411 = scalar_lea.vmem [#allocation2], %s410
          %s412 = sadd.s32 1, %s376
          %s413 = scalar_lea.sflag [#allocation3], %s412
          // Predicated region
          $region151: #{_lambda_.3} parent=149 // pred_check
            _
          $region152: #{_lambda_.3} parent=149 // pred_check_branch
            %415 = sbr.rel (0) target = $region154
          $region153: #{_lambda_.3} parent=149 // pred_region
            // Predicated region
            $region166: #{_lambda_.3} parent=153 // pred_check
              _
            $region167: #{_lambda_.3} parent=153 // pred_check_branch
              %431 = sbr.rel (0) target = $region169
            $region168: #{_lambda_.3} parent=153 // pred_region
              loop: start=0, step=1, limit=1
              $region170: #{_lambda_.3} parent=168 // loop_pre_header
                _
              $region171: #{_lambda_.3} parent=168 // loop_header
                %s433 = sphi 0, %s437
                %p434 = scmp.ge.s32.totalorder %s433, 1
                %s438 = sphi %s409, %s409
                %s439 = sphi %s411, %s411
              $region172: #{_lambda_.3} parent=168 // loop_header_branch
                %436 = sbr.rel (%p434) target = $region176
              $region173: #{_lambda_.3} parent=168 // loop_body
                %v440 = vld [vmem:[%s438] sm:$0xff]
                %441 = vst [vmem:[%s439] sm:$0xff] %v440
              $region174: #{_lambda_.3} parent=168 // loop_footer
                %s437 = sadd.s32 1, %s433
              $region175: #{_lambda_.3} parent=168 // loop_footer_branch
                %432 = sbr.rel target = $region171
              $region176: #{_lambda_.3} parent=168 // loop_exit
                _
            $region169: #{_lambda_.3} parent=153 // pred_fallthru
              _
            // Predicated region
            $region177: #{_lambda_.3} parent=153 // pred_check
              _
            $region178: #{_lambda_.3} parent=153 // pred_check_branch
              %443 = sbr.rel target = $region180
            $region179: #{_lambda_.3} parent=153 // pred_region
              _
            $region180: #{_lambda_.3} parent=153 // pred_fallthru
              _
          $region154: #{_lambda_.3} parent=149 // pred_fallthru
            _
          // Predicated region
          $region155: #{_lambda_.3} parent=149 // pred_check
            _
          $region156: #{_lambda_.3} parent=149 // pred_check_branch
            %417 = sbr.rel target = $region158
          $region157: #{_lambda_.3} parent=149 // pred_region
            %s419 = ssub.s32 256, 1
            loop: start=0, step=1, limit=1
            $region159: #{_lambda_.3} parent=157 // loop_pre_header
              _
            $region160: #{_lambda_.3} parent=157 // loop_header
              %s421 = sphi 0, %s425
              %p422 = scmp.ge.s32.totalorder %s421, 1
              %s426 = sphi %s409, %s409
              %s427 = sphi %s411, %s411
            $region161: #{_lambda_.3} parent=157 // loop_header_branch
              %424 = sbr.rel (%p422) target = $region165
            $region162: #{_lambda_.3} parent=157 // loop_body
              %v428 = vld [vmem:[%s426] sm:%s419]
              %429 = vst [vmem:[%s427] sm:%s419] %v428
            $region163: #{_lambda_.3} parent=157 // loop_footer
              %s425 = sadd.s32 1, %s421
            $region164: #{_lambda_.3} parent=157 // loop_footer_branch
              %420 = sbr.rel target = $region160
            $region165: #{_lambda_.3} parent=157 // loop_exit
              _
          $region158: #{_lambda_.3} parent=149 // pred_fallthru
            _
          // Predicated region
          $region181: #{_lambda_.3} parent=149 // pred_check
            _
          $region182: #{_lambda_.3} parent=149 // pred_check_branch
            %446 = sbr.rel (0) target = $region184
          $region183: #{_lambda_.3} parent=149 // pred_region
            %447 = vsyncadd %s413, 128
          $region184: #{_lambda_.3} parent=149 // pred_fallthru
            _
        $region150: #{_lambda_.3} parent=126 // pred_fallthru
          _
        %p448 = scmp.lt.s32.totalorder %s360, 3
        // Predicated region
        $region185: #{_lambda_.3} parent=126 // pred_check
          %p449 = pneg %p448
        $region186: #{_lambda_.3} parent=126 // pred_check_branch
          %451 = sbr.rel (%p449) target = $region188
        $region187: #{_lambda_.3} parent=126 // pred_region
          %s452 = sadd.s32 %s368, 4
          %s453 = smul.u32 %s452, 2
          %s454 = smul.addr %s453, 4
          %s455 = scalar_lea.vmem %s0, %s454
          %s456 = sadd.s32 10, %s372
          %s457 = smul.addr %s456, 4
          %s458 = scalar_lea.vmem [#allocation2], %s457
          %s459 = sadd.s32 2, %s376
          %s460 = scalar_lea.sflag [#allocation3], %s459
          // Predicated region
          $region189: #{_lambda_.3} parent=187 // pred_check
            _
          $region190: #{_lambda_.3} parent=187 // pred_check_branch
            %462 = sbr.rel (0) target = $region192
          $region191: #{_lambda_.3} parent=187 // pred_region
            // Predicated region
            $region204: #{_lambda_.3} parent=191 // pred_check
              _
            $region205: #{_lambda_.3} parent=191 // pred_check_branch
              %478 = sbr.rel (0) target = $region207
            $region206: #{_lambda_.3} parent=191 // pred_region
              loop: start=0, step=1, limit=1
              $region208: #{_lambda_.3} parent=206 // loop_pre_header
                _
              $region209: #{_lambda_.3} parent=206 // loop_header
                %s480 = sphi 0, %s484
                %p481 = scmp.ge.s32.totalorder %s480, 1
                %s485 = sphi %s455, %s455
                %s486 = sphi %s458, %s458
              $region210: #{_lambda_.3} parent=206 // loop_header_branch
                %483 = sbr.rel (%p481) target = $region214
              $region211: #{_lambda_.3} parent=206 // loop_body
                %v487 = vld [vmem:[%s485] sm:$0xff]
                %488 = vst [vmem:[%s486] sm:$0xff] %v487
              $region212: #{_lambda_.3} parent=206 // loop_footer
                %s484 = sadd.s32 1, %s480
              $region213: #{_lambda_.3} parent=206 // loop_footer_branch
                %479 = sbr.rel target = $region209
              $region214: #{_lambda_.3} parent=206 // loop_exit
                _
            $region207: #{_lambda_.3} parent=191 // pred_fallthru
              _
            // Predicated region
            $region215: #{_lambda_.3} parent=191 // pred_check
              _
            $region216: #{_lambda_.3} parent=191 // pred_check_branch
              %490 = sbr.rel target = $region218
            $region217: #{_lambda_.3} parent=191 // pred_region
              _
            $region218: #{_lambda_.3} parent=191 // pred_fallthru
              _
          $region192: #{_lambda_.3} parent=187 // pred_fallthru
            _
          // Predicated region
          $region193: #{_lambda_.3} parent=187 // pred_check
            _
          $region194: #{_lambda_.3} parent=187 // pred_check_branch
            %464 = sbr.rel target = $region196
          $region195: #{_lambda_.3} parent=187 // pred_region
            %s466 = ssub.s32 256, 1
            loop: start=0, step=1, limit=1
            $region197: #{_lambda_.3} parent=195 // loop_pre_header
              _
            $region198: #{_lambda_.3} parent=195 // loop_header
              %s468 = sphi 0, %s472
              %p469 = scmp.ge.s32.totalorder %s468, 1
              %s473 = sphi %s455, %s455
              %s474 = sphi %s458, %s458
            $region199: #{_lambda_.3} parent=195 // loop_header_branch
              %471 = sbr.rel (%p469) target = $region203
            $region200: #{_lambda_.3} parent=195 // loop_body
              %v475 = vld [vmem:[%s473] sm:%s466]
              %476 = vst [vmem:[%s474] sm:%s466] %v475
            $region201: #{_lambda_.3} parent=195 // loop_footer
              %s472 = sadd.s32 1, %s468
            $region202: #{_lambda_.3} parent=195 // loop_footer_branch
              %467 = sbr.rel target = $region198
            $region203: #{_lambda_.3} parent=195 // loop_exit
              _
          $region196: #{_lambda_.3} parent=187 // pred_fallthru
            _
          // Predicated region
          $region219: #{_lambda_.3} parent=187 // pred_check
            _
          $region220: #{_lambda_.3} parent=187 // pred_check_branch
            %493 = sbr.rel (0) target = $region222
          $region221: #{_lambda_.3} parent=187 // pred_region
            %494 = vsyncadd %s460, 128
          $region222: #{_lambda_.3} parent=187 // pred_fallthru
            _
        $region188: #{_lambda_.3} parent=126 // pred_fallthru
          _
      $region127: #{_lambda_.3} parent=23 // pred_fallthru
        _
      %s495 = smul.u32 %s226, 3
      %s496 = scalar_lea.sflag [#allocation3], %s495
      %s497 = smul.u32 4, 4
      %s498 = smul.u32 %s497, 2
      %s499 = smul.u32 %s498, 1
      %s500 = sshll.u32 %s499, 4
      %501 = dma.done %s496, %s500
      %p502 = scmp.gt.s32.totalorder %s21, 0
      // Predicated region
      $region223: #{_lambda_.3} parent=23 // pred_check
        %p503 = pneg %p502
      $region224: #{_lambda_.3} parent=23 // pred_check_branch
        %505 = sbr.rel (%p503) target = $region226
      $region225: #{_lambda_.3} parent=23 // pred_region
        %s506 = sadd.s32 1, %s495
        %s507 = scalar_lea.sflag [#allocation3], %s506
        %s508 = smul.u32 4, 1
        %s509 = smul.u32 %s508, 2
        %s510 = smul.u32 %s509, 1
        %s511 = sshll.u32 %s510, 4
        %512 = dma.done %s507, %s511
      $region226: #{_lambda_.3} parent=23 // pred_fallthru
        _
      %p513 = scmp.lt.s32.totalorder %s21, 3
      // Predicated region
      $region227: #{_lambda_.3} parent=23 // pred_check
        %p514 = pneg %p513
      $region228: #{_lambda_.3} parent=23 // pred_check_branch
        %516 = sbr.rel (%p514) target = $region230
      $region229: #{_lambda_.3} parent=23 // pred_region
        %s517 = sadd.s32 2, %s495
        %s518 = scalar_lea.sflag [#allocation3], %s517
        %s519 = smul.u32 4, 1
        %s520 = smul.u32 %s519, 2
        %s521 = smul.u32 %s520, 1
        %s522 = sshll.u32 %s521, 4
        %523 = dma.done %s518, %s522
      $region230: #{_lambda_.3} parent=23 // pred_fallthru
        _
      %s524 = smul.u32 %s226, 12
      %s525 = smul.addr %s524, 4
      %s526 = scalar_lea.vmem [#allocation2], %s525
      %v527 = vld [vmem:[%s526] sm:$0xf]
      %v528 = vld [vmem:[%s526 + $0x4] sm:$0xf]
      %v529 = vld [vmem:[%s526 + $0x8] sm:$0xf]
      %v530 = vld [vmem:[%s526 + $0xc] sm:$0xf]
      %v531 = vld [vmem:[%s526 + $0x10] sm:$0xf]
      %v532 = vld [vmem:[%s526 + $0x14] sm:$0xf]
      %v533 = vld [vmem:[%s526 + $0x18] sm:$0xf]
      %v534 = vld [vmem:[%s526 + $0x1c] sm:$0xf]
      %v535 = vld [vmem:[%s526 + $0x20] sm:$0xf]
      %v536 = vld [vmem:[%s526 + $0x24] sm:$0xf]
      %v537 = vld [vmem:[%s526 + $0x28] sm:$0xf]
      %v538 = vld [vmem:[%s526 + $0x2c] sm:$0xf]
      %s539 = scalar_select %p227, 1, 0
      %p540 = scmp.eq.s32.totalorder %s21, 3
      %s541 = scalar_select %p540, 4, 5
      %v542 = vstv %s539
      %vm543 = vcmp.le.s32.totalorder %v542, 0
      %vm544 = vcmp.le.s32.totalorder %v542, 1
      %vm545 = vcmp.le.s32.totalorder %v542, 2
      %vm546 = vcmp.le.s32.totalorder %v542, 3
      %vm547 = vcmp.le.s32.totalorder %v542, 4
      %vm548 = vcmp.le.s32.totalorder %v542, 5
      %v549 = vstv %s541
      %vm550 = vcmp.ge.s32.totalorder %v549, 0
      %vm551 = vcmp.ge.s32.totalorder %v549, 1
      %vm552 = vcmp.ge.s32.totalorder %v549, 2
      %vm553 = vcmp.ge.s32.totalorder %v549, 3
      %vm554 = vcmp.ge.s32.totalorder %v549, 4
      %vm555 = vcmp.ge.s32.totalorder %v549, 5
      %vm556 = vmand %vm543, %vm550
      %vm557 = vmand %vm544, %vm551
      %vm558 = vmand %vm545, %vm552
      %vm559 = vmand %vm546, %vm553
      %vm560 = vmand %vm547, %vm554
      %vm561 = vmand %vm548, %vm555
      %v562 = vsel %vm556, 1, 0
      %v563 = vsel %vm557, 1, 0
      %v564 = vsel %vm558, 1, 0
      %v565 = vsel %vm559, 1, 0
      %v566 = vsel %vm560, 1, 0
      %v567 = vsel %vm561, 1, 0
      %vm568 = vcmp.eq.s32.totalorder %v562, 1
      %vm569 = vcmp.eq.s32.totalorder %v563, 1
      %vm570 = vcmp.eq.s32.totalorder %v564, 1
      %vm571 = vcmp.eq.s32.totalorder %v565, 1
      %vm572 = vcmp.eq.s32.totalorder %v566, 1
      %vm573 = vcmp.eq.s32.totalorder %v567, 1
      %v574 = vsel %vm568, %v527, 0
      %v575 = vsel %vm568, %v528, 0
      %v576 = vsel %vm569, %v529, 0
      %v577 = vsel %vm569, %v530, 0
      %v578 = vsel %vm570, %v531, 0
      %v579 = vsel %vm570, %v532, 0
      %v580 = vsel %vm571, %v533, 0
      %v581 = vsel %vm571, %v534, 0
      %v582 = vsel %vm572, %v535, 0
      %v583 = vsel %vm572, %v536, 0
      %v584 = vsel %vm573, %v537, 0
      %v585 = vsel %vm573, %v538, 0
      %v598 = vunpack.c.l.b16 %v574
      %v599 = vunpack.c.l.b16 %v575
      %v600 = vunpack.c.l.b16 %v576
      %v601 = vunpack.c.l.b16 %v577
      %v602 = vunpack.c.l.b16 %v578
      %v603 = vunpack.c.l.b16 %v579
      %v604 = vunpack.c.l.b16 %v580
      %v605 = vunpack.c.l.b16 %v581
      %v606 = vunpack.c.l.b16 %v582
      %v607 = vunpack.c.l.b16 %v583
      %v608 = vunpack.c.l.b16 %v584
      %v609 = vunpack.c.l.b16 %v585
      %v610 = vpack.c.b16 %v599, %v598
      %v611 = vpack.c.b16 %v601, %v600
      %v612 = vpack.c.b16 %v603, %v602
      %v613 = vpack.c.b16 %v605, %v604
      %v614 = vpack.c.b16 %v607, %v606
      %v615 = vpack.c.b16 %v609, %v608
      %v617 = vshrl.u32 %v610, 16
      %v619 = vrot.slane %v617, 7
      %v620 = vshll.u32 %v610, 16
      %v622 = vor.u32 %v619, %v620
      %v624 = vshrl.u32 %v611, 16
      %v626 = vrot.slane %v624, 7
      %v627 = vshll.u32 %v611, 16
      %v629 = vor.u32 %v626, %v627
      %v631 = vshrl.u32 %v612, 16
      %v633 = vrot.slane %v631, 7
      %v634 = vshll.u32 %v612, 16
      %v636 = vor.u32 %v633, %v634
      %v638 = vshrl.u32 %v613, 16
      %v640 = vrot.slane %v638, 7
      %v641 = vshll.u32 %v613, 16
      %v643 = vor.u32 %v640, %v641
      %v645 = vshrl.u32 %v614, 16
      %v647 = vrot.slane %v645, 7
      %v648 = vshll.u32 %v614, 16
      %v650 = vor.u32 %v647, %v648
      %v652 = vshrl.u32 %v615, 16
      %v654 = vrot.slane %v652, 7
      %v655 = vshll.u32 %v615, 16
      %v657 = vor.u32 %v654, %v655
      %vm670 = vcmask 1040384
      %vm671 = vsmask.f32 256
      %vm672 = vmand %vm670, %vm671
      %v673 = vsel %vm672, 0, %v622
      %v674 = vsel %vm672, 0, %v629
      %v675 = vsel %vm672, 0, %v636
      %v676 = vsel %vm672, 0, %v643
      %v677 = vsel %vm672, 0, %v650
      %v678 = vsel %vm672, 0, %v657
      %v679 = vsel %vm672, %v619, 0
      %v680 = vsel %vm672, %v626, 0
      %v681 = vsel %vm672, %v633, 0
      %v682 = vsel %vm672, %v640, 0
      %v683 = vsel %vm672, %v647, 0
      %v684 = vsel %vm672, %v654, 0
      %vm685 = vsmask.f32 7424
      %v687 = vshrl.u32 %v673, 16
      %v689 = vshll.u32 %v673, 16
      %v691 = vrot.slane %v689, 1
      %v692 = vor.u32 %v687, %v691
      %v694 = vshll.u32 %v679, 16
      %v696 = vrot.slane %v694, 1
      %v697 = vsel %vm685, %v692, %v696
      %v699 = vshrl.u32 %v674, 16
      %v701 = vshll.u32 %v674, 16
      %v703 = vrot.slane %v701, 1
      %v704 = vor.u32 %v699, %v703
      %v706 = vshll.u32 %v680, 16
      %v708 = vrot.slane %v706, 1
      %v709 = vsel %vm685, %v704, %v708
      %v711 = vshrl.u32 %v675, 16
      %v713 = vshll.u32 %v675, 16
      %v715 = vrot.slane %v713, 1
      %v716 = vor.u32 %v711, %v715
      %v718 = vshll.u32 %v681, 16
      %v720 = vrot.slane %v718, 1
      %v721 = vsel %vm685, %v716, %v720
      %v723 = vshrl.u32 %v676, 16
      %v725 = vshll.u32 %v676, 16
      %v727 = vrot.slane %v725, 1
      %v728 = vor.u32 %v723, %v727
      %v730 = vshll.u32 %v682, 16
      %v732 = vrot.slane %v730, 1
      %v733 = vsel %vm685, %v728, %v732
      %vm746 = vcmask 1046528
      %v747 = vrot.slane %v673, 1
      %v748 = vrot.slane %v679, 1
      %v749 = vsel %vm746, %v747, %v748
      %v750 = vrot.slane %v674, 1
      %v751 = vrot.slane %v680, 1
      %v752 = vsel %vm746, %v750, %v751
      %v753 = vrot.slane %v675, 1
      %v754 = vrot.slane %v681, 1
      %v755 = vsel %vm746, %v753, %v754
      %v756 = vrot.slane %v676, 1
      %v757 = vrot.slane %v682, 1
      %v758 = vsel %vm746, %v756, %v757
      %v764 = vshrl.u32 %v677, 16
      %v766 = vshll.u32 %v677, 16
      %v768 = vrot.slane %v766, 1
      %v769 = vor.u32 %v764, %v768
      %v771 = vshll.u32 %v683, 16
      %v773 = vrot.slane %v771, 1
      %v774 = vsel %vm685, %v769, %v773
      %v778 = vrot.slane %v677, 1
      %v779 = vrot.slane %v683, 1
      %v780 = vsel %vm746, %v778, %v779
      %v783 = vshrl.u32 %v678, 16
      %v785 = vshll.u32 %v678, 16
      %v787 = vrot.slane %v785, 1
      %v788 = vor.u32 %v783, %v787
      %v790 = vshll.u32 %v684, 16
      %v792 = vrot.slane %v790, 1
      %v793 = vsel %vm685, %v788, %v792
      %v797 = vrot.slane %v678, 1
      %v798 = vrot.slane %v684, 1
      %v799 = vsel %vm746, %v797, %v798
      %v801 = vld [vmem:[%s1] sm:$0xf]
      %v802 = vld [vmem:[%s1 + $0x4] sm:$0xf]
      %v803 = vld [vmem:[%s1 + $0x8] sm:$0xf]
      %v804 = vld [vmem:[%s1 + $0xc] sm:$0xf]
      %v805 = vld [vmem:[%s1 + $0x10] sm:$0xf]
      %v806 = vld [vmem:[%s1 + $0x14] sm:$0xf]
      %v807 = vld [vmem:[%s1 + $0x18] sm:$0xf]
      %v808 = vld [vmem:[%s1 + $0x1c] sm:$0xf]
      %v809 = vld [vmem:[%s1 + $0x20] sm:$0xf]
      %v810 = vld [vmem:[%s1 + $0x24] sm:$0xf]
      %v811 = vld [vmem:[%s1 + $0x28] sm:$0xf]
      %v812 = vld [vmem:[%s1 + $0x2c] sm:$0xf]
      %v813 = vld [vmem:[%s1 + $0x30] sm:$0xf]
      %v814 = vld [vmem:[%s1 + $0x34] sm:$0xf]
      %v815 = vld [vmem:[%s1 + $0x38] sm:$0xf]
      %v816 = vld [vmem:[%s1 + $0x3c] sm:$0xf]
      %v817 = vld [vmem:[%s1 + $0x40] sm:$0xf]
      %v818 = vld [vmem:[%s1 + $0x44] sm:$0xf]
      %v819 = vld [vmem:[%s1 + $0x48] sm:$0xf]
      %v820 = vld [vmem:[%s1 + $0x4c] sm:$0xf]
      %v821 = vld [vmem:[%s1 + $0x50] sm:$0xf]
      %v822 = vld [vmem:[%s1 + $0x54] sm:$0xf]
      %v823 = vld [vmem:[%s1 + $0x58] sm:$0xf]
      %v824 = vld [vmem:[%s1 + $0x5c] sm:$0xf]
      %v825 = vld [vmem:[%s1 + $0x60] sm:$0xf]
      %v826 = vld [vmem:[%s1 + $0x64] sm:$0xf]
      %v827 = vld [vmem:[%s1 + $0x68] sm:$0xf]
      %v828 = vld [vmem:[%s1 + $0x6c] sm:$0xf]
      %v829 = vld [vmem:[%s1 + $0x70] sm:$0xf]
      %v830 = vld [vmem:[%s1 + $0x74] sm:$0xf]
      %v831 = vld [vmem:[%s1 + $0x78] sm:$0xf]
      %v832 = vld [vmem:[%s1 + $0x7c] sm:$0xf]
      %v833 = vld [vmem:[%s1 + $0x80] sm:$0xf]
      %v834 = vld [vmem:[%s1 + $0x84] sm:$0xf]
      %v835 = vld [vmem:[%s1 + $0x88] sm:$0xf]
      %v836 = vld [vmem:[%s1 + $0x8c] sm:$0xf]
      %v837 = vld [vmem:[%s1 + $0x90] sm:$0xf]
      %v838 = vld [vmem:[%s1 + $0x94] sm:$0xf]
      %v839 = vld [vmem:[%s1 + $0x98] sm:$0xf]
      %v840 = vld [vmem:[%s1 + $0x9c] sm:$0xf]
      %v841 = vld [vmem:[%s1 + $0xa0] sm:$0xf]
      %v842 = vld [vmem:[%s1 + $0xa4] sm:$0xf]
      %v843 = vld [vmem:[%s1 + $0xa8] sm:$0xf]
      %v844 = vld [vmem:[%s1 + $0xac] sm:$0xf]
      %v845 = vld [vmem:[%s1 + $0xb0] sm:$0xf]
      %v846 = vld [vmem:[%s1 + $0xb4] sm:$0xf]
      %v847 = vld [vmem:[%s1 + $0xb8] sm:$0xf]
      %v848 = vld [vmem:[%s1 + $0xbc] sm:$0xf]
      %v849 = vld [vmem:[%s1 + $0xc0] sm:$0xf]
      %v850 = vld [vmem:[%s1 + $0xc4] sm:$0xf]
      %v851 = vld [vmem:[%s1 + $0xc8] sm:$0xf]
      %v852 = vld [vmem:[%s1 + $0xcc] sm:$0xf]
      %v853 = vld [vmem:[%s1 + $0xd0] sm:$0xf]
      %v854 = vld [vmem:[%s1 + $0xd4] sm:$0xf]
      %v855 = vld [vmem:[%s1 + $0xd8] sm:$0xf]
      %v856 = vld [vmem:[%s1 + $0xdc] sm:$0xf]
      %v857 = vld [vmem:[%s1 + $0xe0] sm:$0xf]
      %v858 = vld [vmem:[%s1 + $0xe4] sm:$0xf]
      %v859 = vld [vmem:[%s1 + $0xe8] sm:$0xf]
      %v860 = vld [vmem:[%s1 + $0xec] sm:$0xf]
      %v861 = vld [vmem:[%s1 + $0xf0] sm:$0xf]
      %v862 = vld [vmem:[%s1 + $0xf4] sm:$0xf]
      %v863 = vld [vmem:[%s1 + $0xf8] sm:$0xf]
      %v864 = vld [vmem:[%s1 + $0xfc] sm:$0xf]
      %v865 = vld [vmem:[%s1 + $0x100] sm:$0xf]
      %v866 = vld [vmem:[%s1 + $0x104] sm:$0xf]
      %v867 = vld [vmem:[%s1 + $0x108] sm:$0xf]
      %v868 = vld [vmem:[%s1 + $0x10c] sm:$0xf]
      %v869 = vld [vmem:[%s1 + $0x110] sm:$0xf]
      %v870 = vld [vmem:[%s1 + $0x114] sm:$0xf]
      %v871 = vld [vmem:[%s1 + $0x118] sm:$0xf]
      %v872 = vld [vmem:[%s1 + $0x11c] sm:$0xf]
      %v873 = vld [vmem:[%s1 + $0x120] sm:$0xf]
      %v874 = vld [vmem:[%s1 + $0x124] sm:$0xf]
      %v875 = vld [vmem:[%s1 + $0x128] sm:$0xf]
      %v876 = vld [vmem:[%s1 + $0x12c] sm:$0xf]
      %v877 = vld [vmem:[%s1 + $0x130] sm:$0xf]
      %v878 = vld [vmem:[%s1 + $0x134] sm:$0xf]
      %v879 = vld [vmem:[%s1 + $0x138] sm:$0xf]
      %v880 = vld [vmem:[%s1 + $0x13c] sm:$0xf]
      %v881 = vld [vmem:[%s1 + $0x140] sm:$0xf]
      %v882 = vld [vmem:[%s1 + $0x144] sm:$0xf]
      %v883 = vld [vmem:[%s1 + $0x148] sm:$0xf]
      %v884 = vld [vmem:[%s1 + $0x14c] sm:$0xf]
      %v885 = vld [vmem:[%s1 + $0x150] sm:$0xf]
      %v886 = vld [vmem:[%s1 + $0x154] sm:$0xf]
      %v887 = vld [vmem:[%s1 + $0x158] sm:$0xf]
      %v888 = vld [vmem:[%s1 + $0x15c] sm:$0xf]
      %v889 = vld [vmem:[%s1 + $0x160] sm:$0xf]
      %v890 = vld [vmem:[%s1 + $0x164] sm:$0xf]
      %v891 = vld [vmem:[%s1 + $0x168] sm:$0xf]
      %v892 = vld [vmem:[%s1 + $0x16c] sm:$0xf]
      %v893 = vld [vmem:[%s1 + $0x170] sm:$0xf]
      %v894 = vld [vmem:[%s1 + $0x174] sm:$0xf]
      %v895 = vld [vmem:[%s1 + $0x178] sm:$0xf]
      %v896 = vld [vmem:[%s1 + $0x17c] sm:$0xf]
      %v897 = vld [vmem:[%s1 + $0x180] sm:$0xf]
      %v898 = vld [vmem:[%s1 + $0x184] sm:$0xf]
      %v899 = vld [vmem:[%s1 + $0x188] sm:$0xf]
      %v900 = vld [vmem:[%s1 + $0x18c] sm:$0xf]
      %v901 = vld [vmem:[%s1 + $0x190] sm:$0xf]
      %v902 = vld [vmem:[%s1 + $0x194] sm:$0xf]
      %v903 = vld [vmem:[%s1 + $0x198] sm:$0xf]
      %v904 = vld [vmem:[%s1 + $0x19c] sm:$0xf]
      %v905 = vld [vmem:[%s1 + $0x1a0] sm:$0xf]
      %v906 = vld [vmem:[%s1 + $0x1a4] sm:$0xf]
      %v907 = vld [vmem:[%s1 + $0x1a8] sm:$0xf]
      %v908 = vld [vmem:[%s1 + $0x1ac] sm:$0xf]
      %v909 = vld [vmem:[%s1 + $0x1b0] sm:$0xf]
      %v910 = vld [vmem:[%s1 + $0x1b4] sm:$0xf]
      %v911 = vld [vmem:[%s1 + $0x1b8] sm:$0xf]
      %v912 = vld [vmem:[%s1 + $0x1bc] sm:$0xf]
      %v913 = vld [vmem:[%s1 + $0x1c0] sm:$0xf]
      %v914 = vld [vmem:[%s1 + $0x1c4] sm:$0xf]
      %v915 = vld [vmem:[%s1 + $0x1c8] sm:$0xf]
      %v916 = vld [vmem:[%s1 + $0x1cc] sm:$0xf]
      %v917 = vld [vmem:[%s1 + $0x1d0] sm:$0xf]
      %v918 = vld [vmem:[%s1 + $0x1d4] sm:$0xf]
      %v919 = vld [vmem:[%s1 + $0x1d8] sm:$0xf]
      %v920 = vld [vmem:[%s1 + $0x1dc] sm:$0xf]
      %v921 = vld [vmem:[%s1 + $0x1e0] sm:$0xf]
      %v922 = vld [vmem:[%s1 + $0x1e4] sm:$0xf]
      %v923 = vld [vmem:[%s1 + $0x1e8] sm:$0xf]
      %v924 = vld [vmem:[%s1 + $0x1ec] sm:$0xf]
      %v925 = vld [vmem:[%s1 + $0x1f0] sm:$0xf]
      %v926 = vld [vmem:[%s1 + $0x1f4] sm:$0xf]
      %v927 = vld [vmem:[%s1 + $0x1f8] sm:$0xf]
      %v928 = vld [vmem:[%s1 + $0x1fc] sm:$0xf]
      %v929 = vld [vmem:[%s1 + $0x200] sm:$0xf]
      %v930 = vld [vmem:[%s1 + $0x204] sm:$0xf]
      %v931 = vld [vmem:[%s1 + $0x208] sm:$0xf]
      %v932 = vld [vmem:[%s1 + $0x20c] sm:$0xf]
      %v933 = vld [vmem:[%s1 + $0x210] sm:$0xf]
      %v934 = vld [vmem:[%s1 + $0x214] sm:$0xf]
      %v935 = vld [vmem:[%s1 + $0x218] sm:$0xf]
      %v936 = vld [vmem:[%s1 + $0x21c] sm:$0xf]
      %v937 = vld [vmem:[%s1 + $0x220] sm:$0xf]
      %v938 = vld [vmem:[%s1 + $0x224] sm:$0xf]
      %v939 = vld [vmem:[%s1 + $0x228] sm:$0xf]
      %v940 = vld [vmem:[%s1 + $0x22c] sm:$0xf]
      %v941 = vld [vmem:[%s1 + $0x230] sm:$0xf]
      %v942 = vld [vmem:[%s1 + $0x234] sm:$0xf]
      %v943 = vld [vmem:[%s1 + $0x238] sm:$0xf]
      %v944 = vld [vmem:[%s1 + $0x23c] sm:$0xf]
      %v1089 = vunpack.c.l.b16 %v801
      %v1090 = vunpack.c.l.b16 %v802
      %v1091 = vunpack.c.l.b16 %v803
      %v1092 = vunpack.c.l.b16 %v804
      %v1093 = vunpack.c.l.b16 %v805
      %v1094 = vunpack.c.l.b16 %v806
      %v1095 = vunpack.c.l.b16 %v807
      %v1096 = vunpack.c.l.b16 %v808
      %v1097 = vunpack.c.l.b16 %v809
      %v1098 = vunpack.c.l.b16 %v810
      %v1099 = vunpack.c.l.b16 %v811
      %v1100 = vunpack.c.l.b16 %v812
      %v1101 = vunpack.c.l.b16 %v813
      %v1102 = vunpack.c.l.b16 %v814
      %v1103 = vunpack.c.l.b16 %v815
      %v1104 = vunpack.c.l.b16 %v816
      %v1105 = vunpack.c.l.b16 %v817
      %v1106 = vunpack.c.l.b16 %v818
      %v1107 = vunpack.c.l.b16 %v819
      %v1108 = vunpack.c.l.b16 %v820
      %v1109 = vunpack.c.l.b16 %v821
      %v1110 = vunpack.c.l.b16 %v822
      %v1111 = vunpack.c.l.b16 %v823
      %v1112 = vunpack.c.l.b16 %v824
      %v1113 = vunpack.c.l.b16 %v825
      %v1114 = vunpack.c.l.b16 %v826
      %v1115 = vunpack.c.l.b16 %v827
      %v1116 = vunpack.c.l.b16 %v828
      %v1117 = vunpack.c.l.b16 %v829
      %v1118 = vunpack.c.l.b16 %v830
      %v1119 = vunpack.c.l.b16 %v831
      %v1120 = vunpack.c.l.b16 %v832
      %v1121 = vunpack.c.l.b16 %v833
      %v1122 = vunpack.c.l.b16 %v834
      %v1123 = vunpack.c.l.b16 %v835
      %v1124 = vunpack.c.l.b16 %v836
      %v1125 = vunpack.c.l.b16 %v837
      %v1126 = vunpack.c.l.b16 %v838
      %v1127 = vunpack.c.l.b16 %v839
      %v1128 = vunpack.c.l.b16 %v840
      %v1129 = vunpack.c.l.b16 %v841
      %v1130 = vunpack.c.l.b16 %v842
      %v1131 = vunpack.c.l.b16 %v843
      %v1132 = vunpack.c.l.b16 %v844
      %v1133 = vunpack.c.l.b16 %v845
      %v1134 = vunpack.c.l.b16 %v846
      %v1135 = vunpack.c.l.b16 %v847
      %v1136 = vunpack.c.l.b16 %v848
      %v1137 = vunpack.c.l.b16 %v849
      %v1138 = vunpack.c.l.b16 %v850
      %v1139 = vunpack.c.l.b16 %v851
      %v1140 = vunpack.c.l.b16 %v852
      %v1141 = vunpack.c.l.b16 %v853
      %v1142 = vunpack.c.l.b16 %v854
      %v1143 = vunpack.c.l.b16 %v855
      %v1144 = vunpack.c.l.b16 %v856
      %v1145 = vunpack.c.l.b16 %v857
      %v1146 = vunpack.c.l.b16 %v858
      %v1147 = vunpack.c.l.b16 %v859
      %v1148 = vunpack.c.l.b16 %v860
      %v1149 = vunpack.c.l.b16 %v861
      %v1150 = vunpack.c.l.b16 %v862
      %v1151 = vunpack.c.l.b16 %v863
      %v1152 = vunpack.c.l.b16 %v864
      %v1153 = vunpack.c.l.b16 %v865
      %v1154 = vunpack.c.l.b16 %v866
      %v1155 = vunpack.c.l.b16 %v867
      %v1156 = vunpack.c.l.b16 %v868
      %v1157 = vunpack.c.l.b16 %v869
      %v1158 = vunpack.c.l.b16 %v870
      %v1159 = vunpack.c.l.b16 %v871
      %v1160 = vunpack.c.l.b16 %v872
      %v1161 = vunpack.c.l.b16 %v873
      %v1162 = vunpack.c.l.b16 %v874
      %v1163 = vunpack.c.l.b16 %v875
      %v1164 = vunpack.c.l.b16 %v876
      %v1165 = vunpack.c.l.b16 %v877
      %v1166 = vunpack.c.l.b16 %v878
      %v1167 = vunpack.c.l.b16 %v879
      %v1168 = vunpack.c.l.b16 %v880
      %v1169 = vunpack.c.l.b16 %v881
      %v1170 = vunpack.c.l.b16 %v882
      %v1171 = vunpack.c.l.b16 %v883
      %v1172 = vunpack.c.l.b16 %v884
      %v1173 = vunpack.c.l.b16 %v885
      %v1174 = vunpack.c.l.b16 %v886
      %v1175 = vunpack.c.l.b16 %v887
      %v1176 = vunpack.c.l.b16 %v888
      %v1177 = vunpack.c.l.b16 %v889
      %v1178 = vunpack.c.l.b16 %v890
      %v1179 = vunpack.c.l.b16 %v891
      %v1180 = vunpack.c.l.b16 %v892
      %v1181 = vunpack.c.l.b16 %v893
      %v1182 = vunpack.c.l.b16 %v894
      %v1183 = vunpack.c.l.b16 %v895
      %v1184 = vunpack.c.l.b16 %v896
      %v1185 = vunpack.c.l.b16 %v897
      %v1186 = vunpack.c.l.b16 %v898
      %v1187 = vunpack.c.l.b16 %v899
      %v1188 = vunpack.c.l.b16 %v900
      %v1189 = vunpack.c.l.b16 %v901
      %v1190 = vunpack.c.l.b16 %v902
      %v1191 = vunpack.c.l.b16 %v903
      %v1192 = vunpack.c.l.b16 %v904
      %v1193 = vunpack.c.l.b16 %v905
      %v1194 = vunpack.c.l.b16 %v906
      %v1195 = vunpack.c.l.b16 %v907
      %v1196 = vunpack.c.l.b16 %v908
      %v1197 = vunpack.c.l.b16 %v909
      %v1198 = vunpack.c.l.b16 %v910
      %v1199 = vunpack.c.l.b16 %v911
      %v1200 = vunpack.c.l.b16 %v912
      %v1201 = vunpack.c.l.b16 %v913
      %v1202 = vunpack.c.l.b16 %v914
      %v1203 = vunpack.c.l.b16 %v915
      %v1204 = vunpack.c.l.b16 %v916
      %v1205 = vunpack.c.l.b16 %v917
      %v1206 = vunpack.c.l.b16 %v918
      %v1207 = vunpack.c.l.b16 %v919
      %v1208 = vunpack.c.l.b16 %v920
      %v1209 = vunpack.c.l.b16 %v921
      %v1210 = vunpack.c.l.b16 %v922
      %v1211 = vunpack.c.l.b16 %v923
      %v1212 = vunpack.c.l.b16 %v924
      %v1213 = vunpack.c.l.b16 %v925
      %v1214 = vunpack.c.l.b16 %v926
      %v1215 = vunpack.c.l.b16 %v927
      %v1216 = vunpack.c.l.b16 %v928
      %v1217 = vunpack.c.l.b16 %v929
      %v1218 = vunpack.c.l.b16 %v930
      %v1219 = vunpack.c.l.b16 %v931
      %v1220 = vunpack.c.l.b16 %v932
      %v1221 = vunpack.c.l.b16 %v933
      %v1222 = vunpack.c.l.b16 %v934
      %v1223 = vunpack.c.l.b16 %v935
      %v1224 = vunpack.c.l.b16 %v936
      %v1225 = vunpack.c.l.b16 %v937
      %v1226 = vunpack.c.l.b16 %v938
      %v1227 = vunpack.c.l.b16 %v939
      %v1228 = vunpack.c.l.b16 %v940
      %v1229 = vunpack.c.l.b16 %v941
      %v1230 = vunpack.c.l.b16 %v942
      %v1231 = vunpack.c.l.b16 %v943
      %v1232 = vunpack.c.l.b16 %v944
      %v1233 = vpack.c.b16 %v1090, %v1089
      %v1234 = vpack.c.b16 %v1092, %v1091
      %v1235 = vpack.c.b16 %v1094, %v1093
      %v1236 = vpack.c.b16 %v1096, %v1095
      %v1237 = vpack.c.b16 %v1098, %v1097
      %v1238 = vpack.c.b16 %v1100, %v1099
      %v1239 = vpack.c.b16 %v1102, %v1101
      %v1240 = vpack.c.b16 %v1104, %v1103
      %v1241 = vpack.c.b16 %v1106, %v1105
      %v1242 = vpack.c.b16 %v1108, %v1107
      %v1243 = vpack.c.b16 %v1110, %v1109
      %v1244 = vpack.c.b16 %v1112, %v1111
      %v1245 = vpack.c.b16 %v1114, %v1113
      %v1246 = vpack.c.b16 %v1116, %v1115
      %v1247 = vpack.c.b16 %v1118, %v1117
      %v1248 = vpack.c.b16 %v1120, %v1119
      %v1249 = vpack.c.b16 %v1122, %v1121
      %v1250 = vpack.c.b16 %v1124, %v1123
      %v1251 = vpack.c.b16 %v1126, %v1125
      %v1252 = vpack.c.b16 %v1128, %v1127
      %v1253 = vpack.c.b16 %v1130, %v1129
      %v1254 = vpack.c.b16 %v1132, %v1131
      %v1255 = vpack.c.b16 %v1134, %v1133
      %v1256 = vpack.c.b16 %v1136, %v1135
      %v1257 = vpack.c.b16 %v1138, %v1137
      %v1258 = vpack.c.b16 %v1140, %v1139
      %v1259 = vpack.c.b16 %v1142, %v1141
      %v1260 = vpack.c.b16 %v1144, %v1143
      %v1261 = vpack.c.b16 %v1146, %v1145
      %v1262 = vpack.c.b16 %v1148, %v1147
      %v1263 = vpack.c.b16 %v1150, %v1149
      %v1264 = vpack.c.b16 %v1152, %v1151
      %v1265 = vpack.c.b16 %v1154, %v1153
      %v1266 = vpack.c.b16 %v1156, %v1155
      %v1267 = vpack.c.b16 %v1158, %v1157
      %v1268 = vpack.c.b16 %v1160, %v1159
      %v1269 = vpack.c.b16 %v1162, %v1161
      %v1270 = vpack.c.b16 %v1164, %v1163
      %v1271 = vpack.c.b16 %v1166, %v1165
      %v1272 = vpack.c.b16 %v1168, %v1167
      %v1273 = vpack.c.b16 %v1170, %v1169
      %v1274 = vpack.c.b16 %v1172, %v1171
      %v1275 = vpack.c.b16 %v1174, %v1173
      %v1276 = vpack.c.b16 %v1176, %v1175
      %v1277 = vpack.c.b16 %v1178, %v1177
      %v1278 = vpack.c.b16 %v1180, %v1179
      %v1279 = vpack.c.b16 %v1182, %v1181
      %v1280 = vpack.c.b16 %v1184, %v1183
      %v1281 = vpack.c.b16 %v1186, %v1185
      %v1282 = vpack.c.b16 %v1188, %v1187
      %v1283 = vpack.c.b16 %v1190, %v1189
      %v1284 = vpack.c.b16 %v1192, %v1191
      %v1285 = vpack.c.b16 %v1194, %v1193
      %v1286 = vpack.c.b16 %v1196, %v1195
      %v1287 = vpack.c.b16 %v1198, %v1197
      %v1288 = vpack.c.b16 %v1200, %v1199
      %v1289 = vpack.c.b16 %v1202, %v1201
      %v1290 = vpack.c.b16 %v1204, %v1203
      %v1291 = vpack.c.b16 %v1206, %v1205
      %v1292 = vpack.c.b16 %v1208, %v1207
      %v1293 = vpack.c.b16 %v1210, %v1209
      %v1294 = vpack.c.b16 %v1212, %v1211
      %v1295 = vpack.c.b16 %v1214, %v1213
      %v1296 = vpack.c.b16 %v1216, %v1215
      %v1297 = vpack.c.b16 %v1218, %v1217
      %v1298 = vpack.c.b16 %v1220, %v1219
      %v1299 = vpack.c.b16 %v1222, %v1221
      %v1300 = vpack.c.b16 %v1224, %v1223
      %v1301 = vpack.c.b16 %v1226, %v1225
      %v1302 = vpack.c.b16 %v1228, %v1227
      %v1303 = vpack.c.b16 %v1230, %v1229
      %v1304 = vpack.c.b16 %v1232, %v1231
      %1377 = vmatpush.bf16.msra.mxu0 %v1240
      %1378 = vmatpush.bf16.msra.mxu0 %v1239
      %1379 = vmatpush.bf16.msra.mxu0 %v1238
      %1380 = vmatpush.bf16.msra.mxu0 %v1237
      %1381 = vmatpush.bf16.msra.mxu0 %v1236
      %1382 = vmatpush.bf16.msra.mxu0 %v1235
      %1383 = vmatpush.bf16.msra.mxu0 %v1234
      %1384 = vmatpush.bf16.msra.mxu0 %v1233
      %1385 = vmatmul.bf16.gmra.mxu0 %v673
      %v1386 = vpop.f32.mrf.mxu0
      %v1387 = vadd.f32 0.0, %v1386
      %v1388 = vpop.f32.mrf.mxu0
      %v1389 = vadd.f32 0.0, %v1388
      %1390 = vmatmul.bf16.gmra.mxu0 %v674
      %v1391 = vpop.f32.mrf.mxu0
      %v1392 = vadd.f32 0.0, %v1391
      %v1393 = vpop.f32.mrf.mxu0
      %v1394 = vadd.f32 0.0, %v1393
      %1395 = vmatmul.bf16.gmra.mxu0 %v675
      %v1396 = vpop.f32.mrf.mxu0
      %v1397 = vadd.f32 0.0, %v1396
      %v1398 = vpop.f32.mrf.mxu0
      %v1399 = vadd.f32 0.0, %v1398
      %1400 = vmatmul.bf16.gmra.mxu0 %v676
      %v1401 = vpop.f32.mrf.mxu0
      %v1402 = vadd.f32 0.0, %v1401
      %v1403 = vpop.f32.mrf.mxu0
      %v1404 = vadd.f32 0.0, %v1403
      %1405 = vdwg.mxu0
      %1406 = vmatpush.bf16.msra.mxu0 %v1248
      %1407 = vmatpush.bf16.msra.mxu0 %v1247
      %1408 = vmatpush.bf16.msra.mxu0 %v1246
      %1409 = vmatpush.bf16.msra.mxu0 %v1245
      %1410 = vmatpush.bf16.msra.mxu0 %v1244
      %1411 = vmatpush.bf16.msra.mxu0 %v1243
      %1412 = vmatpush.bf16.msra.mxu0 %v1242
      %1413 = vmatpush.bf16.msra.mxu0 %v1241
      %1414 = vmatmul.bf16.gmra.mxu0 %v697
      %v1415 = vpop.f32.mrf.mxu0
      %v1416 = vadd.f32 %v1387, %v1415
      %v1417 = vpop.f32.mrf.mxu0
      %v1418 = vadd.f32 %v1389, %v1417
      %1419 = vmatmul.bf16.gmra.mxu0 %v709
      %v1420 = vpop.f32.mrf.mxu0
      %v1421 = vadd.f32 %v1392, %v1420
      %v1422 = vpop.f32.mrf.mxu0
      %v1423 = vadd.f32 %v1394, %v1422
      %1424 = vmatmul.bf16.gmra.mxu0 %v721
      %v1425 = vpop.f32.mrf.mxu0
      %v1426 = vadd.f32 %v1397, %v1425
      %v1427 = vpop.f32.mrf.mxu0
      %v1428 = vadd.f32 %v1399, %v1427
      %1429 = vmatmul.bf16.gmra.mxu0 %v733
      %v1430 = vpop.f32.mrf.mxu0
      %v1431 = vadd.f32 %v1402, %v1430
      %v1432 = vpop.f32.mrf.mxu0
      %v1433 = vadd.f32 %v1404, %v1432
      %1434 = vdwg.mxu0
      %1435 = vmatpush.bf16.msra.mxu0 %v1256
      %1436 = vmatpush.bf16.msra.mxu0 %v1255
      %1437 = vmatpush.bf16.msra.mxu0 %v1254
      %1438 = vmatpush.bf16.msra.mxu0 %v1253
      %1439 = vmatpush.bf16.msra.mxu0 %v1252
      %1440 = vmatpush.bf16.msra.mxu0 %v1251
      %1441 = vmatpush.bf16.msra.mxu0 %v1250
      %1442 = vmatpush.bf16.msra.mxu0 %v1249
      %1443 = vmatmul.bf16.gmra.mxu0 %v749
      %v1444 = vpop.f32.mrf.mxu0
      %v1445 = vadd.f32 %v1416, %v1444
      %v1446 = vpop.f32.mrf.mxu0
      %v1447 = vadd.f32 %v1418, %v1446
      %1448 = vmatmul.bf16.gmra.mxu0 %v752
      %v1449 = vpop.f32.mrf.mxu0
      %v1450 = vadd.f32 %v1421, %v1449
      %v1451 = vpop.f32.mrf.mxu0
      %v1452 = vadd.f32 %v1423, %v1451
      %1453 = vmatmul.bf16.gmra.mxu0 %v755
      %v1454 = vpop.f32.mrf.mxu0
      %v1455 = vadd.f32 %v1426, %v1454
      %v1456 = vpop.f32.mrf.mxu0
      %v1457 = vadd.f32 %v1428, %v1456
      %1458 = vmatmul.bf16.gmra.mxu0 %v758
      %v1459 = vpop.f32.mrf.mxu0
      %v1460 = vadd.f32 %v1431, %v1459
      %v1461 = vpop.f32.mrf.mxu0
      %v1462 = vadd.f32 %v1433, %v1461
      %1463 = vdwg.mxu0
      %1464 = vmatpush.bf16.msra.mxu0 %v1264
      %1465 = vmatpush.bf16.msra.mxu0 %v1263
      %1466 = vmatpush.bf16.msra.mxu0 %v1262
      %1467 = vmatpush.bf16.msra.mxu0 %v1261
      %1468 = vmatpush.bf16.msra.mxu0 %v1260
      %1469 = vmatpush.bf16.msra.mxu0 %v1259
      %1470 = vmatpush.bf16.msra.mxu0 %v1258
      %1471 = vmatpush.bf16.msra.mxu0 %v1257
      %1472 = vmatmul.bf16.gmra.mxu0 %v674
      %v1473 = vpop.f32.mrf.mxu0
      %v1474 = vadd.f32 %v1445, %v1473
      %v1475 = vpop.f32.mrf.mxu0
      %v1476 = vadd.f32 %v1447, %v1475
      %1477 = vmatmul.bf16.gmra.mxu0 %v675
      %v1478 = vpop.f32.mrf.mxu0
      %v1479 = vadd.f32 %v1450, %v1478
      %v1480 = vpop.f32.mrf.mxu0
      %v1481 = vadd.f32 %v1452, %v1480
      %1482 = vmatmul.bf16.gmra.mxu0 %v676
      %v1483 = vpop.f32.mrf.mxu0
      %v1484 = vadd.f32 %v1455, %v1483
      %v1485 = vpop.f32.mrf.mxu0
      %v1486 = vadd.f32 %v1457, %v1485
      %1487 = vmatmul.bf16.gmra.mxu0 %v677
      %v1488 = vpop.f32.mrf.mxu0
      %v1489 = vadd.f32 %v1460, %v1488
      %v1490 = vpop.f32.mrf.mxu0
      %v1491 = vadd.f32 %v1462, %v1490
      %1492 = vdwg.mxu0
      %1493 = vmatpush.bf16.msra.mxu0 %v1272
      %1494 = vmatpush.bf16.msra.mxu0 %v1271
      %1495 = vmatpush.bf16.msra.mxu0 %v1270
      %1496 = vmatpush.bf16.msra.mxu0 %v1269
      %1497 = vmatpush.bf16.msra.mxu0 %v1268
      %1498 = vmatpush.bf16.msra.mxu0 %v1267
      %1499 = vmatpush.bf16.msra.mxu0 %v1266
      %1500 = vmatpush.bf16.msra.mxu0 %v1265
      %1501 = vmatmul.bf16.gmra.mxu0 %v709
      %v1502 = vpop.f32.mrf.mxu0
      %v1503 = vadd.f32 %v1474, %v1502
      %v1504 = vpop.f32.mrf.mxu0
      %v1505 = vadd.f32 %v1476, %v1504
      %1506 = vmatmul.bf16.gmra.mxu0 %v721
      %v1507 = vpop.f32.mrf.mxu0
      %v1508 = vadd.f32 %v1479, %v1507
      %v1509 = vpop.f32.mrf.mxu0
      %v1510 = vadd.f32 %v1481, %v1509
      %1511 = vmatmul.bf16.gmra.mxu0 %v733
      %v1512 = vpop.f32.mrf.mxu0
      %v1513 = vadd.f32 %v1484, %v1512
      %v1514 = vpop.f32.mrf.mxu0
      %v1515 = vadd.f32 %v1486, %v1514
      %1516 = vmatmul.bf16.gmra.mxu0 %v774
      %v1517 = vpop.f32.mrf.mxu0
      %v1518 = vadd.f32 %v1489, %v1517
      %v1519 = vpop.f32.mrf.mxu0
      %v1520 = vadd.f32 %v1491, %v1519
      %1521 = vdwg.mxu0
      %1522 = vmatpush.bf16.msra.mxu0 %v1280
      %1523 = vmatpush.bf16.msra.mxu0 %v1279
      %1524 = vmatpush.bf16.msra.mxu0 %v1278
      %1525 = vmatpush.bf16.msra.mxu0 %v1277
      %1526 = vmatpush.bf16.msra.mxu0 %v1276
      %1527 = vmatpush.bf16.msra.mxu0 %v1275
      %1528 = vmatpush.bf16.msra.mxu0 %v1274
      %1529 = vmatpush.bf16.msra.mxu0 %v1273
      %1530 = vmatmul.bf16.gmra.mxu0 %v752
      %v1531 = vpop.f32.mrf.mxu0
      %v1532 = vadd.f32 %v1503, %v1531
      %v1533 = vpop.f32.mrf.mxu0
      %v1534 = vadd.f32 %v1505, %v1533
      %1535 = vmatmul.bf16.gmra.mxu0 %v755
      %v1536 = vpop.f32.mrf.mxu0
      %v1537 = vadd.f32 %v1508, %v1536
      %v1538 = vpop.f32.mrf.mxu0
      %v1539 = vadd.f32 %v1510, %v1538
      %1540 = vmatmul.bf16.gmra.mxu0 %v758
      %v1541 = vpop.f32.mrf.mxu0
      %v1542 = vadd.f32 %v1513, %v1541
      %v1543 = vpop.f32.mrf.mxu0
      %v1544 = vadd.f32 %v1515, %v1543
      %1545 = vmatmul.bf16.gmra.mxu0 %v780
      %v1546 = vpop.f32.mrf.mxu0
      %v1547 = vadd.f32 %v1518, %v1546
      %v1548 = vpop.f32.mrf.mxu0
      %v1549 = vadd.f32 %v1520, %v1548
      %1550 = vdwg.mxu0
      %1551 = vmatpush.bf16.msra.mxu0 %v1288
      %1552 = vmatpush.bf16.msra.mxu0 %v1287
      %1553 = vmatpush.bf16.msra.mxu0 %v1286
      %1554 = vmatpush.bf16.msra.mxu0 %v1285
      %1555 = vmatpush.bf16.msra.mxu0 %v1284
      %1556 = vmatpush.bf16.msra.mxu0 %v1283
      %1557 = vmatpush.bf16.msra.mxu0 %v1282
      %1558 = vmatpush.bf16.msra.mxu0 %v1281
      %1559 = vmatmul.bf16.gmra.mxu0 %v675
      %v1560 = vpop.f32.mrf.mxu0
      %v1561 = vadd.f32 %v1532, %v1560
      %v1562 = vpop.f32.mrf.mxu0
      %v1563 = vadd.f32 %v1534, %v1562
      %1564 = vmatmul.bf16.gmra.mxu0 %v676
      %v1565 = vpop.f32.mrf.mxu0
      %v1566 = vadd.f32 %v1537, %v1565
      %v1567 = vpop.f32.mrf.mxu0
      %v1568 = vadd.f32 %v1539, %v1567
      %1569 = vmatmul.bf16.gmra.mxu0 %v677
      %v1570 = vpop.f32.mrf.mxu0
      %v1571 = vadd.f32 %v1542, %v1570
      %v1572 = vpop.f32.mrf.mxu0
      %v1573 = vadd.f32 %v1544, %v1572
      %1574 = vmatmul.bf16.gmra.mxu0 %v678
      %v1575 = vpop.f32.mrf.mxu0
      %v1576 = vadd.f32 %v1547, %v1575
      %v1577 = vpop.f32.mrf.mxu0
      %v1578 = vadd.f32 %v1549, %v1577
      %1579 = vdwg.mxu0
      %1580 = vmatpush.bf16.msra.mxu0 %v1296
      %1581 = vmatpush.bf16.msra.mxu0 %v1295
      %1582 = vmatpush.bf16.msra.mxu0 %v1294
      %1583 = vmatpush.bf16.msra.mxu0 %v1293
      %1584 = vmatpush.bf16.msra.mxu0 %v1292
      %1585 = vmatpush.bf16.msra.mxu0 %v1291
      %1586 = vmatpush.bf16.msra.mxu0 %v1290
      %1587 = vmatpush.bf16.msra.mxu0 %v1289
      %1588 = vmatmul.bf16.gmra.mxu0 %v721
      %v1589 = vpop.f32.mrf.mxu0
      %v1590 = vadd.f32 %v1561, %v1589
      %v1591 = vpop.f32.mrf.mxu0
      %v1592 = vadd.f32 %v1563, %v1591
      %1593 = vmatmul.bf16.gmra.mxu0 %v733
      %v1594 = vpop.f32.mrf.mxu0
      %v1595 = vadd.f32 %v1566, %v1594
      %v1596 = vpop.f32.mrf.mxu0
      %v1597 = vadd.f32 %v1568, %v1596
      %1598 = vmatmul.bf16.gmra.mxu0 %v774
      %v1599 = vpop.f32.mrf.mxu0
      %v1600 = vadd.f32 %v1571, %v1599
      %v1601 = vpop.f32.mrf.mxu0
      %v1602 = vadd.f32 %v1573, %v1601
      %1603 = vmatmul.bf16.gmra.mxu0 %v793
      %v1604 = vpop.f32.mrf.mxu0
      %v1605 = vadd.f32 %v1576, %v1604
      %v1606 = vpop.f32.mrf.mxu0
      %v1607 = vadd.f32 %v1578, %v1606
      %1608 = vdwg.mxu0
      %1609 = vmatpush.bf16.msra.mxu0 %v1304
      %1610 = vmatpush.bf16.msra.mxu0 %v1303
      %1611 = vmatpush.bf16.msra.mxu0 %v1302
      %1612 = vmatpush.bf16.msra.mxu0 %v1301
      %1613 = vmatpush.bf16.msra.mxu0 %v1300
      %1614 = vmatpush.bf16.msra.mxu0 %v1299
      %1615 = vmatpush.bf16.msra.mxu0 %v1298
      %1616 = vmatpush.bf16.msra.mxu0 %v1297
      %1617 = vmatmul.bf16.gmra.mxu0 %v755
      %v1618 = vpop.f32.mrf.mxu0
      %v1619 = vadd.f32 %v1590, %v1618
      %v1620 = vpop.f32.mrf.mxu0
      %v1621 = vadd.f32 %v1592, %v1620
      %1622 = vmatmul.bf16.gmra.mxu0 %v758
      %v1623 = vpop.f32.mrf.mxu0
      %v1624 = vadd.f32 %v1595, %v1623
      %v1625 = vpop.f32.mrf.mxu0
      %v1626 = vadd.f32 %v1597, %v1625
      %1627 = vmatmul.bf16.gmra.mxu0 %v780
      %v1628 = vpop.f32.mrf.mxu0
      %v1629 = vadd.f32 %v1600, %v1628
      %v1630 = vpop.f32.mrf.mxu0
      %v1631 = vadd.f32 %v1602, %v1630
      %1632 = vmatmul.bf16.gmra.mxu0 %v799
      %v1633 = vpop.f32.mrf.mxu0
      %v1634 = vadd.f32 %v1605, %v1633
      %v1635 = vpop.f32.mrf.mxu0
      %v1636 = vadd.f32 %v1607, %v1635
      %1637 = vdwg.mxu0
      %v1638 = vpack.c.bf16 %v1619, %v1619
      %v1639 = vpack.c.bf16 %v1621, %v1621
      %v1640 = vpack.c.bf16 %v1624, %v1624
      %v1641 = vpack.c.bf16 %v1626, %v1626
      %v1642 = vpack.c.bf16 %v1629, %v1629
      %v1643 = vpack.c.bf16 %v1631, %v1631
      %v1644 = vpack.c.bf16 %v1634, %v1634
      %v1645 = vpack.c.bf16 %v1636, %v1636
      %1646 = vst [vmem:[%s198] sm:$0xf] %v1638
      %1647 = vst [vmem:[%s198 + $0x4] sm:$0xf] %v1639
      %1648 = vst [vmem:[%s198 + $0x8] sm:$0xf] %v1640
      %1649 = vst [vmem:[%s198 + $0xc] sm:$0xf] %v1641
      %1650 = vst [vmem:[%s198 + $0x10] sm:$0xf] %v1642
      %1651 = vst [vmem:[%s198 + $0x14] sm:$0xf] %v1643
      %1652 = vst [vmem:[%s198 + $0x18] sm:$0xf] %v1644
      %1653 = vst [vmem:[%s198 + $0x1c] sm:$0xf] %v1645
      %v1654 = vadd.f32 %v1619, %v1621
      %v1655 = vadd.f32 %v1654, %v1624
      %v1656 = vadd.f32 %v1655, %v1626
      %v1657 = vadd.f32 %v1656, %v1629
      %v1658 = vadd.f32 %v1657, %v1631
      %v1659 = vadd.f32 %v1658, %v1634
      %v1660 = vadd.f32 %v1659, %v1636
      %v1661 = vrot.slane %v1660, 4
      %v1662 = vadd.f32 %v1660, %v1661
      %v1663 = vrot.slane %v1662, 2
      %v1664 = vadd.f32 %v1662, %v1663
      %v1665 = vrot.slane %v1664, 1
      %v1666 = vadd.f32 %v1664, %v1665
      %v1667 = vmul.f32 %v1666, 0.015625
      %v1668 = vsub.f32 %v1619, %v1667
      %v1669 = vsub.f32 %v1621, %v1667
      %v1670 = vsub.f32 %v1624, %v1667
      %v1671 = vsub.f32 %v1626, %v1667
      %v1672 = vsub.f32 %v1629, %v1667
      %v1673 = vsub.f32 %v1631, %v1667
      %v1674 = vsub.f32 %v1634, %v1667
      %v1675 = vsub.f32 %v1636, %v1667
      %1676 = vst [vmem:[%s206] sm:$0x1] %v1667
      %v1677 = vmul.f32 %v1668, %v1668
      %v1678 = vmul.f32 %v1669, %v1669
      %v1679 = vmul.f32 %v1670, %v1670
      %v1680 = vmul.f32 %v1671, %v1671
      %v1681 = vmul.f32 %v1672, %v1672
      %v1682 = vmul.f32 %v1673, %v1673
      %v1683 = vmul.f32 %v1674, %v1674
      %v1684 = vmul.f32 %v1675, %v1675
      %v1685 = vadd.f32 %v1677, %v1678
      %v1686 = vadd.f32 %v1685, %v1679
      %v1687 = vadd.f32 %v1686, %v1680
      %v1688 = vadd.f32 %v1687, %v1681
      %v1689 = vadd.f32 %v1688, %v1682
      %v1690 = vadd.f32 %v1689, %v1683
      %v1691 = vadd.f32 %v1690, %v1684
      %v1692 = vrot.slane %v1691, 4
      %v1693 = vadd.f32 %v1691, %v1692
      %v1694 = vrot.slane %v1693, 2
      %v1695 = vadd.f32 %v1693, %v1694
      %v1696 = vrot.slane %v1695, 1
      %v1697 = vadd.f32 %v1695, %v1696
      %1698 = vst [vmem:[%s213] sm:$0x1] %v1697
      %s1699 = smul.u32 4, %s21
      %p1700 = scmp.lt.s32.totalorder %s20, 1
      %s1701 = scalar_select %p1700, %s20, 1
      %p1702 = scmp.lt.s32.totalorder %s1699, 15
      %s1703 = scalar_select %p1702, %s1699, 15
      %s1704 = smul.addr %s1703, 2
      %s1705 = smul.addr %s1701, 32
      %s1706 = sadd.s32 %s1704, %s1705
      %s1707 = smul.addr %s1706, 4
      %s1708 = scalar_lea.vmem %s2, %s1707
      %p1709 = scmp.lt.s32.totalorder %s20, 1
      %s1710 = scalar_select %p1709, %s20, 1
      %p1711 = scmp.lt.s32.totalorder %s21, 3
      %s1712 = scalar_select %p1711, %s21, 3
      %s1713 = smul.addr %s1710, 4
      %s1714 = sadd.s32 %s1712, %s1713
      %s1715 = scalar_lea.vmem %s3, %s1714
      %p1716 = scmp.lt.s32.totalorder %s20, 1
      %s1717 = scalar_select %p1716, %s20, 1
      %p1718 = scmp.lt.s32.totalorder %s21, 3
      %s1719 = scalar_select %p1718, %s21, 3
      %s1720 = smul.addr %s1717, 4
      %s1721 = sadd.s32 %s1719, %s1720
      %s1722 = scalar_lea.vmem %s4, %s1721
      // Predicated region
      $region231: #{_lambda_.3} parent=23 // pred_check
        %p1723 = pneg %p69
      $region232: #{_lambda_.3} parent=23 // pred_check_branch
        %1725 = sbr.rel (%p1723) target = $region234
      $region233: #{_lambda_.3} parent=23 // pred_region
        %s1726 = smul.u32 4, %s21
      $region234: #{_lambda_.3} parent=23 // pred_fallthru
        _
      // Predicated region
      $region235: #{_lambda_.3} parent=23 // pred_check
        %p1727 = pneg %p97
      $region236: #{_lambda_.3} parent=23 // pred_check_branch
        %1729 = sbr.rel (%p1727) target = $region238
      $region237: #{_lambda_.3} parent=23 // pred_region
        _
      $region238: #{_lambda_.3} parent=23 // pred_fallthru
        _
      // Predicated region
      $region239: #{_lambda_.3} parent=23 // pred_check
        %p1730 = pneg %p125
      $region240: #{_lambda_.3} parent=23 // pred_check_branch
        %1732 = sbr.rel (%p1730) target = $region242
      $region241: #{_lambda_.3} parent=23 // pred_region
        _
      $region242: #{_lambda_.3} parent=23 // pred_fallthru
        _
    $region24: #{_lambda_.3} parent=5 // pred_fallthru
      _
    %p1733 = scmp.le.s32.totalorder 2, %s11
    // Predicated region
    $region243: #{_lambda_.3} parent=5 // pred_check
      %p1734 = pneg %p1733
    $region244: #{_lambda_.3} parent=5 // pred_check_branch
      %1736 = sbr.rel (%p1734) target = $region246
    $region245: #{_lambda_.3} parent=5 // pred_region
      %s1737 = ssub.s32 %s11, 2
      // Predicated region
      $region247: #{_lambda_.3} parent=245 // pred_check
        %p1738 = pneg %p75
      $region248: #{_lambda_.3} parent=245 // pred_check_branch
        %1740 = sbr.rel (%p1738) target = $region250
      $region249: #{_lambda_.3} parent=245 // pred_region
        %s1741 = smul.u32 4, %s23
        %p1742 = scmp.lt.s32.totalorder %s22, 1
        %s1743 = scalar_select %p1742, %s22, 1
        %p1744 = scmp.lt.s32.totalorder %s1741, 15
        %s1745 = scalar_select %p1744, %s1741, 15
        %s1746 = smul.addr %s1745, 2
        %s1747 = smul.addr %s1743, 32
        %s1748 = sadd.s32 %s1746, %s1747
        %s1749 = smul.addr %s1748, 4
        %s1750 = scalar_lea.vmem %s2, %s1749
      $region250: #{_lambda_.3} parent=245 // pred_fallthru
        _
      // Predicated region
      $region251: #{_lambda_.3} parent=245 // pred_check
        %p1751 = pneg %p103
      $region252: #{_lambda_.3} parent=245 // pred_check_branch
        %1753 = sbr.rel (%p1751) target = $region254
      $region253: #{_lambda_.3} parent=245 // pred_region
        %p1754 = scmp.lt.s32.totalorder %s22, 1
        %s1755 = scalar_select %p1754, %s22, 1
        %p1756 = scmp.lt.s32.totalorder %s23, 3
        %s1757 = scalar_select %p1756, %s23, 3
        %s1758 = smul.addr %s1755, 4
        %s1759 = sadd.s32 %s1757, %s1758
        %s1760 = scalar_lea.vmem %s3, %s1759
      $region254: #{_lambda_.3} parent=245 // pred_fallthru
        _
      // Predicated region
      $region255: #{_lambda_.3} parent=245 // pred_check
        %p1761 = pneg %p131
      $region256: #{_lambda_.3} parent=245 // pred_check_branch
        %1763 = sbr.rel (%p1761) target = $region258
      $region257: #{_lambda_.3} parent=245 // pred_region
        %p1764 = scmp.lt.s32.totalorder %s22, 1
        %s1765 = scalar_select %p1764, %s22, 1
        %p1766 = scmp.lt.s32.totalorder %s23, 3
        %s1767 = scalar_select %p1766, %s23, 3
        %s1768 = smul.addr %s1765, 4
        %s1769 = sadd.s32 %s1767, %s1768
        %s1770 = scalar_lea.vmem %s4, %s1769
      $region258: #{_lambda_.3} parent=245 // pred_fallthru
        _
    $region246: #{_lambda_.3} parent=5 // pred_fallthru
      _
  $region6: #{_lambda_.3} parent=0 // loop_footer
    %s15 = sadd.s32 1, %s11
  $region7: #{_lambda_.3} parent=0 // loop_footer_branch
    %10 = sbr.rel target = $region3
  $region8: #{_lambda_.3} parent=0 // loop_exit
    _
  %1771 = vsyncmov [#allocation3]
  %s1772 = vpop.sfrf %1771
  %p1773 = scmp.eq.s32.totalorder %s1772, 0
  %p1774 = pneg %p1773
  %1776 = shalt.err (%p1774)
  %s1777 = scalar_lea.sflag [#allocation3], 1
  %1778 = vsyncmov %s1777
  %s1779 = vpop.sfrf %1778
  %p1780 = scmp.eq.s32.totalorder %s1779, 0
  %p1781 = pneg %p1780
  %1783 = shalt.err (%p1781)
  %s1784 = scalar_lea.sflag [#allocation3], 2
  %1785 = vsyncmov %s1784
  %s1786 = vpop.sfrf %1785
  %p1787 = scmp.eq.s32.totalorder %s1786, 0
  %p1788 = pneg %p1787
  %1790 = shalt.err (%p1788)
  %s1791 = scalar_lea.sflag [#allocation3], 3
  %1792 = vsyncmov %s1791
  %s1793 = vpop.sfrf %1792
  %p1794 = scmp.eq.s32.totalorder %s1793, 0
  %p1795 = pneg %p1794
  %1797 = shalt.err (%p1795)
  %s1798 = scalar_lea.sflag [#allocation3], 4
  %1799 = vsyncmov %s1798
  %s1800 = vpop.sfrf %1799
  %p1801 = scmp.eq.s32.totalorder %s1800, 0
  %p1802 = pneg %p1801
  %1804 = shalt.err (%p1802)
  %s1805 = scalar_lea.sflag [#allocation3], 5
  %1806 = vsyncmov %s1805
  %s1807 = vpop.sfrf %1806
  %p1808 = scmp.eq.s32.totalorder %s1807, 0
  %p1809 = pneg %p1808
  %1811 = shalt.err (%p1809)

// kernel: _lambda_.4
$region0: #{_lambda_.4}
  #allocation0 [shape = 'u32[]', space=smem, size = 0x4, offset = 0x4, fixed_abs, tag = 'smem constant byte address 0x4 - core index']
  #allocation1 [shape = 'u32[72,128]{1,0:T(1,128)}', space=vmem, size = 0x9000, scoped, tag = 'internal scratch']
  #allocation2 [shape = 'bf16[2,6,16,128]{3,2,1,0:T(8,128)(2,1)}', space=vmem, size = 0xc000, scoped, tag = 'scratch operand']
  #allocation3 [shape = 's32[6]{0}', space=sflag, size = 0x18, scoped, tag = 'scratch operand']
  #allocation4 [shape = 's32[]', space=sflag, size = 0x4, offset = 0, fixed_abs, tag = 'sflag constant byte address 0x0 - dummy sync flag']
  #allocation5 [shape = 's32[]', space=sflag, size = 0x4, offset = 0, fixed_abs, tag = 'sflag constant byte address 0x0 - dummy sync flag']
  #allocation6 [shape = 's32[]', space=sflag, size = 0x4, offset = 0, fixed_abs, tag = 'sflag constant byte address 0x0 - dummy sync flag']
  #allocation7 [shape = 's32[]', space=sflag, size = 0x4, offset = 0, fixed_abs, tag = 'sflag constant byte address 0x0 - dummy sync flag']
  #allocation8 [shape = 's32[]', space=sflag, size = 0x4, offset = 0, fixed_abs, tag = 'sflag constant byte address 0x0 - dummy sync flag']
  #allocation9 [shape = 's32[]', space=sflag, size = 0x4, offset = 0, fixed_abs, tag = 'sflag constant byte address 0x0 - dummy sync flag']
  %s0 = inlined_call_operand.vmem [shape: bf16[32,16,128], index: 0, kind: input, shape index: {}]
  %s1 = inlined_call_operand.vmem [shape: f32[1,128], index: 1, kind: input, shape index: {}]
  %s2 = inlined_call_operand.vmem [shape: f32[1,128], index: 2, kind: input, shape index: {}]
  %s3 = inlined_call_operand.vmem [shape: bf16[1152,128], index: 3, kind: input, shape index: {}]
  %s4 = inlined_call_operand.vmem [shape: bf16[2,16,16,128], index: 4, kind: output, shape index: {0}]
  %s5 = inlined_call_operand.vmem [shape: f32[2,4,1,128], index: 5, kind: output, shape index: {1}]
  %s6 = inlined_call_operand.vmem [shape: f32[2,4,1,128], index: 6, kind: output, shape index: {2}]
  %7 = xla_tuple %s4, %s5, %s6
  %s8 = sld [smem:[#allocation0]]
  $region267: #{_lambda_.4} parent=0
    _
  %s10 = ssub.s32 1, %s8
  %s11 = scalar_select 0, %s10, %s8
  loop: start=0, step=1, limit=10
  $region2: #{_lambda_.4} parent=0 // loop_pre_header
    _
  $region3: #{_lambda_.4} parent=0 // loop_header
    %s13 = sphi 0, %s17
    %p14 = scmp.ge.s32.totalorder %s13, 10
    %s20 = sphi 0, %s32
    %s21 = sphi 0, %s28
    %s22 = sphi 0, %s20
    %s23 = sphi 0, %s21
    %s24 = sphi 0, %s22
    %s25 = sphi 0, %s23
    %s33 = sphi 0, %s33
    %s35 = sphi 0, %s33
    %s36 = sphi 0, %s35
    %s50 = sphi 0, %s36
    %s54 = sphi 0, %s54
    %s56 = sphi 0, %s54
    %s57 = sphi 0, %s56
    %s71 = sphi 0, %s57
    %s75 = sphi 0, %s75
    %s77 = sphi 0, %s75
    %s78 = sphi 0, %s77
    %s92 = sphi 0, %s78
    %s100 = sphi 0, %s102
    %s103 = sphi 0, %s100
    %s104 = sphi 0, %s103
    %s120 = sphi 0, %s104
    %s128 = sphi 0, %s130
    %s131 = sphi 0, %s128
    %s132 = sphi 0, %s131
    %s148 = sphi 0, %s132
    %s156 = sphi 0, %s158
    %s159 = sphi 0, %s156
    %s160 = sphi 0, %s159
    %s176 = sphi 0, %s160
  $region4: #{_lambda_.4} parent=0 // loop_header_branch
    %16 = sbr.rel (%p14) target = $region8
  $region5: #{_lambda_.4} parent=0 // loop_body
    %s18 = ssub.s32 %s13, 1
    %s19 = ssub.s32 %s13, 2
    %s26 = sadd.s32 1, %s21
    %p27 = scmp.ge.s32.totalorder %s26, 4
    %s28 = scalar_select %p27, 0, %s26
    %s29 = sadd.s32 1, %s20
    %s30 = scalar_select %p27, %s29, %s20
    %p31 = scmp.ge.s32.totalorder %s30, 2
    %s32 = scalar_select %p31, 0, %s30
    %s34 = sadd.s32 %s33, 1
    %p37 = scmp.eq.s32.totalorder %s13, 7
    %p38 = scmp.ne.s32.totalorder %s33, %s35
    %p39 = scmp.eq.s32.totalorder %s13, 0
    %p40 = por %p38, %p39
    %p41 = scmp.ne.s32.totalorder %s33, %s35
    %p42 = scmp.eq.s32.totalorder %s18, 7
    %p43 = por %p41, %p42
    %p44 = scmp.ne.s32.totalorder %s35, %s36
    %p45 = scmp.eq.s32.totalorder %s18, 0
    %p46 = por %p44, %p45
    %p47 = scmp.ne.s32.totalorder %s35, %s36
    %p48 = scmp.eq.s32.totalorder %s19, 7
    %p49 = por %p47, %p48
    %p51 = scmp.ne.s32.totalorder %s36, %s50
    %p52 = scmp.eq.s32.totalorder %s19, 0
    %p53 = por %p51, %p52
    %s55 = sadd.s32 %s54, 1
    %p58 = scmp.eq.s32.totalorder %s13, 7
    %p59 = scmp.ne.s32.totalorder %s54, %s56
    %p60 = scmp.eq.s32.totalorder %s13, 0
    %p61 = por %p59, %p60
    %p62 = scmp.ne.s32.totalorder %s54, %s56
    %p63 = scmp.eq.s32.totalorder %s18, 7
    %p64 = por %p62, %p63
    %p65 = scmp.ne.s32.totalorder %s56, %s57
    %p66 = scmp.eq.s32.totalorder %s18, 0
    %p67 = por %p65, %p66
    %p68 = scmp.ne.s32.totalorder %s56, %s57
    %p69 = scmp.eq.s32.totalorder %s19, 7
    %p70 = por %p68, %p69
    %p72 = scmp.ne.s32.totalorder %s57, %s71
    %p73 = scmp.eq.s32.totalorder %s19, 0
    %p74 = por %p72, %p73
    %s76 = sadd.s32 %s75, 1
    %p79 = scmp.eq.s32.totalorder %s13, 7
    %p80 = scmp.ne.s32.totalorder %s75, %s77
    %p81 = scmp.eq.s32.totalorder %s13, 0
    %p82 = por %p80, %p81
    %p83 = scmp.ne.s32.totalorder %s75, %s77
    %p84 = scmp.eq.s32.totalorder %s18, 7
    %p85 = por %p83, %p84
    %p86 = scmp.ne.s32.totalorder %s77, %s78
    %p87 = scmp.eq.s32.totalorder %s18, 0
    %p88 = por %p86, %p87
    %p89 = scmp.ne.s32.totalorder %s77, %s78
    %p90 = scmp.eq.s32.totalorder %s19, 7
    %p91 = por %p89, %p90
    %p93 = scmp.ne.s32.totalorder %s78, %s92
    %p94 = scmp.eq.s32.totalorder %s19, 0
    %p95 = por %p93, %p94
    %s96 = ssub.s32 %s20, %s32
    %s97 = ssub.s32 %s21, %s28
    %s98 = sor.u32 %s96, %s97
    %p99 = scmp.eq.s32.totalorder %s98, 0
    %s101 = sadd.s32 %s100, 1
    %s102 = scalar_select %p99, %s100, %s101
    %p105 = pneg %p99
    %p106 = scmp.eq.s32.totalorder %s13, 7
    %p107 = por %p105, %p106
    %p108 = scmp.ne.s32.totalorder %s100, %s103
    %p109 = scmp.eq.s32.totalorder %s13, 0
    %p110 = por %p108, %p109
    %p111 = scmp.ne.s32.totalorder %s100, %s103
    %p112 = scmp.eq.s32.totalorder %s18, 7
    %p113 = por %p111, %p112
    %p114 = scmp.ne.s32.totalorder %s103, %s104
    %p115 = scmp.eq.s32.totalorder %s18, 0
    %p116 = por %p114, %p115
    %p117 = scmp.ne.s32.totalorder %s103, %s104
    %p118 = scmp.eq.s32.totalorder %s19, 7
    %p119 = por %p117, %p118
    %p121 = scmp.ne.s32.totalorder %s104, %s120
    %p122 = scmp.eq.s32.totalorder %s19, 0
    %p123 = por %p121, %p122
    %s124 = ssub.s32 %s20, %s32
    %s125 = ssub.s32 %s21, %s28
    %s126 = sor.u32 %s124, %s125
    %p127 = scmp.eq.s32.totalorder %s126, 0
    %s129 = sadd.s32 %s128, 1
    %s130 = scalar_select %p127, %s128, %s129
    %p133 = pneg %p127
    %p134 = scmp.eq.s32.totalorder %s13, 7
    %p135 = por %p133, %p134
    %p136 = scmp.ne.s32.totalorder %s128, %s131
    %p137 = scmp.eq.s32.totalorder %s13, 0
    %p138 = por %p136, %p137
    %p139 = scmp.ne.s32.totalorder %s128, %s131
    %p140 = scmp.eq.s32.totalorder %s18, 7
    %p141 = por %p139, %p140
    %p142 = scmp.ne.s32.totalorder %s131, %s132
    %p143 = scmp.eq.s32.totalorder %s18, 0
    %p144 = por %p142, %p143
    %p145 = scmp.ne.s32.totalorder %s131, %s132
    %p146 = scmp.eq.s32.totalorder %s19, 7
    %p147 = por %p145, %p146
    %p149 = scmp.ne.s32.totalorder %s132, %s148
    %p150 = scmp.eq.s32.totalorder %s19, 0
    %p151 = por %p149, %p150
    %s152 = ssub.s32 %s20, %s32
    %s153 = ssub.s32 %s21, %s28
    %s154 = sor.u32 %s152, %s153
    %p155 = scmp.eq.s32.totalorder %s154, 0
    %s157 = sadd.s32 %s156, 1
    %s158 = scalar_select %p155, %s156, %s157
    %p161 = pneg %p155
    %p162 = scmp.eq.s32.totalorder %s13, 7
    %p163 = por %p161, %p162
    %p164 = scmp.ne.s32.totalorder %s156, %s159
    %p165 = scmp.eq.s32.totalorder %s13, 0
    %p166 = por %p164, %p165
    %p167 = scmp.ne.s32.totalorder %s156, %s159
    %p168 = scmp.eq.s32.totalorder %s18, 7
    %p169 = por %p167, %p168
    %p170 = scmp.ne.s32.totalorder %s159, %s160
    %p171 = scmp.eq.s32.totalorder %s18, 0
    %p172 = por %p170, %p171
    %p173 = scmp.ne.s32.totalorder %s159, %s160
    %p174 = scmp.eq.s32.totalorder %s19, 7
    %p175 = por %p173, %p174
    %p177 = scmp.ne.s32.totalorder %s160, %s176
    %p178 = scmp.eq.s32.totalorder %s19, 0
    %p179 = por %p177, %p178
    %p180 = scmp.le.s32.totalorder 1, %s13
    %p181 = scmp.lt.s32.totalorder %s13, 9
    %p182 = pnand %p180, %p181
    %p183 = pneg %p182
    // Predicated region
    $region9: #{_lambda_.4} parent=5 // pred_check
      _
    $region10: #{_lambda_.4} parent=5 // pred_check_branch
      %185 = sbr.rel (%p182) target = $region12
    $region11: #{_lambda_.4} parent=5 // pred_region
      %s186 = ssub.s32 %s13, 1
      // Predicated region
      $region13: #{_lambda_.4} parent=11 // pred_check
        %p187 = pneg %p46
      $region14: #{_lambda_.4} parent=11 // pred_check_branch
        %189 = sbr.rel (%p187) target = $region16
      $region15: #{_lambda_.4} parent=11 // pred_region
        _
      $region16: #{_lambda_.4} parent=11 // pred_fallthru
        _
      // Predicated region
      $region17: #{_lambda_.4} parent=11 // pred_check
        %p190 = pneg %p67
      $region18: #{_lambda_.4} parent=11 // pred_check_branch
        %192 = sbr.rel (%p190) target = $region20
      $region19: #{_lambda_.4} parent=11 // pred_region
        _
      $region20: #{_lambda_.4} parent=11 // pred_fallthru
        _
      // Predicated region
      $region21: #{_lambda_.4} parent=11 // pred_check
        %p193 = pneg %p88
      $region22: #{_lambda_.4} parent=11 // pred_check_branch
        %195 = sbr.rel (%p193) target = $region24
      $region23: #{_lambda_.4} parent=11 // pred_region
        _
      $region24: #{_lambda_.4} parent=11 // pred_fallthru
        _
    $region12: #{_lambda_.4} parent=5 // pred_fallthru
      _
    %p196 = scmp.lt.s32.totalorder %s13, 8
    // Predicated region
    $region25: #{_lambda_.4} parent=5 // pred_check
      %p197 = pneg %p196
    $region26: #{_lambda_.4} parent=5 // pred_check_branch
      %199 = sbr.rel (%p197) target = $region28
    $region27: #{_lambda_.4} parent=5 // pred_region
      _
    $region28: #{_lambda_.4} parent=5 // pred_fallthru
      _
    %p200 = scmp.le.s32.totalorder 1, %s13
    %p201 = scmp.lt.s32.totalorder %s13, 9
    %p202 = pnand %p200, %p201
    %p203 = pneg %p202
    // Predicated region
    $region29: #{_lambda_.4} parent=5 // pred_check
      _
    $region30: #{_lambda_.4} parent=5 // pred_check_branch
      %205 = sbr.rel (%p202) target = $region32
    $region31: #{_lambda_.4} parent=5 // pred_region
      %s206 = ssub.s32 %s13, 1
      %p207 = pneg %p46
      %p208 = pneg %p43
      %p209 = pneg %p67
      %p210 = pneg %p64
      %p211 = pneg %p88
      %p212 = pneg %p85
      %p213 = pneg %p116
      %p214 = pneg %p113
      %s215 = smul.u32 4, %s23
      %p216 = scmp.lt.s32.totalorder %s22, 1
      %s217 = scalar_select %p216, %s22, 1
      %p218 = scmp.lt.s32.totalorder %s215, 15
      %s219 = scalar_select %p218, %s215, 15
      %s220 = smul.addr %s219, 2
      %s221 = smul.addr %s217, 32
      %s222 = sadd.s32 %s220, %s221
      %s223 = smul.addr %s222, 4
      %s224 = scalar_lea.vmem %s4, %s223
      %p225 = pneg %p144
      %p226 = pneg %p141
      %p227 = scmp.lt.s32.totalorder %s22, 1
      %s228 = scalar_select %p227, %s22, 1
      %p229 = scmp.lt.s32.totalorder %s23, 3
      %s230 = scalar_select %p229, %s23, 3
      %s231 = smul.addr %s228, 4
      %s232 = sadd.s32 %s230, %s231
      %s233 = scalar_lea.vmem %s5, %s232
      %p234 = pneg %p172
      %p235 = pneg %p169
      %p236 = scmp.lt.s32.totalorder %s22, 1
      %s237 = scalar_select %p236, %s22, 1
      %p238 = scmp.lt.s32.totalorder %s23, 3
      %s239 = scalar_select %p238, %s23, 3
      %s240 = smul.addr %s237, 4
      %s241 = sadd.s32 %s239, %s240
      %s242 = scalar_lea.vmem %s6, %s241
      %s243 = smul.u32 4, %s23
      %p244 = scmp.lt.s32.totalorder %s22, 1
      %s245 = scalar_select %p244, %s22, 1
      %p246 = scmp.lt.s32.totalorder %s243, 15
      %s247 = scalar_select %p246, %s243, 15
      %s248 = smul.addr %s247, 2
      %s249 = smul.addr %s245, 32
      %s250 = sadd.s32 %s248, %s249
      %s251 = smul.addr %s250, 4
      %s252 = scalar_lea.vmem %s4, %s251
      %s253 = smul.u32 4, %s23
      %p254 = scmp.lt.s32.totalorder %s22, 1
      %s255 = scalar_select %p254, %s22, 1
      %p256 = scmp.lt.s32.totalorder %s23, 3
      %s257 = scalar_select %p256, %s23, 3
      %s258 = smul.addr %s255, 4
      %s259 = sadd.s32 %s257, %s258
      %s260 = scalar_lea.vmem %s5, %s259
      %p261 = scmp.lt.s32.totalorder %s22, 1
      %s262 = scalar_select %p261, %s22, 1
      %p263 = scmp.lt.s32.totalorder %s23, 3
      %s264 = scalar_select %p263, %s23, 3
      %s265 = smul.addr %s262, 4
      %s266 = sadd.s32 %s264, %s265
      %s267 = scalar_lea.vmem %s6, %s266
      %p269 = scmp.lt.s32.totalorder %s23, 0
      %s270 = ssub.s32 0, %s23
      %s271 = scalar_select %p269, %s270, %s23
      %s272 = sand.u32 %s271, 1
      %s273 = ssub.s32 0, %s272
      %s274 = scalar_select %p269, %s273, %s272
      %p275 = scmp.ne.s32.totalorder %s274, 0
      %p276 = scmp.lt.s32.totalorder %s274, 0
      %p277 = pnand %p276, %p275
      %p278 = pneg %p277
      %s279 = sadd.s32 %s274, 2
      %s280 = scalar_select %p278, %s279, %s274
      %p281 = scmp.eq.s32.totalorder %s23, 0
      // Predicated region
      $region33: #{_lambda_.4} parent=31 // pred_check
        %p282 = pneg %p281
      $region34: #{_lambda_.4} parent=31 // pred_check_branch
        %284 = sbr.rel (%p282) target = $region36
      $region35: #{_lambda_.4} parent=31 // pred_region
        %s285 = smul.u32 %s22, 16
        %s286 = smul.u32 %s23, 4
        %s287 = sadd.s32 %s285, %s286
        %s288 = smul.u32 %s287, 2
        %s289 = smul.addr %s288, 4
        %s290 = scalar_lea.vmem %s0, %s289
        %s291 = smul.u32 %s280, 12
        %s292 = sadd.s32 2, %s291
        %s293 = smul.addr %s292, 4
        %s294 = scalar_lea.vmem [#allocation2], %s293
        %s295 = smul.u32 %s280, 3
        %s296 = scalar_lea.sflag [#allocation3], %s295
        // Predicated region
        $region37: #{_lambda_.4} parent=35 // pred_check
          _
        $region38: #{_lambda_.4} parent=35 // pred_check_branch
          %298 = sbr.rel (0) target = $region40
        $region39: #{_lambda_.4} parent=35 // pred_region
          loop: start=0, step=1, limit=1
          $region41: #{_lambda_.4} parent=39 // loop_pre_header
            _
          $region42: #{_lambda_.4} parent=39 // loop_header
            %s300 = sphi 0, %s304
            %p301 = scmp.ge.s32.totalorder %s300, 1
            %s305 = sphi %s290, %s290
            %s306 = sphi %s294, %s294
          $region43: #{_lambda_.4} parent=39 // loop_header_branch
            %303 = sbr.rel (%p301) target = $region47
          $region44: #{_lambda_.4} parent=39 // loop_body
            %v307 = vld [vmem:[%s305] sm:$0xff]
            %308 = vst [vmem:[%s306] sm:$0xff] %v307
            %v309 = vld [vmem:[%s305 + $0x8] sm:$0xff]
            %310 = vst [vmem:[%s306 + $0x8] sm:$0xff] %v309
            %v311 = vld [vmem:[%s305 + $0x10] sm:$0xff]
            %312 = vst [vmem:[%s306 + $0x10] sm:$0xff] %v311
            %v313 = vld [vmem:[%s305 + $0x18] sm:$0xff]
            %314 = vst [vmem:[%s306 + $0x18] sm:$0xff] %v313
          $region45: #{_lambda_.4} parent=39 // loop_footer
            %s304 = sadd.s32 1, %s300
          $region46: #{_lambda_.4} parent=39 // loop_footer_branch
            %299 = sbr.rel target = $region42
          $region47: #{_lambda_.4} parent=39 // loop_exit
            _
        $region40: #{_lambda_.4} parent=35 // pred_fallthru
          _
        // Predicated region
        $region48: #{_lambda_.4} parent=35 // pred_check
          _
        $region49: #{_lambda_.4} parent=35 // pred_check_branch
          %316 = sbr.rel target = $region51
        $region50: #{_lambda_.4} parent=35 // pred_region
          _
        $region51: #{_lambda_.4} parent=35 // pred_fallthru
          _
        // Predicated region
        $region52: #{_lambda_.4} parent=35 // pred_check
          _
        $region53: #{_lambda_.4} parent=35 // pred_check_branch
          %319 = sbr.rel (0) target = $region55
        $region54: #{_lambda_.4} parent=35 // pred_region
          %320 = vsyncadd %s296, 512
        $region55: #{_lambda_.4} parent=35 // pred_fallthru
          _
        %p321 = scmp.gt.s32.totalorder %s23, 0
        // Predicated region
        $region56: #{_lambda_.4} parent=35 // pred_check
          %p322 = pneg %p321
        $region57: #{_lambda_.4} parent=35 // pred_check_branch
          %324 = sbr.rel (%p322) target = $region59
        $region58: #{_lambda_.4} parent=35 // pred_region
          %s325 = ssub.s32 %s287, 1
          %s326 = smul.u32 %s325, 2
          %s327 = smul.addr %s326, 4
          %s328 = scalar_lea.vmem %s0, %s327
          %s329 = smul.addr %s291, 4
          %s330 = scalar_lea.vmem [#allocation2], %s329
          %s331 = sadd.s32 1, %s295
          %s332 = scalar_lea.sflag [#allocation3], %s331
          // Predicated region
          $region60: #{_lambda_.4} parent=58 // pred_check
            _
          $region61: #{_lambda_.4} parent=58 // pred_check_branch
            %334 = sbr.rel (0) target = $region63
          $region62: #{_lambda_.4} parent=58 // pred_region
            // Predicated region
            $region75: #{_lambda_.4} parent=62 // pred_check
              _
            $region76: #{_lambda_.4} parent=62 // pred_check_branch
              %350 = sbr.rel (0) target = $region78
            $region77: #{_lambda_.4} parent=62 // pred_region
              loop: start=0, step=1, limit=1
              $region79: #{_lambda_.4} parent=77 // loop_pre_header
                _
              $region80: #{_lambda_.4} parent=77 // loop_header
                %s352 = sphi 0, %s356
                %p353 = scmp.ge.s32.totalorder %s352, 1
                %s357 = sphi %s328, %s328
                %s358 = sphi %s330, %s330
              $region81: #{_lambda_.4} parent=77 // loop_header_branch
                %355 = sbr.rel (%p353) target = $region85
              $region82: #{_lambda_.4} parent=77 // loop_body
                %v359 = vld [vmem:[%s357] sm:$0xff]
                %360 = vst [vmem:[%s358] sm:$0xff] %v359
              $region83: #{_lambda_.4} parent=77 // loop_footer
                %s356 = sadd.s32 1, %s352
              $region84: #{_lambda_.4} parent=77 // loop_footer_branch
                %351 = sbr.rel target = $region80
              $region85: #{_lambda_.4} parent=77 // loop_exit
                _
            $region78: #{_lambda_.4} parent=62 // pred_fallthru
              _
            // Predicated region
            $region86: #{_lambda_.4} parent=62 // pred_check
              _
            $region87: #{_lambda_.4} parent=62 // pred_check_branch
              %362 = sbr.rel target = $region89
            $region88: #{_lambda_.4} parent=62 // pred_region
              _
            $region89: #{_lambda_.4} parent=62 // pred_fallthru
              _
          $region63: #{_lambda_.4} parent=58 // pred_fallthru
            _
          // Predicated region
          $region64: #{_lambda_.4} parent=58 // pred_check
            _
          $region65: #{_lambda_.4} parent=58 // pred_check_branch
            %336 = sbr.rel target = $region67
          $region66: #{_lambda_.4} parent=58 // pred_region
            %s338 = ssub.s32 256, 1
            loop: start=0, step=1, limit=1
            $region68: #{_lambda_.4} parent=66 // loop_pre_header
              _
            $region69: #{_lambda_.4} parent=66 // loop_header
              %s340 = sphi 0, %s344
              %p341 = scmp.ge.s32.totalorder %s340, 1
              %s345 = sphi %s328, %s328
              %s346 = sphi %s330, %s330
            $region70: #{_lambda_.4} parent=66 // loop_header_branch
              %343 = sbr.rel (%p341) target = $region74
            $region71: #{_lambda_.4} parent=66 // loop_body
              %v347 = vld [vmem:[%s345] sm:%s338]
              %348 = vst [vmem:[%s346] sm:%s338] %v347
            $region72: #{_lambda_.4} parent=66 // loop_footer
              %s344 = sadd.s32 1, %s340
            $region73: #{_lambda_.4} parent=66 // loop_footer_branch
              %339 = sbr.rel target = $region69
            $region74: #{_lambda_.4} parent=66 // loop_exit
              _
          $region67: #{_lambda_.4} parent=58 // pred_fallthru
            _
          // Predicated region
          $region90: #{_lambda_.4} parent=58 // pred_check
            _
          $region91: #{_lambda_.4} parent=58 // pred_check_branch
            %365 = sbr.rel (0) target = $region93
          $region92: #{_lambda_.4} parent=58 // pred_region
            %366 = vsyncadd %s332, 128
          $region93: #{_lambda_.4} parent=58 // pred_fallthru
            _
        $region59: #{_lambda_.4} parent=35 // pred_fallthru
          _
        %p367 = scmp.lt.s32.totalorder %s23, 3
        // Predicated region
        $region94: #{_lambda_.4} parent=35 // pred_check
          %p368 = pneg %p367
        $region95: #{_lambda_.4} parent=35 // pred_check_branch
          %370 = sbr.rel (%p368) target = $region97
        $region96: #{_lambda_.4} parent=35 // pred_region
          %s371 = sadd.s32 %s287, 4
          %s372 = smul.u32 %s371, 2
          %s373 = smul.addr %s372, 4
          %s374 = scalar_lea.vmem %s0, %s373
          %s375 = sadd.s32 10, %s291
          %s376 = smul.addr %s375, 4
          %s377 = scalar_lea.vmem [#allocation2], %s376
          %s378 = sadd.s32 2, %s295
          %s379 = scalar_lea.sflag [#allocation3], %s378
          // Predicated region
          $region98: #{_lambda_.4} parent=96 // pred_check
            _
          $region99: #{_lambda_.4} parent=96 // pred_check_branch
            %381 = sbr.rel (0) target = $region101
          $region100: #{_lambda_.4} parent=96 // pred_region
            // Predicated region
            $region113: #{_lambda_.4} parent=100 // pred_check
              _
            $region114: #{_lambda_.4} parent=100 // pred_check_branch
              %397 = sbr.rel (0) target = $region116
            $region115: #{_lambda_.4} parent=100 // pred_region
              loop: start=0, step=1, limit=1
              $region117: #{_lambda_.4} parent=115 // loop_pre_header
                _
              $region118: #{_lambda_.4} parent=115 // loop_header
                %s399 = sphi 0, %s403
                %p400 = scmp.ge.s32.totalorder %s399, 1
                %s404 = sphi %s374, %s374
                %s405 = sphi %s377, %s377
              $region119: #{_lambda_.4} parent=115 // loop_header_branch
                %402 = sbr.rel (%p400) target = $region123
              $region120: #{_lambda_.4} parent=115 // loop_body
                %v406 = vld [vmem:[%s404] sm:$0xff]
                %407 = vst [vmem:[%s405] sm:$0xff] %v406
              $region121: #{_lambda_.4} parent=115 // loop_footer
                %s403 = sadd.s32 1, %s399
              $region122: #{_lambda_.4} parent=115 // loop_footer_branch
                %398 = sbr.rel target = $region118
              $region123: #{_lambda_.4} parent=115 // loop_exit
                _
            $region116: #{_lambda_.4} parent=100 // pred_fallthru
              _
            // Predicated region
            $region124: #{_lambda_.4} parent=100 // pred_check
              _
            $region125: #{_lambda_.4} parent=100 // pred_check_branch
              %409 = sbr.rel target = $region127
            $region126: #{_lambda_.4} parent=100 // pred_region
              _
            $region127: #{_lambda_.4} parent=100 // pred_fallthru
              _
          $region101: #{_lambda_.4} parent=96 // pred_fallthru
            _
          // Predicated region
          $region102: #{_lambda_.4} parent=96 // pred_check
            _
          $region103: #{_lambda_.4} parent=96 // pred_check_branch
            %383 = sbr.rel target = $region105
          $region104: #{_lambda_.4} parent=96 // pred_region
            %s385 = ssub.s32 256, 1
            loop: start=0, step=1, limit=1
            $region106: #{_lambda_.4} parent=104 // loop_pre_header
              _
            $region107: #{_lambda_.4} parent=104 // loop_header
              %s387 = sphi 0, %s391
              %p388 = scmp.ge.s32.totalorder %s387, 1
              %s392 = sphi %s374, %s374
              %s393 = sphi %s377, %s377
            $region108: #{_lambda_.4} parent=104 // loop_header_branch
              %390 = sbr.rel (%p388) target = $region112
            $region109: #{_lambda_.4} parent=104 // loop_body
              %v394 = vld [vmem:[%s392] sm:%s385]
              %395 = vst [vmem:[%s393] sm:%s385] %v394
            $region110: #{_lambda_.4} parent=104 // loop_footer
              %s391 = sadd.s32 1, %s387
            $region111: #{_lambda_.4} parent=104 // loop_footer_branch
              %386 = sbr.rel target = $region107
            $region112: #{_lambda_.4} parent=104 // loop_exit
              _
          $region105: #{_lambda_.4} parent=96 // pred_fallthru
            _
          // Predicated region
          $region128: #{_lambda_.4} parent=96 // pred_check
            _
          $region129: #{_lambda_.4} parent=96 // pred_check_branch
            %412 = sbr.rel (0) target = $region131
          $region130: #{_lambda_.4} parent=96 // pred_region
            %413 = vsyncadd %s379, 128
          $region131: #{_lambda_.4} parent=96 // pred_fallthru
            _
        $region97: #{_lambda_.4} parent=35 // pred_fallthru
          _
      $region36: #{_lambda_.4} parent=31 // pred_fallthru
        _
      %s414 = sadd.s32 %s23, 1
      %p415 = scmp.lt.s32.totalorder %s414, 4
      // Predicated region
      $region132: #{_lambda_.4} parent=31 // pred_check
        %p416 = pneg %p415
      $region133: #{_lambda_.4} parent=31 // pred_check_branch
        %418 = sbr.rel (%p416) target = $region135
      $region134: #{_lambda_.4} parent=31 // pred_region
        %s419 = ssub.s32 1, %s280
        %s420 = smul.u32 %s22, 16
        %s421 = smul.u32 %s414, 4
        %s422 = sadd.s32 %s420, %s421
        %s423 = smul.u32 %s422, 2
        %s424 = smul.addr %s423, 4
        %s425 = scalar_lea.vmem %s0, %s424
        %s426 = smul.u32 %s419, 12
        %s427 = sadd.s32 2, %s426
        %s428 = smul.addr %s427, 4
        %s429 = scalar_lea.vmem [#allocation2], %s428
        %s430 = smul.u32 %s419, 3
        %s431 = scalar_lea.sflag [#allocation3], %s430
        // Predicated region
        $region136: #{_lambda_.4} parent=134 // pred_check
          _
        $region137: #{_lambda_.4} parent=134 // pred_check_branch
          %433 = sbr.rel (0) target = $region139
        $region138: #{_lambda_.4} parent=134 // pred_region
          loop: start=0, step=1, limit=1
          $region140: #{_lambda_.4} parent=138 // loop_pre_header
            _
          $region141: #{_lambda_.4} parent=138 // loop_header
            %s435 = sphi 0, %s439
            %p436 = scmp.ge.s32.totalorder %s435, 1
            %s440 = sphi %s425, %s425
            %s441 = sphi %s429, %s429
          $region142: #{_lambda_.4} parent=138 // loop_header_branch
            %438 = sbr.rel (%p436) target = $region146
          $region143: #{_lambda_.4} parent=138 // loop_body
            %v442 = vld [vmem:[%s440] sm:$0xff]
            %443 = vst [vmem:[%s441] sm:$0xff] %v442
            %v444 = vld [vmem:[%s440 + $0x8] sm:$0xff]
            %445 = vst [vmem:[%s441 + $0x8] sm:$0xff] %v444
            %v446 = vld [vmem:[%s440 + $0x10] sm:$0xff]
            %447 = vst [vmem:[%s441 + $0x10] sm:$0xff] %v446
            %v448 = vld [vmem:[%s440 + $0x18] sm:$0xff]
            %449 = vst [vmem:[%s441 + $0x18] sm:$0xff] %v448
          $region144: #{_lambda_.4} parent=138 // loop_footer
            %s439 = sadd.s32 1, %s435
          $region145: #{_lambda_.4} parent=138 // loop_footer_branch
            %434 = sbr.rel target = $region141
          $region146: #{_lambda_.4} parent=138 // loop_exit
            _
        $region139: #{_lambda_.4} parent=134 // pred_fallthru
          _
        // Predicated region
        $region147: #{_lambda_.4} parent=134 // pred_check
          _
        $region148: #{_lambda_.4} parent=134 // pred_check_branch
          %451 = sbr.rel target = $region150
        $region149: #{_lambda_.4} parent=134 // pred_region
          _
        $region150: #{_lambda_.4} parent=134 // pred_fallthru
          _
        // Predicated region
        $region151: #{_lambda_.4} parent=134 // pred_check
          _
        $region152: #{_lambda_.4} parent=134 // pred_check_branch
          %454 = sbr.rel (0) target = $region154
        $region153: #{_lambda_.4} parent=134 // pred_region
          %455 = vsyncadd %s431, 512
        $region154: #{_lambda_.4} parent=134 // pred_fallthru
          _
        %p456 = scmp.gt.s32.totalorder %s414, 0
        // Predicated region
        $region155: #{_lambda_.4} parent=134 // pred_check
          %p457 = pneg %p456
        $region156: #{_lambda_.4} parent=134 // pred_check_branch
          %459 = sbr.rel (%p457) target = $region158
        $region157: #{_lambda_.4} parent=134 // pred_region
          %s460 = ssub.s32 %s422, 1
          %s461 = smul.u32 %s460, 2
          %s462 = smul.addr %s461, 4
          %s463 = scalar_lea.vmem %s0, %s462
          %s464 = smul.addr %s426, 4
          %s465 = scalar_lea.vmem [#allocation2], %s464
          %s466 = sadd.s32 1, %s430
          %s467 = scalar_lea.sflag [#allocation3], %s466
          // Predicated region
          $region159: #{_lambda_.4} parent=157 // pred_check
            _
          $region160: #{_lambda_.4} parent=157 // pred_check_branch
            %469 = sbr.rel (0) target = $region162
          $region161: #{_lambda_.4} parent=157 // pred_region
            // Predicated region
            $region174: #{_lambda_.4} parent=161 // pred_check
              _
            $region175: #{_lambda_.4} parent=161 // pred_check_branch
              %485 = sbr.rel (0) target = $region177
            $region176: #{_lambda_.4} parent=161 // pred_region
              loop: start=0, step=1, limit=1
              $region178: #{_lambda_.4} parent=176 // loop_pre_header
                _
              $region179: #{_lambda_.4} parent=176 // loop_header
                %s487 = sphi 0, %s491
                %p488 = scmp.ge.s32.totalorder %s487, 1
                %s492 = sphi %s463, %s463
                %s493 = sphi %s465, %s465
              $region180: #{_lambda_.4} parent=176 // loop_header_branch
                %490 = sbr.rel (%p488) target = $region184
              $region181: #{_lambda_.4} parent=176 // loop_body
                %v494 = vld [vmem:[%s492] sm:$0xff]
                %495 = vst [vmem:[%s493] sm:$0xff] %v494
              $region182: #{_lambda_.4} parent=176 // loop_footer
                %s491 = sadd.s32 1, %s487
              $region183: #{_lambda_.4} parent=176 // loop_footer_branch
                %486 = sbr.rel target = $region179
              $region184: #{_lambda_.4} parent=176 // loop_exit
                _
            $region177: #{_lambda_.4} parent=161 // pred_fallthru
              _
            // Predicated region
            $region185: #{_lambda_.4} parent=161 // pred_check
              _
            $region186: #{_lambda_.4} parent=161 // pred_check_branch
              %497 = sbr.rel target = $region188
            $region187: #{_lambda_.4} parent=161 // pred_region
              _
            $region188: #{_lambda_.4} parent=161 // pred_fallthru
              _
          $region162: #{_lambda_.4} parent=157 // pred_fallthru
            _
          // Predicated region
          $region163: #{_lambda_.4} parent=157 // pred_check
            _
          $region164: #{_lambda_.4} parent=157 // pred_check_branch
            %471 = sbr.rel target = $region166
          $region165: #{_lambda_.4} parent=157 // pred_region
            %s473 = ssub.s32 256, 1
            loop: start=0, step=1, limit=1
            $region167: #{_lambda_.4} parent=165 // loop_pre_header
              _
            $region168: #{_lambda_.4} parent=165 // loop_header
              %s475 = sphi 0, %s479
              %p476 = scmp.ge.s32.totalorder %s475, 1
              %s480 = sphi %s463, %s463
              %s481 = sphi %s465, %s465
            $region169: #{_lambda_.4} parent=165 // loop_header_branch
              %478 = sbr.rel (%p476) target = $region173
            $region170: #{_lambda_.4} parent=165 // loop_body
              %v482 = vld [vmem:[%s480] sm:%s473]
              %483 = vst [vmem:[%s481] sm:%s473] %v482
            $region171: #{_lambda_.4} parent=165 // loop_footer
              %s479 = sadd.s32 1, %s475
            $region172: #{_lambda_.4} parent=165 // loop_footer_branch
              %474 = sbr.rel target = $region168
            $region173: #{_lambda_.4} parent=165 // loop_exit
              _
          $region166: #{_lambda_.4} parent=157 // pred_fallthru
            _
          // Predicated region
          $region189: #{_lambda_.4} parent=157 // pred_check
            _
          $region190: #{_lambda_.4} parent=157 // pred_check_branch
            %500 = sbr.rel (0) target = $region192
          $region191: #{_lambda_.4} parent=157 // pred_region
            %501 = vsyncadd %s467, 128
          $region192: #{_lambda_.4} parent=157 // pred_fallthru
            _
        $region158: #{_lambda_.4} parent=134 // pred_fallthru
          _
        %p502 = scmp.lt.s32.totalorder %s414, 3
        // Predicated region
        $region193: #{_lambda_.4} parent=134 // pred_check
          %p503 = pneg %p502
        $region194: #{_lambda_.4} parent=134 // pred_check_branch
          %505 = sbr.rel (%p503) target = $region196
        $region195: #{_lambda_.4} parent=134 // pred_region
          %s506 = sadd.s32 %s422, 4
          %s507 = smul.u32 %s506, 2
          %s508 = smul.addr %s507, 4
          %s509 = scalar_lea.vmem %s0, %s508
          %s510 = sadd.s32 10, %s426
          %s511 = smul.addr %s510, 4
          %s512 = scalar_lea.vmem [#allocation2], %s511
          %s513 = sadd.s32 2, %s430
          %s514 = scalar_lea.sflag [#allocation3], %s513
          // Predicated region
          $region197: #{_lambda_.4} parent=195 // pred_check
            _
          $region198: #{_lambda_.4} parent=195 // pred_check_branch
            %516 = sbr.rel (0) target = $region200
          $region199: #{_lambda_.4} parent=195 // pred_region
            // Predicated region
            $region212: #{_lambda_.4} parent=199 // pred_check
              _
            $region213: #{_lambda_.4} parent=199 // pred_check_branch
              %532 = sbr.rel (0) target = $region215
            $region214: #{_lambda_.4} parent=199 // pred_region
              loop: start=0, step=1, limit=1
              $region216: #{_lambda_.4} parent=214 // loop_pre_header
                _
              $region217: #{_lambda_.4} parent=214 // loop_header
                %s534 = sphi 0, %s538
                %p535 = scmp.ge.s32.totalorder %s534, 1
                %s539 = sphi %s509, %s509
                %s540 = sphi %s512, %s512
              $region218: #{_lambda_.4} parent=214 // loop_header_branch
                %537 = sbr.rel (%p535) target = $region222
              $region219: #{_lambda_.4} parent=214 // loop_body
                %v541 = vld [vmem:[%s539] sm:$0xff]
                %542 = vst [vmem:[%s540] sm:$0xff] %v541
              $region220: #{_lambda_.4} parent=214 // loop_footer
                %s538 = sadd.s32 1, %s534
              $region221: #{_lambda_.4} parent=214 // loop_footer_branch
                %533 = sbr.rel target = $region217
              $region222: #{_lambda_.4} parent=214 // loop_exit
                _
            $region215: #{_lambda_.4} parent=199 // pred_fallthru
              _
            // Predicated region
            $region223: #{_lambda_.4} parent=199 // pred_check
              _
            $region224: #{_lambda_.4} parent=199 // pred_check_branch
              %544 = sbr.rel target = $region226
            $region225: #{_lambda_.4} parent=199 // pred_region
              _
            $region226: #{_lambda_.4} parent=199 // pred_fallthru
              _
          $region200: #{_lambda_.4} parent=195 // pred_fallthru
            _
          // Predicated region
          $region201: #{_lambda_.4} parent=195 // pred_check
            _
          $region202: #{_lambda_.4} parent=195 // pred_check_branch
            %518 = sbr.rel target = $region204
          $region203: #{_lambda_.4} parent=195 // pred_region
            %s520 = ssub.s32 256, 1
            loop: start=0, step=1, limit=1
            $region205: #{_lambda_.4} parent=203 // loop_pre_header
              _
            $region206: #{_lambda_.4} parent=203 // loop_header
              %s522 = sphi 0, %s526
              %p523 = scmp.ge.s32.totalorder %s522, 1
              %s527 = sphi %s509, %s509
              %s528 = sphi %s512, %s512
            $region207: #{_lambda_.4} parent=203 // loop_header_branch
              %525 = sbr.rel (%p523) target = $region211
            $region208: #{_lambda_.4} parent=203 // loop_body
              %v529 = vld [vmem:[%s527] sm:%s520]
              %530 = vst [vmem:[%s528] sm:%s520] %v529
            $region209: #{_lambda_.4} parent=203 // loop_footer
              %s526 = sadd.s32 1, %s522
            $region210: #{_lambda_.4} parent=203 // loop_footer_branch
              %521 = sbr.rel target = $region206
            $region211: #{_lambda_.4} parent=203 // loop_exit
              _
          $region204: #{_lambda_.4} parent=195 // pred_fallthru
            _
          // Predicated region
          $region227: #{_lambda_.4} parent=195 // pred_check
            _
          $region228: #{_lambda_.4} parent=195 // pred_check_branch
            %547 = sbr.rel (0) target = $region230
          $region229: #{_lambda_.4} parent=195 // pred_region
            %548 = vsyncadd %s514, 128
          $region230: #{_lambda_.4} parent=195 // pred_fallthru
            _
        $region196: #{_lambda_.4} parent=134 // pred_fallthru
          _
      $region135: #{_lambda_.4} parent=31 // pred_fallthru
        _
      %s549 = smul.u32 %s280, 3
      %s550 = scalar_lea.sflag [#allocation3], %s549
      %s551 = smul.u32 4, 4
      %s552 = smul.u32 %s551, 2
      %s553 = smul.u32 %s552, 1
      %s554 = sshll.u32 %s553, 4
      %555 = dma.done %s550, %s554
      %p556 = scmp.gt.s32.totalorder %s23, 0
      // Predicated region
      $region231: #{_lambda_.4} parent=31 // pred_check
        %p557 = pneg %p556
      $region232: #{_lambda_.4} parent=31 // pred_check_branch
        %559 = sbr.rel (%p557) target = $region234
      $region233: #{_lambda_.4} parent=31 // pred_region
        %s560 = sadd.s32 1, %s549
        %s561 = scalar_lea.sflag [#allocation3], %s560
        %s562 = smul.u32 4, 1
        %s563 = smul.u32 %s562, 2
        %s564 = smul.u32 %s563, 1
        %s565 = sshll.u32 %s564, 4
        %566 = dma.done %s561, %s565
      $region234: #{_lambda_.4} parent=31 // pred_fallthru
        _
      %p567 = scmp.lt.s32.totalorder %s23, 3
      // Predicated region
      $region235: #{_lambda_.4} parent=31 // pred_check
        %p568 = pneg %p567
      $region236: #{_lambda_.4} parent=31 // pred_check_branch
        %570 = sbr.rel (%p568) target = $region238
      $region237: #{_lambda_.4} parent=31 // pred_region
        %s571 = sadd.s32 2, %s549
        %s572 = scalar_lea.sflag [#allocation3], %s571
        %s573 = smul.u32 4, 1
        %s574 = smul.u32 %s573, 2
        %s575 = smul.u32 %s574, 1
        %s576 = sshll.u32 %s575, 4
        %577 = dma.done %s572, %s576
      $region238: #{_lambda_.4} parent=31 // pred_fallthru
        _
      %s578 = smul.u32 %s280, 12
      %s579 = smul.addr %s578, 4
      %s580 = scalar_lea.vmem [#allocation2], %s579
      %v581 = vld [vmem:[%s580] sm:$0xf]
      %v582 = vld [vmem:[%s580 + $0x4] sm:$0xf]
      %v583 = vld [vmem:[%s580 + $0x8] sm:$0xf]
      %v584 = vld [vmem:[%s580 + $0xc] sm:$0xf]
      %v585 = vld [vmem:[%s580 + $0x10] sm:$0xf]
      %v586 = vld [vmem:[%s580 + $0x14] sm:$0xf]
      %v587 = vld [vmem:[%s580 + $0x18] sm:$0xf]
      %v588 = vld [vmem:[%s580 + $0x1c] sm:$0xf]
      %v589 = vld [vmem:[%s580 + $0x20] sm:$0xf]
      %v590 = vld [vmem:[%s580 + $0x24] sm:$0xf]
      %v591 = vld [vmem:[%s580 + $0x28] sm:$0xf]
      %v592 = vld [vmem:[%s580 + $0x2c] sm:$0xf]
      %s593 = scalar_select %p281, 1, 0
      %p594 = scmp.eq.s32.totalorder %s23, 3
      %s595 = scalar_select %p594, 4, 5
      %v596 = vstv %s593
      %vm597 = vcmp.le.s32.totalorder %v596, 0
      %vm598 = vcmp.le.s32.totalorder %v596, 1
      %vm599 = vcmp.le.s32.totalorder %v596, 2
      %vm600 = vcmp.le.s32.totalorder %v596, 3
      %vm601 = vcmp.le.s32.totalorder %v596, 4
      %vm602 = vcmp.le.s32.totalorder %v596, 5
      %v603 = vstv %s595
      %vm604 = vcmp.ge.s32.totalorder %v603, 0
      %vm605 = vcmp.ge.s32.totalorder %v603, 1
      %vm606 = vcmp.ge.s32.totalorder %v603, 2
      %vm607 = vcmp.ge.s32.totalorder %v603, 3
      %vm608 = vcmp.ge.s32.totalorder %v603, 4
      %vm609 = vcmp.ge.s32.totalorder %v603, 5
      %vm610 = vmand %vm597, %vm604
      %vm611 = vmand %vm598, %vm605
      %vm612 = vmand %vm599, %vm606
      %vm613 = vmand %vm600, %vm607
      %vm614 = vmand %vm601, %vm608
      %vm615 = vmand %vm602, %vm609
      %v616 = vld [vmem:[%s1] sm:$0x1]
      %v617 = vld [vmem:[%s2] sm:$0x1]
      %v618 = vunpack.c.l.bf16 %v581
      %v619 = vunpack.c.l.bf16 %v582
      %v620 = vunpack.c.l.bf16 %v583
      %v621 = vunpack.c.l.bf16 %v584
      %v622 = vunpack.c.l.bf16 %v585
      %v623 = vunpack.c.l.bf16 %v586
      %v624 = vunpack.c.l.bf16 %v587
      %v625 = vunpack.c.l.bf16 %v588
      %v626 = vunpack.c.l.bf16 %v589
      %v627 = vunpack.c.l.bf16 %v590
      %v628 = vunpack.c.l.bf16 %v591
      %v629 = vunpack.c.l.bf16 %v592
      %v631 = vperm.slane %v616, 0
      %v633 = vmul.f32 %v618, %v631
      %v634 = vmul.f32 %v619, %v631
      %v635 = vmul.f32 %v620, %v631
      %v636 = vmul.f32 %v621, %v631
      %v637 = vmul.f32 %v622, %v631
      %v638 = vmul.f32 %v623, %v631
      %v639 = vmul.f32 %v624, %v631
      %v640 = vmul.f32 %v625, %v631
      %v641 = vmul.f32 %v626, %v631
      %v642 = vmul.f32 %v627, %v631
      %v643 = vmul.f32 %v628, %v631
      %v644 = vmul.f32 %v629, %v631
      %v646 = vperm.slane %v617, 0
      %v648 = vadd.f32 %v633, %v646
      %v649 = vadd.f32 %v634, %v646
      %v650 = vadd.f32 %v635, %v646
      %v651 = vadd.f32 %v636, %v646
      %v652 = vadd.f32 %v637, %v646
      %v653 = vadd.f32 %v638, %v646
      %v654 = vadd.f32 %v639, %v646
      %v655 = vadd.f32 %v640, %v646
      %v656 = vadd.f32 %v641, %v646
      %v657 = vadd.f32 %v642, %v646
      %v658 = vadd.f32 %v643, %v646
      %v659 = vadd.f32 %v644, %v646
      %v660 = vmax.f32 %v648, 0.0
      %v661 = vmax.f32 %v649, 0.0
      %v662 = vmax.f32 %v650, 0.0
      %v663 = vmax.f32 %v651, 0.0
      %v664 = vmax.f32 %v652, 0.0
      %v665 = vmax.f32 %v653, 0.0
      %v666 = vmax.f32 %v654, 0.0
      %v667 = vmax.f32 %v655, 0.0
      %v668 = vmax.f32 %v656, 0.0
      %v669 = vmax.f32 %v657, 0.0
      %v670 = vmax.f32 %v658, 0.0
      %v671 = vmax.f32 %v659, 0.0
      %v672 = vsel %vm610, 1, 0
      %v673 = vsel %vm611, 1, 0
      %v674 = vsel %vm612, 1, 0
      %v675 = vsel %vm613, 1, 0
      %v676 = vsel %vm614, 1, 0
      %v677 = vsel %vm615, 1, 0
      %vm678 = vcmp.eq.s32.totalorder %v672, 1
      %vm679 = vcmp.eq.s32.totalorder %v673, 1
      %vm680 = vcmp.eq.s32.totalorder %v674, 1
      %vm681 = vcmp.eq.s32.totalorder %v675, 1
      %vm682 = vcmp.eq.s32.totalorder %v676, 1
      %vm683 = vcmp.eq.s32.totalorder %v677, 1
      %v684 = vsel %vm678, %v660, 0.0
      %v685 = vsel %vm678, %v661, 0.0
      %v686 = vsel %vm679, %v662, 0.0
      %v687 = vsel %vm679, %v663, 0.0
      %v688 = vsel %vm680, %v664, 0.0
      %v689 = vsel %vm680, %v665, 0.0
      %v690 = vsel %vm681, %v666, 0.0
      %v691 = vsel %vm681, %v667, 0.0
      %v692 = vsel %vm682, %v668, 0.0
      %v693 = vsel %vm682, %v669, 0.0
      %v694 = vsel %vm683, %v670, 0.0
      %v695 = vsel %vm683, %v671, 0.0
      %v696 = vpack.c.bf16 %v684, %v684
      %v697 = vpack.c.bf16 %v685, %v685
      %v698 = vpack.c.bf16 %v686, %v686
      %v699 = vpack.c.bf16 %v687, %v687
      %v700 = vpack.c.bf16 %v688, %v688
      %v701 = vpack.c.bf16 %v689, %v689
      %v702 = vpack.c.bf16 %v690, %v690
      %v703 = vpack.c.bf16 %v691, %v691
      %v704 = vpack.c.bf16 %v692, %v692
      %v705 = vpack.c.bf16 %v693, %v693
      %v706 = vpack.c.bf16 %v694, %v694
      %v707 = vpack.c.bf16 %v695, %v695
      %v720 = vunpack.c.l.b16 %v696
      %v721 = vunpack.c.l.b16 %v697
      %v722 = vunpack.c.l.b16 %v698
      %v723 = vunpack.c.l.b16 %v699
      %v724 = vunpack.c.l.b16 %v700
      %v725 = vunpack.c.l.b16 %v701
      %v726 = vunpack.c.l.b16 %v702
      %v727 = vunpack.c.l.b16 %v703
      %v728 = vunpack.c.l.b16 %v704
      %v729 = vunpack.c.l.b16 %v705
      %v730 = vunpack.c.l.b16 %v706
      %v731 = vunpack.c.l.b16 %v707
      %v732 = vpack.c.b16 %v721, %v720
      %v733 = vpack.c.b16 %v723, %v722
      %v734 = vpack.c.b16 %v725, %v724
      %v735 = vpack.c.b16 %v727, %v726
      %v736 = vpack.c.b16 %v729, %v728
      %v737 = vpack.c.b16 %v731, %v730
      %v739 = vshrl.u32 %v732, 16
      %v741 = vrot.slane %v739, 7
      %v742 = vshll.u32 %v732, 16
      %v744 = vor.u32 %v741, %v742
      %v746 = vshrl.u32 %v733, 16
      %v748 = vrot.slane %v746, 7
      %v749 = vshll.u32 %v733, 16
      %v751 = vor.u32 %v748, %v749
      %v753 = vshrl.u32 %v734, 16
      %v755 = vrot.slane %v753, 7
      %v756 = vshll.u32 %v734, 16
      %v758 = vor.u32 %v755, %v756
      %v760 = vshrl.u32 %v735, 16
      %v762 = vrot.slane %v760, 7
      %v763 = vshll.u32 %v735, 16
      %v765 = vor.u32 %v762, %v763
      %v767 = vshrl.u32 %v736, 16
      %v769 = vrot.slane %v767, 7
      %v770 = vshll.u32 %v736, 16
      %v772 = vor.u32 %v769, %v770
      %v774 = vshrl.u32 %v737, 16
      %v776 = vrot.slane %v774, 7
      %v777 = vshll.u32 %v737, 16
      %v779 = vor.u32 %v776, %v777
      %vm792 = vcmask 1040384
      %vm793 = vsmask.f32 256
      %vm794 = vmand %vm792, %vm793
      %v795 = vsel %vm794, 0, %v744
      %v796 = vsel %vm794, 0, %v751
      %v797 = vsel %vm794, 0, %v758
      %v798 = vsel %vm794, 0, %v765
      %v799 = vsel %vm794, 0, %v772
      %v800 = vsel %vm794, 0, %v779
      %v801 = vsel %vm794, %v741, 0
      %v802 = vsel %vm794, %v748, 0
      %v803 = vsel %vm794, %v755, 0
      %v804 = vsel %vm794, %v762, 0
      %v805 = vsel %vm794, %v769, 0
      %v806 = vsel %vm794, %v776, 0
      %vm807 = vsmask.f32 7424
      %v809 = vshrl.u32 %v795, 16
      %v811 = vshll.u32 %v795, 16
      %v813 = vrot.slane %v811, 1
      %v814 = vor.u32 %v809, %v813
      %v816 = vshll.u32 %v801, 16
      %v818 = vrot.slane %v816, 1
      %v819 = vsel %vm807, %v814, %v818
      %v821 = vshrl.u32 %v796, 16
      %v823 = vshll.u32 %v796, 16
      %v825 = vrot.slane %v823, 1
      %v826 = vor.u32 %v821, %v825
      %v828 = vshll.u32 %v802, 16
      %v830 = vrot.slane %v828, 1
      %v831 = vsel %vm807, %v826, %v830
      %v833 = vshrl.u32 %v797, 16
      %v835 = vshll.u32 %v797, 16
      %v837 = vrot.slane %v835, 1
      %v838 = vor.u32 %v833, %v837
      %v840 = vshll.u32 %v803, 16
      %v842 = vrot.slane %v840, 1
      %v843 = vsel %vm807, %v838, %v842
      %v845 = vshrl.u32 %v798, 16
      %v847 = vshll.u32 %v798, 16
      %v849 = vrot.slane %v847, 1
      %v850 = vor.u32 %v845, %v849
      %v852 = vshll.u32 %v804, 16
      %v854 = vrot.slane %v852, 1
      %v855 = vsel %vm807, %v850, %v854
      %vm868 = vcmask 1046528
      %v869 = vrot.slane %v795, 1
      %v870 = vrot.slane %v801, 1
      %v871 = vsel %vm868, %v869, %v870
      %v872 = vrot.slane %v796, 1
      %v873 = vrot.slane %v802, 1
      %v874 = vsel %vm868, %v872, %v873
      %v875 = vrot.slane %v797, 1
      %v876 = vrot.slane %v803, 1
      %v877 = vsel %vm868, %v875, %v876
      %v878 = vrot.slane %v798, 1
      %v879 = vrot.slane %v804, 1
      %v880 = vsel %vm868, %v878, %v879
      %v886 = vshrl.u32 %v799, 16
      %v888 = vshll.u32 %v799, 16
      %v890 = vrot.slane %v888, 1
      %v891 = vor.u32 %v886, %v890
      %v893 = vshll.u32 %v805, 16
      %v895 = vrot.slane %v893, 1
      %v896 = vsel %vm807, %v891, %v895
      %v900 = vrot.slane %v799, 1
      %v901 = vrot.slane %v805, 1
      %v902 = vsel %vm868, %v900, %v901
      %v905 = vshrl.u32 %v800, 16
      %v907 = vshll.u32 %v800, 16
      %v909 = vrot.slane %v907, 1
      %v910 = vor.u32 %v905, %v909
      %v912 = vshll.u32 %v806, 16
      %v914 = vrot.slane %v912, 1
      %v915 = vsel %vm807, %v910, %v914
      %v919 = vrot.slane %v800, 1
      %v920 = vrot.slane %v806, 1
      %v921 = vsel %vm868, %v919, %v920
      %v923 = vld [vmem:[%s3] sm:$0xf]
      %v924 = vld [vmem:[%s3 + $0x4] sm:$0xf]
      %v925 = vld [vmem:[%s3 + $0x8] sm:$0xf]
      %v926 = vld [vmem:[%s3 + $0xc] sm:$0xf]
      %v927 = vld [vmem:[%s3 + $0x10] sm:$0xf]
      %v928 = vld [vmem:[%s3 + $0x14] sm:$0xf]
      %v929 = vld [vmem:[%s3 + $0x18] sm:$0xf]
      %v930 = vld [vmem:[%s3 + $0x1c] sm:$0xf]
      %v931 = vld [vmem:[%s3 + $0x20] sm:$0xf]
      %v932 = vld [vmem:[%s3 + $0x24] sm:$0xf]
      %v933 = vld [vmem:[%s3 + $0x28] sm:$0xf]
      %v934 = vld [vmem:[%s3 + $0x2c] sm:$0xf]
      %v935 = vld [vmem:[%s3 + $0x30] sm:$0xf]
      %v936 = vld [vmem:[%s3 + $0x34] sm:$0xf]
      %v937 = vld [vmem:[%s3 + $0x38] sm:$0xf]
      %v938 = vld [vmem:[%s3 + $0x3c] sm:$0xf]
      %v939 = vld [vmem:[%s3 + $0x40] sm:$0xf]
      %v940 = vld [vmem:[%s3 + $0x44] sm:$0xf]
      %v941 = vld [vmem:[%s3 + $0x48] sm:$0xf]
      %v942 = vld [vmem:[%s3 + $0x4c] sm:$0xf]
      %v943 = vld [vmem:[%s3 + $0x50] sm:$0xf]
      %v944 = vld [vmem:[%s3 + $0x54] sm:$0xf]
      %v945 = vld [vmem:[%s3 + $0x58] sm:$0xf]
      %v946 = vld [vmem:[%s3 + $0x5c] sm:$0xf]
      %v947 = vld [vmem:[%s3 + $0x60] sm:$0xf]
      %v948 = vld [vmem:[%s3 + $0x64] sm:$0xf]
      %v949 = vld [vmem:[%s3 + $0x68] sm:$0xf]
      %v950 = vld [vmem:[%s3 + $0x6c] sm:$0xf]
      %v951 = vld [vmem:[%s3 + $0x70] sm:$0xf]
      %v952 = vld [vmem:[%s3 + $0x74] sm:$0xf]
      %v953 = vld [vmem:[%s3 + $0x78] sm:$0xf]
      %v954 = vld [vmem:[%s3 + $0x7c] sm:$0xf]
      %v955 = vld [vmem:[%s3 + $0x80] sm:$0xf]
      %v956 = vld [vmem:[%s3 + $0x84] sm:$0xf]
      %v957 = vld [vmem:[%s3 + $0x88] sm:$0xf]
      %v958 = vld [vmem:[%s3 + $0x8c] sm:$0xf]
      %v959 = vld [vmem:[%s3 + $0x90] sm:$0xf]
      %v960 = vld [vmem:[%s3 + $0x94] sm:$0xf]
      %v961 = vld [vmem:[%s3 + $0x98] sm:$0xf]
      %v962 = vld [vmem:[%s3 + $0x9c] sm:$0xf]
      %v963 = vld [vmem:[%s3 + $0xa0] sm:$0xf]
      %v964 = vld [vmem:[%s3 + $0xa4] sm:$0xf]
      %v965 = vld [vmem:[%s3 + $0xa8] sm:$0xf]
      %v966 = vld [vmem:[%s3 + $0xac] sm:$0xf]
      %v967 = vld [vmem:[%s3 + $0xb0] sm:$0xf]
      %v968 = vld [vmem:[%s3 + $0xb4] sm:$0xf]
      %v969 = vld [vmem:[%s3 + $0xb8] sm:$0xf]
      %v970 = vld [vmem:[%s3 + $0xbc] sm:$0xf]
      %v971 = vld [vmem:[%s3 + $0xc0] sm:$0xf]
      %v972 = vld [vmem:[%s3 + $0xc4] sm:$0xf]
      %v973 = vld [vmem:[%s3 + $0xc8] sm:$0xf]
      %v974 = vld [vmem:[%s3 + $0xcc] sm:$0xf]
      %v975 = vld [vmem:[%s3 + $0xd0] sm:$0xf]
      %v976 = vld [vmem:[%s3 + $0xd4] sm:$0xf]
      %v977 = vld [vmem:[%s3 + $0xd8] sm:$0xf]
      %v978 = vld [vmem:[%s3 + $0xdc] sm:$0xf]
      %v979 = vld [vmem:[%s3 + $0xe0] sm:$0xf]
      %v980 = vld [vmem:[%s3 + $0xe4] sm:$0xf]
      %v981 = vld [vmem:[%s3 + $0xe8] sm:$0xf]
      %v982 = vld [vmem:[%s3 + $0xec] sm:$0xf]
      %v983 = vld [vmem:[%s3 + $0xf0] sm:$0xf]
      %v984 = vld [vmem:[%s3 + $0xf4] sm:$0xf]
      %v985 = vld [vmem:[%s3 + $0xf8] sm:$0xf]
      %v986 = vld [vmem:[%s3 + $0xfc] sm:$0xf]
      %v987 = vld [vmem:[%s3 + $0x100] sm:$0xf]
      %v988 = vld [vmem:[%s3 + $0x104] sm:$0xf]
      %v989 = vld [vmem:[%s3 + $0x108] sm:$0xf]
      %v990 = vld [vmem:[%s3 + $0x10c] sm:$0xf]
      %v991 = vld [vmem:[%s3 + $0x110] sm:$0xf]
      %v992 = vld [vmem:[%s3 + $0x114] sm:$0xf]
      %v993 = vld [vmem:[%s3 + $0x118] sm:$0xf]
      %v994 = vld [vmem:[%s3 + $0x11c] sm:$0xf]
      %v995 = vld [vmem:[%s3 + $0x120] sm:$0xf]
      %v996 = vld [vmem:[%s3 + $0x124] sm:$0xf]
      %v997 = vld [vmem:[%s3 + $0x128] sm:$0xf]
      %v998 = vld [vmem:[%s3 + $0x12c] sm:$0xf]
      %v999 = vld [vmem:[%s3 + $0x130] sm:$0xf]
      %v1000 = vld [vmem:[%s3 + $0x134] sm:$0xf]
      %v1001 = vld [vmem:[%s3 + $0x138] sm:$0xf]
      %v1002 = vld [vmem:[%s3 + $0x13c] sm:$0xf]
      %v1003 = vld [vmem:[%s3 + $0x140] sm:$0xf]
      %v1004 = vld [vmem:[%s3 + $0x144] sm:$0xf]
      %v1005 = vld [vmem:[%s3 + $0x148] sm:$0xf]
      %v1006 = vld [vmem:[%s3 + $0x14c] sm:$0xf]
      %v1007 = vld [vmem:[%s3 + $0x150] sm:$0xf]
      %v1008 = vld [vmem:[%s3 + $0x154] sm:$0xf]
      %v1009 = vld [vmem:[%s3 + $0x158] sm:$0xf]
      %v1010 = vld [vmem:[%s3 + $0x15c] sm:$0xf]
      %v1011 = vld [vmem:[%s3 + $0x160] sm:$0xf]
      %v1012 = vld [vmem:[%s3 + $0x164] sm:$0xf]
      %v1013 = vld [vmem:[%s3 + $0x168] sm:$0xf]
      %v1014 = vld [vmem:[%s3 + $0x16c] sm:$0xf]
      %v1015 = vld [vmem:[%s3 + $0x170] sm:$0xf]
      %v1016 = vld [vmem:[%s3 + $0x174] sm:$0xf]
      %v1017 = vld [vmem:[%s3 + $0x178] sm:$0xf]
      %v1018 = vld [vmem:[%s3 + $0x17c] sm:$0xf]
      %v1019 = vld [vmem:[%s3 + $0x180] sm:$0xf]
      %v1020 = vld [vmem:[%s3 + $0x184] sm:$0xf]
      %v1021 = vld [vmem:[%s3 + $0x188] sm:$0xf]
      %v1022 = vld [vmem:[%s3 + $0x18c] sm:$0xf]
      %v1023 = vld [vmem:[%s3 + $0x190] sm:$0xf]
      %v1024 = vld [vmem:[%s3 + $0x194] sm:$0xf]
      %v1025 = vld [vmem:[%s3 + $0x198] sm:$0xf]
      %v1026 = vld [vmem:[%s3 + $0x19c] sm:$0xf]
      %v1027 = vld [vmem:[%s3 + $0x1a0] sm:$0xf]
      %v1028 = vld [vmem:[%s3 + $0x1a4] sm:$0xf]
      %v1029 = vld [vmem:[%s3 + $0x1a8] sm:$0xf]
      %v1030 = vld [vmem:[%s3 + $0x1ac] sm:$0xf]
      %v1031 = vld [vmem:[%s3 + $0x1b0] sm:$0xf]
      %v1032 = vld [vmem:[%s3 + $0x1b4] sm:$0xf]
      %v1033 = vld [vmem:[%s3 + $0x1b8] sm:$0xf]
      %v1034 = vld [vmem:[%s3 + $0x1bc] sm:$0xf]
      %v1035 = vld [vmem:[%s3 + $0x1c0] sm:$0xf]
      %v1036 = vld [vmem:[%s3 + $0x1c4] sm:$0xf]
      %v1037 = vld [vmem:[%s3 + $0x1c8] sm:$0xf]
      %v1038 = vld [vmem:[%s3 + $0x1cc] sm:$0xf]
      %v1039 = vld [vmem:[%s3 + $0x1d0] sm:$0xf]
      %v1040 = vld [vmem:[%s3 + $0x1d4] sm:$0xf]
      %v1041 = vld [vmem:[%s3 + $0x1d8] sm:$0xf]
      %v1042 = vld [vmem:[%s3 + $0x1dc] sm:$0xf]
      %v1043 = vld [vmem:[%s3 + $0x1e0] sm:$0xf]
      %v1044 = vld [vmem:[%s3 + $0x1e4] sm:$0xf]
      %v1045 = vld [vmem:[%s3 + $0x1e8] sm:$0xf]
      %v1046 = vld [vmem:[%s3 + $0x1ec] sm:$0xf]
      %v1047 = vld [vmem:[%s3 + $0x1f0] sm:$0xf]
      %v1048 = vld [vmem:[%s3 + $0x1f4] sm:$0xf]
      %v1049 = vld [vmem:[%s3 + $0x1f8] sm:$0xf]
      %v1050 = vld [vmem:[%s3 + $0x1fc] sm:$0xf]
      %v1051 = vld [vmem:[%s3 + $0x200] sm:$0xf]
      %v1052 = vld [vmem:[%s3 + $0x204] sm:$0xf]
      %v1053 = vld [vmem:[%s3 + $0x208] sm:$0xf]
      %v1054 = vld [vmem:[%s3 + $0x20c] sm:$0xf]
      %v1055 = vld [vmem:[%s3 + $0x210] sm:$0xf]
      %v1056 = vld [vmem:[%s3 + $0x214] sm:$0xf]
      %v1057 = vld [vmem:[%s3 + $0x218] sm:$0xf]
      %v1058 = vld [vmem:[%s3 + $0x21c] sm:$0xf]
      %v1059 = vld [vmem:[%s3 + $0x220] sm:$0xf]
      %v1060 = vld [vmem:[%s3 + $0x224] sm:$0xf]
      %v1061 = vld [vmem:[%s3 + $0x228] sm:$0xf]
      %v1062 = vld [vmem:[%s3 + $0x22c] sm:$0xf]
      %v1063 = vld [vmem:[%s3 + $0x230] sm:$0xf]
      %v1064 = vld [vmem:[%s3 + $0x234] sm:$0xf]
      %v1065 = vld [vmem:[%s3 + $0x238] sm:$0xf]
      %v1066 = vld [vmem:[%s3 + $0x23c] sm:$0xf]
      %v1211 = vunpack.c.l.b16 %v923
      %v1212 = vunpack.c.l.b16 %v924
      %v1213 = vunpack.c.l.b16 %v925
      %v1214 = vunpack.c.l.b16 %v926
      %v1215 = vunpack.c.l.b16 %v927
      %v1216 = vunpack.c.l.b16 %v928
      %v1217 = vunpack.c.l.b16 %v929
      %v1218 = vunpack.c.l.b16 %v930
      %v1219 = vunpack.c.l.b16 %v931
      %v1220 = vunpack.c.l.b16 %v932
      %v1221 = vunpack.c.l.b16 %v933
      %v1222 = vunpack.c.l.b16 %v934
      %v1223 = vunpack.c.l.b16 %v935
      %v1224 = vunpack.c.l.b16 %v936
      %v1225 = vunpack.c.l.b16 %v937
      %v1226 = vunpack.c.l.b16 %v938
      %v1227 = vunpack.c.l.b16 %v939
      %v1228 = vunpack.c.l.b16 %v940
      %v1229 = vunpack.c.l.b16 %v941
      %v1230 = vunpack.c.l.b16 %v942
      %v1231 = vunpack.c.l.b16 %v943
      %v1232 = vunpack.c.l.b16 %v944
      %v1233 = vunpack.c.l.b16 %v945
      %v1234 = vunpack.c.l.b16 %v946
      %v1235 = vunpack.c.l.b16 %v947
      %v1236 = vunpack.c.l.b16 %v948
      %v1237 = vunpack.c.l.b16 %v949
      %v1238 = vunpack.c.l.b16 %v950
      %v1239 = vunpack.c.l.b16 %v951
      %v1240 = vunpack.c.l.b16 %v952
      %v1241 = vunpack.c.l.b16 %v953
      %v1242 = vunpack.c.l.b16 %v954
      %v1243 = vunpack.c.l.b16 %v955
      %v1244 = vunpack.c.l.b16 %v956
      %v1245 = vunpack.c.l.b16 %v957
      %v1246 = vunpack.c.l.b16 %v958
      %v1247 = vunpack.c.l.b16 %v959
      %v1248 = vunpack.c.l.b16 %v960
      %v1249 = vunpack.c.l.b16 %v961
      %v1250 = vunpack.c.l.b16 %v962
      %v1251 = vunpack.c.l.b16 %v963
      %v1252 = vunpack.c.l.b16 %v964
      %v1253 = vunpack.c.l.b16 %v965
      %v1254 = vunpack.c.l.b16 %v966
      %v1255 = vunpack.c.l.b16 %v967
      %v1256 = vunpack.c.l.b16 %v968
      %v1257 = vunpack.c.l.b16 %v969
      %v1258 = vunpack.c.l.b16 %v970
      %v1259 = vunpack.c.l.b16 %v971
      %v1260 = vunpack.c.l.b16 %v972
      %v1261 = vunpack.c.l.b16 %v973
      %v1262 = vunpack.c.l.b16 %v974
      %v1263 = vunpack.c.l.b16 %v975
      %v1264 = vunpack.c.l.b16 %v976
      %v1265 = vunpack.c.l.b16 %v977
      %v1266 = vunpack.c.l.b16 %v978
      %v1267 = vunpack.c.l.b16 %v979
      %v1268 = vunpack.c.l.b16 %v980
      %v1269 = vunpack.c.l.b16 %v981
      %v1270 = vunpack.c.l.b16 %v982
      %v1271 = vunpack.c.l.b16 %v983
      %v1272 = vunpack.c.l.b16 %v984
      %v1273 = vunpack.c.l.b16 %v985
      %v1274 = vunpack.c.l.b16 %v986
      %v1275 = vunpack.c.l.b16 %v987
      %v1276 = vunpack.c.l.b16 %v988
      %v1277 = vunpack.c.l.b16 %v989
      %v1278 = vunpack.c.l.b16 %v990
      %v1279 = vunpack.c.l.b16 %v991
      %v1280 = vunpack.c.l.b16 %v992
      %v1281 = vunpack.c.l.b16 %v993
      %v1282 = vunpack.c.l.b16 %v994
      %v1283 = vunpack.c.l.b16 %v995
      %v1284 = vunpack.c.l.b16 %v996
      %v1285 = vunpack.c.l.b16 %v997
      %v1286 = vunpack.c.l.b16 %v998
      %v1287 = vunpack.c.l.b16 %v999
      %v1288 = vunpack.c.l.b16 %v1000
      %v1289 = vunpack.c.l.b16 %v1001
      %v1290 = vunpack.c.l.b16 %v1002
      %v1291 = vunpack.c.l.b16 %v1003
      %v1292 = vunpack.c.l.b16 %v1004
      %v1293 = vunpack.c.l.b16 %v1005
      %v1294 = vunpack.c.l.b16 %v1006
      %v1295 = vunpack.c.l.b16 %v1007
      %v1296 = vunpack.c.l.b16 %v1008
      %v1297 = vunpack.c.l.b16 %v1009
      %v1298 = vunpack.c.l.b16 %v1010
      %v1299 = vunpack.c.l.b16 %v1011
      %v1300 = vunpack.c.l.b16 %v1012
      %v1301 = vunpack.c.l.b16 %v1013
      %v1302 = vunpack.c.l.b16 %v1014
      %v1303 = vunpack.c.l.b16 %v1015
      %v1304 = vunpack.c.l.b16 %v1016
      %v1305 = vunpack.c.l.b16 %v1017
      %v1306 = vunpack.c.l.b16 %v1018
      %v1307 = vunpack.c.l.b16 %v1019
      %v1308 = vunpack.c.l.b16 %v1020
      %v1309 = vunpack.c.l.b16 %v1021
      %v1310 = vunpack.c.l.b16 %v1022
      %v1311 = vunpack.c.l.b16 %v1023
      %v1312 = vunpack.c.l.b16 %v1024
      %v1313 = vunpack.c.l.b16 %v1025
      %v1314 = vunpack.c.l.b16 %v1026
      %v1315 = vunpack.c.l.b16 %v1027
      %v1316 = vunpack.c.l.b16 %v1028
      %v1317 = vunpack.c.l.b16 %v1029
      %v1318 = vunpack.c.l.b16 %v1030
      %v1319 = vunpack.c.l.b16 %v1031
      %v1320 = vunpack.c.l.b16 %v1032
      %v1321 = vunpack.c.l.b16 %v1033
      %v1322 = vunpack.c.l.b16 %v1034
      %v1323 = vunpack.c.l.b16 %v1035
      %v1324 = vunpack.c.l.b16 %v1036
      %v1325 = vunpack.c.l.b16 %v1037
      %v1326 = vunpack.c.l.b16 %v1038
      %v1327 = vunpack.c.l.b16 %v1039
      %v1328 = vunpack.c.l.b16 %v1040
      %v1329 = vunpack.c.l.b16 %v1041
      %v1330 = vunpack.c.l.b16 %v1042
      %v1331 = vunpack.c.l.b16 %v1043
      %v1332 = vunpack.c.l.b16 %v1044
      %v1333 = vunpack.c.l.b16 %v1045
      %v1334 = vunpack.c.l.b16 %v1046
      %v1335 = vunpack.c.l.b16 %v1047
      %v1336 = vunpack.c.l.b16 %v1048
      %v1337 = vunpack.c.l.b16 %v1049
      %v1338 = vunpack.c.l.b16 %v1050
      %v1339 = vunpack.c.l.b16 %v1051
      %v1340 = vunpack.c.l.b16 %v1052
      %v1341 = vunpack.c.l.b16 %v1053
      %v1342 = vunpack.c.l.b16 %v1054
      %v1343 = vunpack.c.l.b16 %v1055
      %v1344 = vunpack.c.l.b16 %v1056
      %v1345 = vunpack.c.l.b16 %v1057
      %v1346 = vunpack.c.l.b16 %v1058
      %v1347 = vunpack.c.l.b16 %v1059
      %v1348 = vunpack.c.l.b16 %v1060
      %v1349 = vunpack.c.l.b16 %v1061
      %v1350 = vunpack.c.l.b16 %v1062
      %v1351 = vunpack.c.l.b16 %v1063
      %v1352 = vunpack.c.l.b16 %v1064
      %v1353 = vunpack.c.l.b16 %v1065
      %v1354 = vunpack.c.l.b16 %v1066
      %v1355 = vpack.c.b16 %v1212, %v1211
      %v1356 = vpack.c.b16 %v1214, %v1213
      %v1357 = vpack.c.b16 %v1216, %v1215
      %v1358 = vpack.c.b16 %v1218, %v1217
      %v1359 = vpack.c.b16 %v1220, %v1219
      %v1360 = vpack.c.b16 %v1222, %v1221
      %v1361 = vpack.c.b16 %v1224, %v1223
      %v1362 = vpack.c.b16 %v1226, %v1225
      %v1363 = vpack.c.b16 %v1228, %v1227
      %v1364 = vpack.c.b16 %v1230, %v1229
      %v1365 = vpack.c.b16 %v1232, %v1231
      %v1366 = vpack.c.b16 %v1234, %v1233
      %v1367 = vpack.c.b16 %v1236, %v1235
      %v1368 = vpack.c.b16 %v1238, %v1237
      %v1369 = vpack.c.b16 %v1240, %v1239
      %v1370 = vpack.c.b16 %v1242, %v1241
      %v1371 = vpack.c.b16 %v1244, %v1243
      %v1372 = vpack.c.b16 %v1246, %v1245
      %v1373 = vpack.c.b16 %v1248, %v1247
      %v1374 = vpack.c.b16 %v1250, %v1249
      %v1375 = vpack.c.b16 %v1252, %v1251
      %v1376 = vpack.c.b16 %v1254, %v1253
      %v1377 = vpack.c.b16 %v1256, %v1255
      %v1378 = vpack.c.b16 %v1258, %v1257
      %v1379 = vpack.c.b16 %v1260, %v1259
      %v1380 = vpack.c.b16 %v1262, %v1261
      %v1381 = vpack.c.b16 %v1264, %v1263
      %v1382 = vpack.c.b16 %v1266, %v1265
      %v1383 = vpack.c.b16 %v1268, %v1267
      %v1384 = vpack.c.b16 %v1270, %v1269
      %v1385 = vpack.c.b16 %v1272, %v1271
      %v1386 = vpack.c.b16 %v1274, %v1273
      %v1387 = vpack.c.b16 %v1276, %v1275
      %v1388 = vpack.c.b16 %v1278, %v1277
      %v1389 = vpack.c.b16 %v1280, %v1279
      %v1390 = vpack.c.b16 %v1282, %v1281
      %v1391 = vpack.c.b16 %v1284, %v1283
      %v1392 = vpack.c.b16 %v1286, %v1285
      %v1393 = vpack.c.b16 %v1288, %v1287
      %v1394 = vpack.c.b16 %v1290, %v1289
      %v1395 = vpack.c.b16 %v1292, %v1291
      %v1396 = vpack.c.b16 %v1294, %v1293
      %v1397 = vpack.c.b16 %v1296, %v1295
      %v1398 = vpack.c.b16 %v1298, %v1297
      %v1399 = vpack.c.b16 %v1300, %v1299
      %v1400 = vpack.c.b16 %v1302, %v1301
      %v1401 = vpack.c.b16 %v1304, %v1303
      %v1402 = vpack.c.b16 %v1306, %v1305
      %v1403 = vpack.c.b16 %v1308, %v1307
      %v1404 = vpack.c.b16 %v1310, %v1309
      %v1405 = vpack.c.b16 %v1312, %v1311
      %v1406 = vpack.c.b16 %v1314, %v1313
      %v1407 = vpack.c.b16 %v1316, %v1315
      %v1408 = vpack.c.b16 %v1318, %v1317
      %v1409 = vpack.c.b16 %v1320, %v1319
      %v1410 = vpack.c.b16 %v1322, %v1321
      %v1411 = vpack.c.b16 %v1324, %v1323
      %v1412 = vpack.c.b16 %v1326, %v1325
      %v1413 = vpack.c.b16 %v1328, %v1327
      %v1414 = vpack.c.b16 %v1330, %v1329
      %v1415 = vpack.c.b16 %v1332, %v1331
      %v1416 = vpack.c.b16 %v1334, %v1333
      %v1417 = vpack.c.b16 %v1336, %v1335
      %v1418 = vpack.c.b16 %v1338, %v1337
      %v1419 = vpack.c.b16 %v1340, %v1339
      %v1420 = vpack.c.b16 %v1342, %v1341
      %v1421 = vpack.c.b16 %v1344, %v1343
      %v1422 = vpack.c.b16 %v1346, %v1345
      %v1423 = vpack.c.b16 %v1348, %v1347
      %v1424 = vpack.c.b16 %v1350, %v1349
      %v1425 = vpack.c.b16 %v1352, %v1351
      %v1426 = vpack.c.b16 %v1354, %v1353
      %1499 = vmatpush.bf16.msra.mxu0 %v1362
      %1500 = vmatpush.bf16.msra.mxu0 %v1361
      %1501 = vmatpush.bf16.msra.mxu0 %v1360
      %1502 = vmatpush.bf16.msra.mxu0 %v1359
      %1503 = vmatpush.bf16.msra.mxu0 %v1358
      %1504 = vmatpush.bf16.msra.mxu0 %v1357
      %1505 = vmatpush.bf16.msra.mxu0 %v1356
      %1506 = vmatpush.bf16.msra.mxu0 %v1355
      %1507 = vmatmul.bf16.gmra.mxu0 %v795
      %v1508 = vpop.f32.mrf.mxu0
      %v1509 = vadd.f32 0.0, %v1508
      %v1510 = vpop.f32.mrf.mxu0
      %v1511 = vadd.f32 0.0, %v1510
      %1512 = vmatmul.bf16.gmra.mxu0 %v796
      %v1513 = vpop.f32.mrf.mxu0
      %v1514 = vadd.f32 0.0, %v1513
      %v1515 = vpop.f32.mrf.mxu0
      %v1516 = vadd.f32 0.0, %v1515
      %1517 = vmatmul.bf16.gmra.mxu0 %v797
      %v1518 = vpop.f32.mrf.mxu0
      %v1519 = vadd.f32 0.0, %v1518
      %v1520 = vpop.f32.mrf.mxu0
      %v1521 = vadd.f32 0.0, %v1520
      %1522 = vmatmul.bf16.gmra.mxu0 %v798
      %v1523 = vpop.f32.mrf.mxu0
      %v1524 = vadd.f32 0.0, %v1523
      %v1525 = vpop.f32.mrf.mxu0
      %v1526 = vadd.f32 0.0, %v1525
      %1527 = vdwg.mxu0
      %1528 = vmatpush.bf16.msra.mxu0 %v1370
      %1529 = vmatpush.bf16.msra.mxu0 %v1369
      %1530 = vmatpush.bf16.msra.mxu0 %v1368
      %1531 = vmatpush.bf16.msra.mxu0 %v1367
      %1532 = vmatpush.bf16.msra.mxu0 %v1366
      %1533 = vmatpush.bf16.msra.mxu0 %v1365
      %1534 = vmatpush.bf16.msra.mxu0 %v1364
      %1535 = vmatpush.bf16.msra.mxu0 %v1363
      %1536 = vmatmul.bf16.gmra.mxu0 %v819
      %v1537 = vpop.f32.mrf.mxu0
      %v1538 = vadd.f32 %v1509, %v1537
      %v1539 = vpop.f32.mrf.mxu0
      %v1540 = vadd.f32 %v1511, %v1539
      %1541 = vmatmul.bf16.gmra.mxu0 %v831
      %v1542 = vpop.f32.mrf.mxu0
      %v1543 = vadd.f32 %v1514, %v1542
      %v1544 = vpop.f32.mrf.mxu0
      %v1545 = vadd.f32 %v1516, %v1544
      %1546 = vmatmul.bf16.gmra.mxu0 %v843
      %v1547 = vpop.f32.mrf.mxu0
      %v1548 = vadd.f32 %v1519, %v1547
      %v1549 = vpop.f32.mrf.mxu0
      %v1550 = vadd.f32 %v1521, %v1549
      %1551 = vmatmul.bf16.gmra.mxu0 %v855
      %v1552 = vpop.f32.mrf.mxu0
      %v1553 = vadd.f32 %v1524, %v1552
      %v1554 = vpop.f32.mrf.mxu0
      %v1555 = vadd.f32 %v1526, %v1554
      %1556 = vdwg.mxu0
      %1557 = vmatpush.bf16.msra.mxu0 %v1378
      %1558 = vmatpush.bf16.msra.mxu0 %v1377
      %1559 = vmatpush.bf16.msra.mxu0 %v1376
      %1560 = vmatpush.bf16.msra.mxu0 %v1375
      %1561 = vmatpush.bf16.msra.mxu0 %v1374
      %1562 = vmatpush.bf16.msra.mxu0 %v1373
      %1563 = vmatpush.bf16.msra.mxu0 %v1372
      %1564 = vmatpush.bf16.msra.mxu0 %v1371
      %1565 = vmatmul.bf16.gmra.mxu0 %v871
      %v1566 = vpop.f32.mrf.mxu0
      %v1567 = vadd.f32 %v1538, %v1566
      %v1568 = vpop.f32.mrf.mxu0
      %v1569 = vadd.f32 %v1540, %v1568
      %1570 = vmatmul.bf16.gmra.mxu0 %v874
      %v1571 = vpop.f32.mrf.mxu0
      %v1572 = vadd.f32 %v1543, %v1571
      %v1573 = vpop.f32.mrf.mxu0
      %v1574 = vadd.f32 %v1545, %v1573
      %1575 = vmatmul.bf16.gmra.mxu0 %v877
      %v1576 = vpop.f32.mrf.mxu0
      %v1577 = vadd.f32 %v1548, %v1576
      %v1578 = vpop.f32.mrf.mxu0
      %v1579 = vadd.f32 %v1550, %v1578
      %1580 = vmatmul.bf16.gmra.mxu0 %v880
      %v1581 = vpop.f32.mrf.mxu0
      %v1582 = vadd.f32 %v1553, %v1581
      %v1583 = vpop.f32.mrf.mxu0
      %v1584 = vadd.f32 %v1555, %v1583
      %1585 = vdwg.mxu0
      %1586 = vmatpush.bf16.msra.mxu0 %v1386
      %1587 = vmatpush.bf16.msra.mxu0 %v1385
      %1588 = vmatpush.bf16.msra.mxu0 %v1384
      %1589 = vmatpush.bf16.msra.mxu0 %v1383
      %1590 = vmatpush.bf16.msra.mxu0 %v1382
      %1591 = vmatpush.bf16.msra.mxu0 %v1381
      %1592 = vmatpush.bf16.msra.mxu0 %v1380
      %1593 = vmatpush.bf16.msra.mxu0 %v1379
      %1594 = vmatmul.bf16.gmra.mxu0 %v796
      %v1595 = vpop.f32.mrf.mxu0
      %v1596 = vadd.f32 %v1567, %v1595
      %v1597 = vpop.f32.mrf.mxu0
      %v1598 = vadd.f32 %v1569, %v1597
      %1599 = vmatmul.bf16.gmra.mxu0 %v797
      %v1600 = vpop.f32.mrf.mxu0
      %v1601 = vadd.f32 %v1572, %v1600
      %v1602 = vpop.f32.mrf.mxu0
      %v1603 = vadd.f32 %v1574, %v1602
      %1604 = vmatmul.bf16.gmra.mxu0 %v798
      %v1605 = vpop.f32.mrf.mxu0
      %v1606 = vadd.f32 %v1577, %v1605
      %v1607 = vpop.f32.mrf.mxu0
      %v1608 = vadd.f32 %v1579, %v1607
      %1609 = vmatmul.bf16.gmra.mxu0 %v799
      %v1610 = vpop.f32.mrf.mxu0
      %v1611 = vadd.f32 %v1582, %v1610
      %v1612 = vpop.f32.mrf.mxu0
      %v1613 = vadd.f32 %v1584, %v1612
      %1614 = vdwg.mxu0
      %1615 = vmatpush.bf16.msra.mxu0 %v1394
      %1616 = vmatpush.bf16.msra.mxu0 %v1393
      %1617 = vmatpush.bf16.msra.mxu0 %v1392
      %1618 = vmatpush.bf16.msra.mxu0 %v1391
      %1619 = vmatpush.bf16.msra.mxu0 %v1390
      %1620 = vmatpush.bf16.msra.mxu0 %v1389
      %1621 = vmatpush.bf16.msra.mxu0 %v1388
      %1622 = vmatpush.bf16.msra.mxu0 %v1387
      %1623 = vmatmul.bf16.gmra.mxu0 %v831
      %v1624 = vpop.f32.mrf.mxu0
      %v1625 = vadd.f32 %v1596, %v1624
      %v1626 = vpop.f32.mrf.mxu0
      %v1627 = vadd.f32 %v1598, %v1626
      %1628 = vmatmul.bf16.gmra.mxu0 %v843
      %v1629 = vpop.f32.mrf.mxu0
      %v1630 = vadd.f32 %v1601, %v1629
      %v1631 = vpop.f32.mrf.mxu0
      %v1632 = vadd.f32 %v1603, %v1631
      %1633 = vmatmul.bf16.gmra.mxu0 %v855
      %v1634 = vpop.f32.mrf.mxu0
      %v1635 = vadd.f32 %v1606, %v1634
      %v1636 = vpop.f32.mrf.mxu0
      %v1637 = vadd.f32 %v1608, %v1636
      %1638 = vmatmul.bf16.gmra.mxu0 %v896
      %v1639 = vpop.f32.mrf.mxu0
      %v1640 = vadd.f32 %v1611, %v1639
      %v1641 = vpop.f32.mrf.mxu0
      %v1642 = vadd.f32 %v1613, %v1641
      %1643 = vdwg.mxu0
      %1644 = vmatpush.bf16.msra.mxu0 %v1402
      %1645 = vmatpush.bf16.msra.mxu0 %v1401
      %1646 = vmatpush.bf16.msra.mxu0 %v1400
      %1647 = vmatpush.bf16.msra.mxu0 %v1399
      %1648 = vmatpush.bf16.msra.mxu0 %v1398
      %1649 = vmatpush.bf16.msra.mxu0 %v1397
      %1650 = vmatpush.bf16.msra.mxu0 %v1396
      %1651 = vmatpush.bf16.msra.mxu0 %v1395
      %1652 = vmatmul.bf16.gmra.mxu0 %v874
      %v1653 = vpop.f32.mrf.mxu0
      %v1654 = vadd.f32 %v1625, %v1653
      %v1655 = vpop.f32.mrf.mxu0
      %v1656 = vadd.f32 %v1627, %v1655
      %1657 = vmatmul.bf16.gmra.mxu0 %v877
      %v1658 = vpop.f32.mrf.mxu0
      %v1659 = vadd.f32 %v1630, %v1658
      %v1660 = vpop.f32.mrf.mxu0
      %v1661 = vadd.f32 %v1632, %v1660
      %1662 = vmatmul.bf16.gmra.mxu0 %v880
      %v1663 = vpop.f32.mrf.mxu0
      %v1664 = vadd.f32 %v1635, %v1663
      %v1665 = vpop.f32.mrf.mxu0
      %v1666 = vadd.f32 %v1637, %v1665
      %1667 = vmatmul.bf16.gmra.mxu0 %v902
      %v1668 = vpop.f32.mrf.mxu0
      %v1669 = vadd.f32 %v1640, %v1668
      %v1670 = vpop.f32.mrf.mxu0
      %v1671 = vadd.f32 %v1642, %v1670
      %1672 = vdwg.mxu0
      %1673 = vmatpush.bf16.msra.mxu0 %v1410
      %1674 = vmatpush.bf16.msra.mxu0 %v1409
      %1675 = vmatpush.bf16.msra.mxu0 %v1408
      %1676 = vmatpush.bf16.msra.mxu0 %v1407
      %1677 = vmatpush.bf16.msra.mxu0 %v1406
      %1678 = vmatpush.bf16.msra.mxu0 %v1405
      %1679 = vmatpush.bf16.msra.mxu0 %v1404
      %1680 = vmatpush.bf16.msra.mxu0 %v1403
      %1681 = vmatmul.bf16.gmra.mxu0 %v797
      %v1682 = vpop.f32.mrf.mxu0
      %v1683 = vadd.f32 %v1654, %v1682
      %v1684 = vpop.f32.mrf.mxu0
      %v1685 = vadd.f32 %v1656, %v1684
      %1686 = vmatmul.bf16.gmra.mxu0 %v798
      %v1687 = vpop.f32.mrf.mxu0
      %v1688 = vadd.f32 %v1659, %v1687
      %v1689 = vpop.f32.mrf.mxu0
      %v1690 = vadd.f32 %v1661, %v1689
      %1691 = vmatmul.bf16.gmra.mxu0 %v799
      %v1692 = vpop.f32.mrf.mxu0
      %v1693 = vadd.f32 %v1664, %v1692
      %v1694 = vpop.f32.mrf.mxu0
      %v1695 = vadd.f32 %v1666, %v1694
      %1696 = vmatmul.bf16.gmra.mxu0 %v800
      %v1697 = vpop.f32.mrf.mxu0
      %v1698 = vadd.f32 %v1669, %v1697
      %v1699 = vpop.f32.mrf.mxu0
      %v1700 = vadd.f32 %v1671, %v1699
      %1701 = vdwg.mxu0
      %1702 = vmatpush.bf16.msra.mxu0 %v1418
      %1703 = vmatpush.bf16.msra.mxu0 %v1417
      %1704 = vmatpush.bf16.msra.mxu0 %v1416
      %1705 = vmatpush.bf16.msra.mxu0 %v1415
      %1706 = vmatpush.bf16.msra.mxu0 %v1414
      %1707 = vmatpush.bf16.msra.mxu0 %v1413
      %1708 = vmatpush.bf16.msra.mxu0 %v1412
      %1709 = vmatpush.bf16.msra.mxu0 %v1411
      %1710 = vmatmul.bf16.gmra.mxu0 %v843
      %v1711 = vpop.f32.mrf.mxu0
      %v1712 = vadd.f32 %v1683, %v1711
      %v1713 = vpop.f32.mrf.mxu0
      %v1714 = vadd.f32 %v1685, %v1713
      %1715 = vmatmul.bf16.gmra.mxu0 %v855
      %v1716 = vpop.f32.mrf.mxu0
      %v1717 = vadd.f32 %v1688, %v1716
      %v1718 = vpop.f32.mrf.mxu0
      %v1719 = vadd.f32 %v1690, %v1718
      %1720 = vmatmul.bf16.gmra.mxu0 %v896
      %v1721 = vpop.f32.mrf.mxu0
      %v1722 = vadd.f32 %v1693, %v1721
      %v1723 = vpop.f32.mrf.mxu0
      %v1724 = vadd.f32 %v1695, %v1723
      %1725 = vmatmul.bf16.gmra.mxu0 %v915
      %v1726 = vpop.f32.mrf.mxu0
      %v1727 = vadd.f32 %v1698, %v1726
      %v1728 = vpop.f32.mrf.mxu0
      %v1729 = vadd.f32 %v1700, %v1728
      %1730 = vdwg.mxu0
      %1731 = vmatpush.bf16.msra.mxu0 %v1426
      %1732 = vmatpush.bf16.msra.mxu0 %v1425
      %1733 = vmatpush.bf16.msra.mxu0 %v1424
      %1734 = vmatpush.bf16.msra.mxu0 %v1423
      %1735 = vmatpush.bf16.msra.mxu0 %v1422
      %1736 = vmatpush.bf16.msra.mxu0 %v1421
      %1737 = vmatpush.bf16.msra.mxu0 %v1420
      %1738 = vmatpush.bf16.msra.mxu0 %v1419
      %1739 = vmatmul.bf16.gmra.mxu0 %v877
      %v1740 = vpop.f32.mrf.mxu0
      %v1741 = vadd.f32 %v1712, %v1740
      %v1742 = vpop.f32.mrf.mxu0
      %v1743 = vadd.f32 %v1714, %v1742
      %1744 = vmatmul.bf16.gmra.mxu0 %v880
      %v1745 = vpop.f32.mrf.mxu0
      %v1746 = vadd.f32 %v1717, %v1745
      %v1747 = vpop.f32.mrf.mxu0
      %v1748 = vadd.f32 %v1719, %v1747
      %1749 = vmatmul.bf16.gmra.mxu0 %v902
      %v1750 = vpop.f32.mrf.mxu0
      %v1751 = vadd.f32 %v1722, %v1750
      %v1752 = vpop.f32.mrf.mxu0
      %v1753 = vadd.f32 %v1724, %v1752
      %1754 = vmatmul.bf16.gmra.mxu0 %v921
      %v1755 = vpop.f32.mrf.mxu0
      %v1756 = vadd.f32 %v1727, %v1755
      %v1757 = vpop.f32.mrf.mxu0
      %v1758 = vadd.f32 %v1729, %v1757
      %1759 = vdwg.mxu0
      %v1760 = vpack.c.bf16 %v1741, %v1741
      %v1761 = vpack.c.bf16 %v1743, %v1743
      %v1762 = vpack.c.bf16 %v1746, %v1746
      %v1763 = vpack.c.bf16 %v1748, %v1748
      %v1764 = vpack.c.bf16 %v1751, %v1751
      %v1765 = vpack.c.bf16 %v1753, %v1753
      %v1766 = vpack.c.bf16 %v1756, %v1756
      %v1767 = vpack.c.bf16 %v1758, %v1758
      %1768 = vst [vmem:[%s252] sm:$0xf] %v1760
      %1769 = vst [vmem:[%s252 + $0x4] sm:$0xf] %v1761
      %1770 = vst [vmem:[%s252 + $0x8] sm:$0xf] %v1762
      %1771 = vst [vmem:[%s252 + $0xc] sm:$0xf] %v1763
      %1772 = vst [vmem:[%s252 + $0x10] sm:$0xf] %v1764
      %1773 = vst [vmem:[%s252 + $0x14] sm:$0xf] %v1765
      %1774 = vst [vmem:[%s252 + $0x18] sm:$0xf] %v1766
      %1775 = vst [vmem:[%s252 + $0x1c] sm:$0xf] %v1767
      %v1776 = vadd.f32 %v1741, %v1743
      %v1777 = vadd.f32 %v1776, %v1746
      %v1778 = vadd.f32 %v1777, %v1748
      %v1779 = vadd.f32 %v1778, %v1751
      %v1780 = vadd.f32 %v1779, %v1753
      %v1781 = vadd.f32 %v1780, %v1756
      %v1782 = vadd.f32 %v1781, %v1758
      %v1783 = vrot.slane %v1782, 4
      %v1784 = vadd.f32 %v1782, %v1783
      %v1785 = vrot.slane %v1784, 2
      %v1786 = vadd.f32 %v1784, %v1785
      %v1787 = vrot.slane %v1786, 1
      %v1788 = vadd.f32 %v1786, %v1787
      %v1789 = vmul.f32 %v1788, 0.015625
      %v1790 = vsub.f32 %v1741, %v1789
      %v1791 = vsub.f32 %v1743, %v1789
      %v1792 = vsub.f32 %v1746, %v1789
      %v1793 = vsub.f32 %v1748, %v1789
      %v1794 = vsub.f32 %v1751, %v1789
      %v1795 = vsub.f32 %v1753, %v1789
      %v1796 = vsub.f32 %v1756, %v1789
      %v1797 = vsub.f32 %v1758, %v1789
      %1798 = vst [vmem:[%s260] sm:$0x1] %v1789
      %v1799 = vmul.f32 %v1790, %v1790
      %v1800 = vmul.f32 %v1791, %v1791
      %v1801 = vmul.f32 %v1792, %v1792
      %v1802 = vmul.f32 %v1793, %v1793
      %v1803 = vmul.f32 %v1794, %v1794
      %v1804 = vmul.f32 %v1795, %v1795
      %v1805 = vmul.f32 %v1796, %v1796
      %v1806 = vmul.f32 %v1797, %v1797
      %v1807 = vadd.f32 %v1799, %v1800
      %v1808 = vadd.f32 %v1807, %v1801
      %v1809 = vadd.f32 %v1808, %v1802
      %v1810 = vadd.f32 %v1809, %v1803
      %v1811 = vadd.f32 %v1810, %v1804
      %v1812 = vadd.f32 %v1811, %v1805
      %v1813 = vadd.f32 %v1812, %v1806
      %v1814 = vrot.slane %v1813, 4
      %v1815 = vadd.f32 %v1813, %v1814
      %v1816 = vrot.slane %v1815, 2
      %v1817 = vadd.f32 %v1815, %v1816
      %v1818 = vrot.slane %v1817, 1
      %v1819 = vadd.f32 %v1817, %v1818
      %1820 = vst [vmem:[%s267] sm:$0x1] %v1819
      %s1821 = smul.u32 4, %s23
      %p1822 = scmp.lt.s32.totalorder %s22, 1
      %s1823 = scalar_select %p1822, %s22, 1
      %p1824 = scmp.lt.s32.totalorder %s1821, 15
      %s1825 = scalar_select %p1824, %s1821, 15
      %s1826 = smul.addr %s1825, 2
      %s1827 = smul.addr %s1823, 32
      %s1828 = sadd.s32 %s1826, %s1827
      %s1829 = smul.addr %s1828, 4
      %s1830 = scalar_lea.vmem %s4, %s1829
      %p1831 = scmp.lt.s32.totalorder %s22, 1
      %s1832 = scalar_select %p1831, %s22, 1
      %p1833 = scmp.lt.s32.totalorder %s23, 3
      %s1834 = scalar_select %p1833, %s23, 3
      %s1835 = smul.addr %s1832, 4
      %s1836 = sadd.s32 %s1834, %s1835
      %s1837 = scalar_lea.vmem %s5, %s1836
      %p1838 = scmp.lt.s32.totalorder %s22, 1
      %s1839 = scalar_select %p1838, %s22, 1
      %p1840 = scmp.lt.s32.totalorder %s23, 3
      %s1841 = scalar_select %p1840, %s23, 3
      %s1842 = smul.addr %s1839, 4
      %s1843 = sadd.s32 %s1841, %s1842
      %s1844 = scalar_lea.vmem %s6, %s1843
      // Predicated region
      $region239: #{_lambda_.4} parent=31 // pred_check
        %p1845 = pneg %p113
      $region240: #{_lambda_.4} parent=31 // pred_check_branch
        %1847 = sbr.rel (%p1845) target = $region242
      $region241: #{_lambda_.4} parent=31 // pred_region
        %s1848 = smul.u32 4, %s23
      $region242: #{_lambda_.4} parent=31 // pred_fallthru
        _
      // Predicated region
      $region243: #{_lambda_.4} parent=31 // pred_check
        %p1849 = pneg %p141
      $region244: #{_lambda_.4} parent=31 // pred_check_branch
        %1851 = sbr.rel (%p1849) target = $region246
      $region245: #{_lambda_.4} parent=31 // pred_region
        _
      $region246: #{_lambda_.4} parent=31 // pred_fallthru
        _
      // Predicated region
      $region247: #{_lambda_.4} parent=31 // pred_check
        %p1852 = pneg %p169
      $region248: #{_lambda_.4} parent=31 // pred_check_branch
        %1854 = sbr.rel (%p1852) target = $region250
      $region249: #{_lambda_.4} parent=31 // pred_region
        _
      $region250: #{_lambda_.4} parent=31 // pred_fallthru
        _
    $region32: #{_lambda_.4} parent=5 // pred_fallthru
      _
    %p1855 = scmp.le.s32.totalorder 2, %s13
    // Predicated region
    $region251: #{_lambda_.4} parent=5 // pred_check
      %p1856 = pneg %p1855
    $region252: #{_lambda_.4} parent=5 // pred_check_branch
      %1858 = sbr.rel (%p1856) target = $region254
    $region253: #{_lambda_.4} parent=5 // pred_region
      %s1859 = ssub.s32 %s13, 2
      // Predicated region
      $region255: #{_lambda_.4} parent=253 // pred_check
        %p1860 = pneg %p119
      $region256: #{_lambda_.4} parent=253 // pred_check_branch
        %1862 = sbr.rel (%p1860) target = $region258
      $region257: #{_lambda_.4} parent=253 // pred_region
        %s1863 = smul.u32 4, %s25
        %p1864 = scmp.lt.s32.totalorder %s24, 1
        %s1865 = scalar_select %p1864, %s24, 1
        %p1866 = scmp.lt.s32.totalorder %s1863, 15
        %s1867 = scalar_select %p1866, %s1863, 15
        %s1868 = smul.addr %s1867, 2
        %s1869 = smul.addr %s1865, 32
        %s1870 = sadd.s32 %s1868, %s1869
        %s1871 = smul.addr %s1870, 4
        %s1872 = scalar_lea.vmem %s4, %s1871
      $region258: #{_lambda_.4} parent=253 // pred_fallthru
        _
      // Predicated region
      $region259: #{_lambda_.4} parent=253 // pred_check
        %p1873 = pneg %p147
      $region260: #{_lambda_.4} parent=253 // pred_check_branch
        %1875 = sbr.rel (%p1873) target = $region262
      $region261: #{_lambda_.4} parent=253 // pred_region
        %p1876 = scmp.lt.s32.totalorder %s24, 1
        %s1877 = scalar_select %p1876, %s24, 1
        %p1878 = scmp.lt.s32.totalorder %s25, 3
        %s1879 = scalar_select %p1878, %s25, 3
        %s1880 = smul.addr %s1877, 4
        %s1881 = sadd.s32 %s1879, %s1880
        %s1882 = scalar_lea.vmem %s5, %s1881
      $region262: #{_lambda_.4} parent=253 // pred_fallthru
        _
      // Predicated region
      $region263: #{_lambda_.4} parent=253 // pred_check
        %p1883 = pneg %p175
      $region264: #{_lambda_.4} parent=253 // pred_check_branch
        %1885 = sbr.rel (%p1883) target = $region266
      $region265: #{_lambda_.4} parent=253 // pred_region
        %p1886 = scmp.lt.s32.totalorder %s24, 1
        %s1887 = scalar_select %p1886, %s24, 1
        %p1888 = scmp.lt.s32.totalorder %s25, 3
        %s1889 = scalar_select %p1888, %s25, 3
        %s1890 = smul.addr %s1887, 4
        %s1891 = sadd.s32 %s1889, %s1890
        %s1892 = scalar_lea.vmem %s6, %s1891
      $region266: #{_lambda_.4} parent=253 // pred_fallthru
        _
    $region254: #{_lambda_.4} parent=5 // pred_fallthru
      _
  $region6: #{_lambda_.4} parent=0 // loop_footer
    %s17 = sadd.s32 1, %s13
  $region7: #{_lambda_.4} parent=0 // loop_footer_branch
    %12 = sbr.rel target = $region3
  $region8: #{_lambda_.4} parent=0 // loop_exit
    _
  %1893 = vsyncmov [#allocation3]
  %s1894 = vpop.sfrf %1893
  %p1895 = scmp.eq.s32.totalorder %s1894, 0
  %p1896 = pneg %p1895
  %1898 = shalt.err (%p1896)
  %s1899 = scalar_lea.sflag [#allocation3], 1
  %1900 = vsyncmov %s1899
  %s1901 = vpop.sfrf %1900
  %p1902 = scmp.eq.s32.totalorder %s1901, 0
  %p1903 = pneg %p1902
  %1905 = shalt.err (%p1903)
  %s1906 = scalar_lea.sflag [#allocation3], 2
  %1907 = vsyncmov %s1906
  %s1908 = vpop.sfrf %1907
  %p1909 = scmp.eq.s32.totalorder %s1908, 0
  %p1910 = pneg %p1909
  %1912 = shalt.err (%p1910)
  %s1913 = scalar_lea.sflag [#allocation3], 3
  %1914 = vsyncmov %s1913
  %s1915 = vpop.sfrf %1914
  %p1916 = scmp.eq.s32.totalorder %s1915, 0
  %p1917 = pneg %p1916
  %1919 = shalt.err (%p1917)
  %s1920 = scalar_lea.sflag [#allocation3], 4
  %1921 = vsyncmov %s1920
  %s1922 = vpop.sfrf %1921
  %p1923 = scmp.eq.s32.totalorder %s1922, 0
  %p1924 = pneg %p1923
  %1926 = shalt.err (%p1924)
  %s1927 = scalar_lea.sflag [#allocation3], 5
  %1928 = vsyncmov %s1927
  %s1929 = vpop.sfrf %1928
  %p1930 = scmp.eq.s32.totalorder %s1929, 0
  %p1931 = pneg %p1930
  %1933 = shalt.err (%p1931)

</llo_original>
